<compile_context>
chip_gen: v7x
topology: tpu7x:2x2x1
jax: 0.10.0
libtpu: 0.0.40
codegen_flags: <defaults>
</compile_context>

<pallas_src>
import functools

import jax
import jax.numpy as jnp
from jax.experimental import pallas as pl
from jax.experimental.pallas import tpu as pltpu

# ---------------------------------------------------------------------------
# Model-wide constants (toy sizes, lane-friendly padding)
# ---------------------------------------------------------------------------
C_IN = 3          # RGB input channels
STEM_C = 16       # "real" stem output channels (toy)
C_OUT_P = 128     # stem channels zero-padded to a full lane width
POOL = 7          # RoI pool output size (as in torchvision box head)
REP = 128         # box-head representation size (toy; 1024 in the real model)
TM_CONV = 256     # conv output-row tile
TK_HEAD = 7 * 128 # K tile for fc6 (divides POOL*POOL*C_OUT_P = 6272)


def _round_up(x, m):
    return (x + m - 1) // m * m


# ---------------------------------------------------------------------------
# Kernel 1: 3x3 same-padding conv + bias + ReLU as 9 shifted matmuls
#           (local f32 accumulator, single bf16 store per tile)
# ---------------------------------------------------------------------------
def _conv3x3_kernel(x_ref, w_ref, b_ref, o_ref, *, wp_stride, tm):
    # x_ref: [rows_pad, C_in] f32 (row-flattened padded image, full per image)
    # w_ref: [9, C_in, C_out_p] bf16, b_ref: [1, C_out_p] f32
    # o_ref: [tm, C_out_p] bf16  (flattened output rows, stride wp_stride)
    row0 = pl.multiple_of(pl.program_id(1) * tm, tm)
    acc = jnp.zeros(o_ref.shape, jnp.float32)
    for dy in range(3):
        for dx in range(3):
            off = dy * wp_stride + dx                     # static per-tap shift
            patch = x_ref[pl.ds(row0 + off, tm), :].astype(jnp.bfloat16)
            acc = acc + jnp.dot(patch, w_ref[dy * 3 + dx],
                                preferred_element_type=jnp.float32)
    o_ref[...] = jnp.maximum(acc + b_ref[...], 0.0).astype(o_ref.dtype)


def pallas_conv3x3_relu(x_nchw, w_tap, b_row, *, tm=TM_CONV):
    """3x3 / stride-1 / pad-1 conv + ReLU. Returns NHWC [N, H, W, C_out_p] bf16."""
    n, c_in, h, w = x_nchw.shape
    hp, wp = h + 2, w + 2
    c_out_p = w_tap.shape[-1]

    # NCHW -> NHWC, zero-pad spatially, flatten rows of the padded grid (1x traffic).
    x = jnp.transpose(x_nchw, (0, 2, 3, 1))
    x = jnp.pad(x, ((0, 0), (1, 1), (1, 1), (0, 0)))
    x_flat = x.reshape(n, hp * wp, c_in)

    grid_m = pl.cdiv(h * wp, tm)                 # enough tiles to cover h*wp rows
    halo = 2 * wp + 2                            # largest per-tap shift
    rows_pad = _round_up(grid_m * tm + halo, 8)  # zero-pad so in-kernel ds never OOBs
    x_flat = jnp.pad(x_flat, ((0, 0), (0, rows_pad - hp * wp), (0, 0)))

    out = pl.pallas_call(
        functools.partial(_conv3x3_kernel, wp_stride=wp, tm=tm),
        out_shape=jax.ShapeDtypeStruct((n, grid_m * tm, c_out_p), jnp.bfloat16),
        grid=(n, grid_m),
        in_specs=[
            # full flattened image per batch element; block index constant
            # across the m axis -> fetched once per image by the pipeline.
            pl.BlockSpec((None, rows_pad, c_in), lambda i, j: (i, 0, 0)),
            pl.BlockSpec((9, c_in, c_out_p), lambda i, j: (0, 0, 0)),
            pl.BlockSpec((1, c_out_p), lambda i, j: (0, 0)),
        ],
        out_specs=pl.BlockSpec((None, tm, c_out_p), lambda i, j: (i, j, 0)),
        compiler_params=pltpu.CompilerParams(
            dimension_semantics=("parallel", "parallel")),
    )(x_flat, w_tap, b_row)

    # Un-flatten: rows are (y, x) over the padded-width grid; crop pad columns.
    feat = out[:, : h * wp, :].reshape(n, h, wp, c_out_p)[:, :, :w, :]
    return feat


# ---------------------------------------------------------------------------
# Kernel 2: fused RoI box head  (fc6 -> ReLU -> fc7 -> ReLU -> [cls|bbox])
#           K-tiled fc6 with f32 VMEM accumulator, epilogue on last K step.
# ---------------------------------------------------------------------------
def _box_head_kernel(roi_ref, w6_ref, b6_ref, w7_ref, b7_ref, wp_ref, bp_ref,
                     o_ref, acc_ref):
    k = pl.program_id(1)

    @pl.when(k == 0)
    def _():
        acc_ref[...] = jnp.zeros_like(acc_ref)

    acc_ref[...] += jnp.dot(roi_ref[...], w6_ref[...],
                            preferred_element_type=jnp.float32)

    @pl.when(k == pl.num_programs(1) - 1)
    def _():
        h6 = jnp.maximum(acc_ref[...] + b6_ref[...], 0.0).astype(jnp.bfloat16)
        h7 = jnp.dot(h6, w7_ref[...], preferred_element_type=jnp.float32)
        h7 = jnp.maximum(h7 + b7_ref[...], 0.0).astype(jnp.bfloat16)
        pred = jnp.dot(h7, wp_ref[...], preferred_element_type=jnp.float32)
        o_ref[...] = pred + bp_ref[...]


def pallas_box_head(roi, fc6_w, fc6_b, fc7_w, fc7_b, pred_w, pred_b,
                    *, tk=TK_HEAD):
    m, k_dim = roi.shape
    rep = fc6_w.shape[1]
    npp = pred_w.shape[1]
    if k_dim % tk != 0:
        tk = k_dim
    tm = min(256, _round_up(m, 8))
    m_pad = _round_up(m, tm)
    roi_p = jnp.pad(roi, ((0, m_pad - m), (0, 0))).astype(jnp.bfloat16)

    out = pl.pallas_call(
        _box_head_kernel,
        out_shape=jax.ShapeDtypeStruct((m_pad, npp), jnp.float32),
        grid=(m_pad // tm, k_dim // tk),
        in_specs=[
            pl.BlockSpec((tm, tk), lambda i, j: (i, j)),      # roi tile
            pl.BlockSpec((tk, rep), lambda i, j: (j, 0)),     # fc6 weight K-slab
            pl.BlockSpec((1, rep), lambda i, j: (0, 0)),      # fc6 bias
            pl.BlockSpec((rep, rep), lambda i, j: (0, 0)),    # fc7 weight
            pl.BlockSpec((1, rep), lambda i, j: (0, 0)),      # fc7 bias
            pl.BlockSpec((rep, npp), lambda i, j: (0, 0)),    # fused predictor W
            pl.BlockSpec((1, npp), lambda i, j: (0, 0)),      # fused predictor b
        ],
        out_specs=pl.BlockSpec((tm, npp), lambda i, j: (i, 0)),
        scratch_shapes=[pltpu.VMEM((tm, rep), jnp.float32)],
        compiler_params=pltpu.CompilerParams(
            dimension_semantics=("parallel", "arbitrary")),
    )(roi_p, fc6_w, fc6_b, fc7_w, fc7_b, pred_w, pred_b)
    return out[:m]


# ---------------------------------------------------------------------------
# Parameters (deterministic synthetic init — no checkpoint load)
# ---------------------------------------------------------------------------
def init_params(key, n_classes=5, stem_c=STEM_C):
    ks = jax.random.split(key, 5)
    s = 0.02

    # Stem conv, OIHW -> tap-major [kh*kw, C_in, C_out_p] (zero-padded channels).
    conv_w = s * jax.random.normal(ks[0], (stem_c, C_IN, 3, 3), jnp.float32)
    w_tap = jnp.transpose(conv_w, (2, 3, 1, 0))                  # [3,3,Cin,stem_c]
    w_tap = jnp.pad(w_tap, ((0, 0), (0, 0), (0, 0), (0, C_OUT_P - stem_c)))
    w_tap = w_tap.reshape(9, C_IN, C_OUT_P).astype(jnp.bfloat16)
    conv_b = jnp.zeros((1, C_OUT_P), jnp.float32)

    # fc6 weight laid out for NHWC-flattened, channel-padded RoI features;
    # rows for the padded channels are zero -> identical to a stem_c model.
    roi_dim = POOL * POOL * C_OUT_P
    fc6 = s * jax.random.normal(ks[1], (POOL, POOL, stem_c, REP), jnp.float32)
    fc6 = jnp.pad(fc6, ((0, 0), (0, 0), (0, C_OUT_P - stem_c), (0, 0)))
    fc6_w = fc6.reshape(roi_dim, REP).astype(jnp.bfloat16)
    fc6_b = jnp.zeros((1, REP), jnp.float32)

    fc7_w = (s * jax.random.normal(ks[2], (REP, REP), jnp.float32)).astype(jnp.bfloat16)
    fc7_b = jnp.zeros((1, REP), jnp.float32)

    # FastRCNNPredictor: cls_score [REP, n_classes] + bbox_pred [REP, 4*n_classes]
    # fused into a single lane-padded matmul.
    n_pred = 5 * n_classes
    n_pred_p = _round_up(n_pred, 128)
    cls_w = s * jax.random.normal(ks[3], (REP, n_classes), jnp.float32)
    bbox_w = s * jax.random.normal(ks[4], (REP, 4 * n_classes), jnp.float32)
    pred_w = jnp.concatenate([cls_w, bbox_w], axis=1)
    pred_w = jnp.pad(pred_w, ((0, 0), (0, n_pred_p - n_pred))).astype(jnp.bfloat16)
    pred_b = jnp.zeros((1, n_pred_p), jnp.float32)

    return dict(conv_w=w_tap, conv_b=conv_b,
                fc6_w=fc6_w, fc6_b=fc6_b, fc7_w=fc7_w, fc7_b=fc7_b,
                pred_w=pred_w, pred_b=pred_b)


# ---------------------------------------------------------------------------
# Forward (inference path; targets=None branch of the PyTorch module)
# ---------------------------------------------------------------------------
def faster_rcnn_forward(params, x_nchw, n_classes):
    # Backbone stem conv + ReLU (Pallas, in-kernel tap accumulation, bf16 out).
    feat = pallas_conv3x3_relu(x_nchw, params["conv_w"], params["conv_b"])

    # Surrogate RoI pooling: adaptive 7x7 average pool, one RoI per image.
    # TODO(synk): real RPN proposals + RoIAlign are not reproduced.
    n, h, w, c = feat.shape
    assert h % POOL == 0 and w % POOL == 0, "toy pooling requires H,W % 7 == 0"
    pooled = feat.astype(jnp.float32).reshape(
        n, POOL, h // POOL, POOL, w // POOL, c).mean(axis=(2, 4))
    roi = pooled.reshape(n, POOL * POOL * c)     # NHWC-flatten (fc6_w matches)

    # Fused box head + replaced FastRCNNPredictor (Pallas, single kernel).
    out = pallas_box_head(roi, params["fc6_w"], params["fc6_b"],
                          params["fc7_w"], params["fc7_b"],
                          params["pred_w"], params["pred_b"])
    scores = out[:, :n_classes]
    bbox_deltas = out[:, n_classes:5 * n_classes]
    return {"scores": scores, "bbox_deltas": bbox_deltas}


if __name__ == "__main__":
    key = jax.random.PRNGKey(0)
    pkey, xkey = jax.random.split(key)

    n_classes = 5
    params = init_params(pkey, n_classes=n_classes)

    # Small synthetic image batch, PyTorch NCHW convention.
    x = jax.random.normal(xkey, (2, 3, 28, 28), jnp.float32)

    fwd = jax.jit(functools.partial(faster_rcnn_forward, n_classes=n_classes))
    out = fwd(params, x)
    jax.block_until_ready(out)

    assert out["scores"].shape == (2, n_classes)
    assert out["bbox_deltas"].shape == (2, 4 * n_classes)
    print("KERNEL_OK")
</pallas_src>

<mosaic_0001>
module attributes {stable_mosaic.version = 11 : i64} {
  func.func @_conv3x3_kernel(%arg0: i32, %arg1: i32, %arg2: memref<1x1088x3xf32, #tpu.memory_space<vmem>>, %arg3: memref<9x3x128xbf16, #tpu.memory_space<vmem>>, %arg4: memref<1x128xf32, #tpu.memory_space<vmem>>, %arg5: memref<1x256x128xbf16, #tpu.memory_space<vmem>>) attributes {dimension_semantics = [#tpu.dimension_semantics<parallel>, #tpu.dimension_semantics<parallel>], iteration_bounds = array<i64: 2, 4>, scalar_prefetch = 0 : i64, scratch_operands = 0 : i64, tpu.core_type = #tpu.core_type<tc>, window_params = [{transform_indices = @transform_0, window_bounds = array<i64: 1, 1088, 3>}, {pipeline_mode = #tpu.pipeline_mode<synchronous>, transform_indices = @transform_1, window_bounds = array<i64: 9, 3, 128>}, {pipeline_mode = #tpu.pipeline_mode<synchronous>, transform_indices = @transform_2, window_bounds = array<i64: 1, 128>}, {transform_indices = @transform_3, window_bounds = array<i64: 1, 256, 128>}]} {
    %c256_i32 = arith.constant 256 : i32
    %0 = arith.muli %arg1, %c256_i32 : i32
    %1 = tpu.assume_multiple %0, 256 : i32
    %cst = arith.constant 0.000000e+00 : f32
    %2 = vector.broadcast %cst : f32 to vector<256x128xf32>
    %c0_i32 = arith.constant 0 : i32
    %3 = arith.addi %1, %c0_i32 : i32
    %c0 = arith.constant 0 : index
    %4 = arith.index_cast %3 : i32 to index
    %c0_0 = arith.constant 0 : index
    %5 = vector.load %arg2[%c0, %4, %c0_0] : memref<1x1088x3xf32, #tpu.memory_space<vmem>>, vector<1x256x3xf32>
    %6 = vector.shape_cast %5 : vector<1x256x3xf32> to vector<256x3xf32>
    %7 = arith.truncf %6 : vector<256x3xf32> to vector<256x3xbf16>
    %c0_1 = arith.constant 0 : index
    %c0_2 = arith.constant 0 : index
    %c0_3 = arith.constant 0 : index
    %8 = vector.load %arg3[%c0_1, %c0_2, %c0_3] : memref<9x3x128xbf16, #tpu.memory_space<vmem>>, vector<1x3x128xbf16>
    %9 = vector.shape_cast %8 : vector<1x3x128xbf16> to vector<3x128xbf16>
    %cst_4 = arith.constant dense<0.000000e+00> : vector<256x128xf32>
    %10 = tpu.matmul %7, %9, %cst_4 {dimension_numbers = #tpu.dot_dimension_numbers<[1], [0], [0], [1], [0, 0, 1, 1], [], []>} : vector<256x3xbf16>, vector<3x128xbf16>, vector<256x128xf32> -> vector<256x128xf32>
    %11 = arith.addf %2, %10 : vector<256x128xf32>
    %c1_i32 = arith.constant 1 : i32
    %12 = arith.addi %1, %c1_i32 : i32
    %c0_5 = arith.constant 0 : index
    %13 = arith.index_cast %12 : i32 to index
    %c0_6 = arith.constant 0 : index
    %14 = vector.load %arg2[%c0_5, %13, %c0_6] : memref<1x1088x3xf32, #tpu.memory_space<vmem>>, vector<1x256x3xf32>
    %15 = vector.shape_cast %14 : vector<1x256x3xf32> to vector<256x3xf32>
    %16 = arith.truncf %15 : vector<256x3xf32> to vector<256x3xbf16>
    %c1 = arith.constant 1 : index
    %c0_7 = arith.constant 0 : index
    %c0_8 = arith.constant 0 : index
    %17 = vector.load %arg3[%c1, %c0_7, %c0_8] : memref<9x3x128xbf16, #tpu.memory_space<vmem>>, vector<1x3x128xbf16>
    %18 = vector.shape_cast %17 : vector<1x3x128xbf16> to vector<3x128xbf16>
    %cst_9 = arith.constant dense<0.000000e+00> : vector<256x128xf32>
    %19 = tpu.matmul %16, %18, %cst_9 {dimension_numbers = #tpu.dot_dimension_numbers<[1], [0], [0], [1], [0, 0, 1, 1], [], []>} : vector<256x3xbf16>, vector<3x128xbf16>, vector<256x128xf32> -> vector<256x128xf32>
    %20 = arith.addf %11, %19 : vector<256x128xf32>
    %c2_i32 = arith.constant 2 : i32
    %21 = arith.addi %1, %c2_i32 : i32
    %c0_10 = arith.constant 0 : index
    %22 = arith.index_cast %21 : i32 to index
    %c0_11 = arith.constant 0 : index
    %23 = vector.load %arg2[%c0_10, %22, %c0_11] : memref<1x1088x3xf32, #tpu.memory_space<vmem>>, vector<1x256x3xf32>
    %24 = vector.shape_cast %23 : vector<1x256x3xf32> to vector<256x3xf32>
    %25 = arith.truncf %24 : vector<256x3xf32> to vector<256x3xbf16>
    %c2 = arith.constant 2 : index
    %c0_12 = arith.constant 0 : index
    %c0_13 = arith.constant 0 : index
    %26 = vector.load %arg3[%c2, %c0_12, %c0_13] : memref<9x3x128xbf16, #tpu.memory_space<vmem>>, vector<1x3x128xbf16>
    %27 = vector.shape_cast %26 : vector<1x3x128xbf16> to vector<3x128xbf16>
    %cst_14 = arith.constant dense<0.000000e+00> : vector<256x128xf32>
    %28 = tpu.matmul %25, %27, %cst_14 {dimension_numbers = #tpu.dot_dimension_numbers<[1], [0], [0], [1], [0, 0, 1, 1], [], []>} : vector<256x3xbf16>, vector<3x128xbf16>, vector<256x128xf32> -> vector<256x128xf32>
    %29 = arith.addf %20, %28 : vector<256x128xf32>
    %c30_i32 = arith.constant 30 : i32
    %30 = arith.addi %1, %c30_i32 : i32
    %c0_15 = arith.constant 0 : index
    %31 = arith.index_cast %30 : i32 to index
    %c0_16 = arith.constant 0 : index
    %32 = vector.load %arg2[%c0_15, %31, %c0_16] : memref<1x1088x3xf32, #tpu.memory_space<vmem>>, vector<1x256x3xf32>
    %33 = vector.shape_cast %32 : vector<1x256x3xf32> to vector<256x3xf32>
    %34 = arith.truncf %33 : vector<256x3xf32> to vector<256x3xbf16>
    %c3 = arith.constant 3 : index
    %c0_17 = arith.constant 0 : index
    %c0_18 = arith.constant 0 : index
    %35 = vector.load %arg3[%c3, %c0_17, %c0_18] : memref<9x3x128xbf16, #tpu.memory_space<vmem>>, vector<1x3x128xbf16>
    %36 = vector.shape_cast %35 : vector<1x3x128xbf16> to vector<3x128xbf16>
    %cst_19 = arith.constant dense<0.000000e+00> : vector<256x128xf32>
    %37 = tpu.matmul %34, %36, %cst_19 {dimension_numbers = #tpu.dot_dimension_numbers<[1], [0], [0], [1], [0, 0, 1, 1], [], []>} : vector<256x3xbf16>, vector<3x128xbf16>, vector<256x128xf32> -> vector<256x128xf32>
    %38 = arith.addf %29, %37 : vector<256x128xf32>
    %c31_i32 = arith.constant 31 : i32
    %39 = arith.addi %1, %c31_i32 : i32
    %c0_20 = arith.constant 0 : index
    %40 = arith.index_cast %39 : i32 to index
    %c0_21 = arith.constant 0 : index
    %41 = vector.load %arg2[%c0_20, %40, %c0_21] : memref<1x1088x3xf32, #tpu.memory_space<vmem>>, vector<1x256x3xf32>
    %42 = vector.shape_cast %41 : vector<1x256x3xf32> to vector<256x3xf32>
    %43 = arith.truncf %42 : vector<256x3xf32> to vector<256x3xbf16>
    %c4 = arith.constant 4 : index
    %c0_22 = arith.constant 0 : index
    %c0_23 = arith.constant 0 : index
    %44 = vector.load %arg3[%c4, %c0_22, %c0_23] : memref<9x3x128xbf16, #tpu.memory_space<vmem>>, vector<1x3x128xbf16>
    %45 = vector.shape_cast %44 : vector<1x3x128xbf16> to vector<3x128xbf16>
    %cst_24 = arith.constant dense<0.000000e+00> : vector<256x128xf32>
    %46 = tpu.matmul %43, %45, %cst_24 {dimension_numbers = #tpu.dot_dimension_numbers<[1], [0], [0], [1], [0, 0, 1, 1], [], []>} : vector<256x3xbf16>, vector<3x128xbf16>, vector<256x128xf32> -> vector<256x128xf32>
    %47 = arith.addf %38, %46 : vector<256x128xf32>
    %c32_i32 = arith.constant 32 : i32
    %48 = arith.addi %1, %c32_i32 : i32
    %c0_25 = arith.constant 0 : index
    %49 = arith.index_cast %48 : i32 to index
    %c0_26 = arith.constant 0 : index
    %50 = vector.load %arg2[%c0_25, %49, %c0_26] : memref<1x1088x3xf32, #tpu.memory_space<vmem>>, vector<1x256x3xf32>
    %51 = vector.shape_cast %50 : vector<1x256x3xf32> to vector<256x3xf32>
    %52 = arith.truncf %51 : vector<256x3xf32> to vector<256x3xbf16>
    %c5 = arith.constant 5 : index
    %c0_27 = arith.constant 0 : index
    %c0_28 = arith.constant 0 : index
    %53 = vector.load %arg3[%c5, %c0_27, %c0_28] : memref<9x3x128xbf16, #tpu.memory_space<vmem>>, vector<1x3x128xbf16>
    %54 = vector.shape_cast %53 : vector<1x3x128xbf16> to vector<3x128xbf16>
    %cst_29 = arith.constant dense<0.000000e+00> : vector<256x128xf32>
    %55 = tpu.matmul %52, %54, %cst_29 {dimension_numbers = #tpu.dot_dimension_numbers<[1], [0], [0], [1], [0, 0, 1, 1], [], []>} : vector<256x3xbf16>, vector<3x128xbf16>, vector<256x128xf32> -> vector<256x128xf32>
    %56 = arith.addf %47, %55 : vector<256x128xf32>
    %c60_i32 = arith.constant 60 : i32
    %57 = arith.addi %1, %c60_i32 : i32
    %c0_30 = arith.constant 0 : index
    %58 = arith.index_cast %57 : i32 to index
    %c0_31 = arith.constant 0 : index
    %59 = vector.load %arg2[%c0_30, %58, %c0_31] : memref<1x1088x3xf32, #tpu.memory_space<vmem>>, vector<1x256x3xf32>
    %60 = vector.shape_cast %59 : vector<1x256x3xf32> to vector<256x3xf32>
    %61 = arith.truncf %60 : vector<256x3xf32> to vector<256x3xbf16>
    %c6 = arith.constant 6 : index
    %c0_32 = arith.constant 0 : index
    %c0_33 = arith.constant 0 : index
    %62 = vector.load %arg3[%c6, %c0_32, %c0_33] : memref<9x3x128xbf16, #tpu.memory_space<vmem>>, vector<1x3x128xbf16>
    %63 = vector.shape_cast %62 : vector<1x3x128xbf16> to vector<3x128xbf16>
    %cst_34 = arith.constant dense<0.000000e+00> : vector<256x128xf32>
    %64 = tpu.matmul %61, %63, %cst_34 {dimension_numbers = #tpu.dot_dimension_numbers<[1], [0], [0], [1], [0, 0, 1, 1], [], []>} : vector<256x3xbf16>, vector<3x128xbf16>, vector<256x128xf32> -> vector<256x128xf32>
    %65 = arith.addf %56, %64 : vector<256x128xf32>
    %c61_i32 = arith.constant 61 : i32
    %66 = arith.addi %1, %c61_i32 : i32
    %c0_35 = arith.constant 0 : index
    %67 = arith.index_cast %66 : i32 to index
    %c0_36 = arith.constant 0 : index
    %68 = vector.load %arg2[%c0_35, %67, %c0_36] : memref<1x1088x3xf32, #tpu.memory_space<vmem>>, vector<1x256x3xf32>
    %69 = vector.shape_cast %68 : vector<1x256x3xf32> to vector<256x3xf32>
    %70 = arith.truncf %69 : vector<256x3xf32> to vector<256x3xbf16>
    %c7 = arith.constant 7 : index
    %c0_37 = arith.constant 0 : index
    %c0_38 = arith.constant 0 : index
    %71 = vector.load %arg3[%c7, %c0_37, %c0_38] : memref<9x3x128xbf16, #tpu.memory_space<vmem>>, vector<1x3x128xbf16>
    %72 = vector.shape_cast %71 : vector<1x3x128xbf16> to vector<3x128xbf16>
    %cst_39 = arith.constant dense<0.000000e+00> : vector<256x128xf32>
    %73 = tpu.matmul %70, %72, %cst_39 {dimension_numbers = #tpu.dot_dimension_numbers<[1], [0], [0], [1], [0, 0, 1, 1], [], []>} : vector<256x3xbf16>, vector<3x128xbf16>, vector<256x128xf32> -> vector<256x128xf32>
    %74 = arith.addf %65, %73 : vector<256x128xf32>
    %c62_i32 = arith.constant 62 : i32
    %75 = arith.addi %1, %c62_i32 : i32
    %c0_40 = arith.constant 0 : index
    %76 = arith.index_cast %75 : i32 to index
    %c0_41 = arith.constant 0 : index
    %77 = vector.load %arg2[%c0_40, %76, %c0_41] : memref<1x1088x3xf32, #tpu.memory_space<vmem>>, vector<1x256x3xf32>
    %78 = vector.shape_cast %77 : vector<1x256x3xf32> to vector<256x3xf32>
    %79 = arith.truncf %78 : vector<256x3xf32> to vector<256x3xbf16>
    %c8 = arith.constant 8 : index
    %c0_42 = arith.constant 0 : index
    %c0_43 = arith.constant 0 : index
    %80 = vector.load %arg3[%c8, %c0_42, %c0_43] : memref<9x3x128xbf16, #tpu.memory_space<vmem>>, vector<1x3x128xbf16>
    %81 = vector.shape_cast %80 : vector<1x3x128xbf16> to vector<3x128xbf16>
    %cst_44 = arith.constant dense<0.000000e+00> : vector<256x128xf32>
    %82 = tpu.matmul %79, %81, %cst_44 {dimension_numbers = #tpu.dot_dimension_numbers<[1], [0], [0], [1], [0, 0, 1, 1], [], []>} : vector<256x3xbf16>, vector<3x128xbf16>, vector<256x128xf32> -> vector<256x128xf32>
    %83 = arith.addf %74, %82 : vector<256x128xf32>
    %c0_45 = arith.constant 0 : index
    %c0_46 = arith.constant 0 : index
    %84 = vector.load %arg4[%c0_45, %c0_46] : memref<1x128xf32, #tpu.memory_space<vmem>>, vector<1x128xf32>
    %85 = vector.broadcast %84 : vector<1x128xf32> to vector<256x128xf32>
    %86 = arith.addf %83, %85 : vector<256x128xf32>
    %cst_47 = arith.constant 0.000000e+00 : f32
    %87 = vector.broadcast %cst_47 : f32 to vector<256x128xf32>
    %88 = arith.maximumf %86, %87 : vector<256x128xf32>
    %89 = arith.truncf %88 : vector<256x128xf32> to vector<256x128xbf16>
    %c0_48 = arith.constant 0 : index
    %c0_49 = arith.constant 0 : index
    %c0_50 = arith.constant 0 : index
    %90 = vector.load %arg5[%c0_48, %c0_49, %c0_50] : memref<1x256x128xbf16, #tpu.memory_space<vmem>>, vector<1x256x128xbf16>
    %91 = vector.shape_cast %90 : vector<1x256x128xbf16> to vector<256x128xbf16>
    %92 = vector.shape_cast %89 : vector<256x128xbf16> to vector<1x256x128xbf16>
    tpu.vector_store %arg5[%c0_48, %c0_49, %c0_50], %92 {strides = array<i32>} : memref<1x256x128xbf16, #tpu.memory_space<vmem>>, vector<1x256x128xbf16>,
    return
  }
  func.func @transform_0(%arg0: i32, %arg1: i32) -> (i32, i32, i32) {
    %c0_i32 = arith.constant 0 : i32
    %c0_i32_0 = arith.constant 0 : i32
    %c0_i32_1 = arith.constant 0 : i32
    return %arg0, %c0_i32, %c0_i32_0 : i32, i32, i32
  }
  func.func @transform_1(%arg0: i32, %arg1: i32) -> (i32, i32, i32) {
    %c0_i32 = arith.constant 0 : i32
    %c0_i32_0 = arith.constant 0 : i32
    %c0_i32_1 = arith.constant 0 : i32
    %c0_i32_2 = arith.constant 0 : i32
    return %c0_i32, %c0_i32_0, %c0_i32_1 : i32, i32, i32
  }
  func.func @transform_2(%arg0: i32, %arg1: i32) -> (i32, i32) {
    %c0_i32 = arith.constant 0 : i32
    %c0_i32_0 = arith.constant 0 : i32
    %c0_i32_1 = arith.constant 0 : i32
    return %c0_i32, %c0_i32_0 : i32, i32
  }
  func.func @transform_3(%arg0: i32, %arg1: i32) -> (i32, i32, i32) {
    %c0_i32 = arith.constant 0 : i32
    %c0_i32_0 = arith.constant 0 : i32
    return %arg0, %arg1, %c0_i32 : i32, i32, i32
  }
}

module attributes {stable_mosaic.version = 11 : i64} {
  func.func @_box_head_kernel(%arg0: i32, %arg1: i32, %arg2: memref<8x896xbf16, #tpu.memory_space<vmem>>, %arg3: memref<896x128xbf16, #tpu.memory_space<vmem>>, %arg4: memref<1x128xf32, #tpu.memory_space<vmem>>, %arg5: memref<128x128xbf16, #tpu.memory_space<vmem>>, %arg6: memref<1x128xf32, #tpu.memory_space<vmem>>, %arg7: memref<128x128xbf16, #tpu.memory_space<vmem>>, %arg8: memref<1x128xf32, #tpu.memory_space<vmem>>, %arg9: memref<8x128xf32, #tpu.memory_space<vmem>>, %arg10: memref<8x128xf32, #tpu.memory_space<vmem>>) attributes {dimension_semantics = [#tpu.dimension_semantics<parallel>, #tpu.dimension_semantics<arbitrary>], iteration_bounds = array<i64: 1, 7>, scalar_prefetch = 0 : i64, scratch_operands = 1 : i64, tpu.core_type = #tpu.core_type<tc>, window_params = [{transform_indices = @transform_0, window_bounds = array<i64: 8, 896>}, {transform_indices = @transform_1, window_bounds = array<i64: 896, 128>}, {pipeline_mode = #tpu.pipeline_mode<synchronous>, transform_indices = @transform_2, window_bounds = array<i64: 1, 128>}, {pipeline_mode = #tpu.pipeline_mode<synchronous>, transform_indices = @transform_3, window_bounds = array<i64: 128, 128>}, {pipeline_mode = #tpu.pipeline_mode<synchronous>, transform_indices = @transform_4, window_bounds = array<i64: 1, 128>}, {pipeline_mode = #tpu.pipeline_mode<synchronous>, transform_indices = @transform_5, window_bounds = array<i64: 128, 128>}, {pipeline_mode = #tpu.pipeline_mode<synchronous>, transform_indices = @transform_6, window_bounds = array<i64: 1, 128>}, {transform_indices = @transform_7, window_bounds = array<i64: 8, 128>}]} {
    %c0_i32 = arith.constant 0 : i32
    %0 = arith.cmpi eq, %arg1, %c0_i32 : i32
    %1 = arith.extui %0 : i1 to i32
    %c0_i32_0 = arith.constant 0 : i32
    %2 = arith.cmpi ne, %1, %c0_i32_0 : i32
    scf.if %2 {
      %cst_9 = arith.constant 0.000000e+00 : f32
      %12 = vector.broadcast %cst_9 : f32 to vector<8x128xf32>
      %c0_10 = arith.constant 0 : index
      %c0_11 = arith.constant 0 : index
      %13 = vector.load %arg10[%c0_10, %c0_11] : memref<8x128xf32, #tpu.memory_space<vmem>>, vector<8x128xf32>
      tpu.vector_store %arg10[%c0_10, %c0_11], %12 {strides = array<i32>} : memref<8x128xf32, #tpu.memory_space<vmem>>, vector<8x128xf32>,
    } else {
    }
    %c0 = arith.constant 0 : index
    %c0_1 = arith.constant 0 : index
    %3 = vector.load %arg10[%c0, %c0_1] : memref<8x128xf32, #tpu.memory_space<vmem>>, vector<8x128xf32>
    %c0_2 = arith.constant 0 : index
    %c0_3 = arith.constant 0 : index
    %4 = vector.load %arg2[%c0_2, %c0_3] : memref<8x896xbf16, #tpu.memory_space<vmem>>, vector<8x896xbf16>
    %c0_4 = arith.constant 0 : index
    %c0_5 = arith.constant 0 : index
    %5 = vector.load %arg3[%c0_4, %c0_5] : memref<896x128xbf16, #tpu.memory_space<vmem>>, vector<896x128xbf16>
    %cst = arith.constant dense<0.000000e+00> : vector<8x128xf32>
    %6 = tpu.matmul %4, %5, %cst {dimension_numbers = #tpu.dot_dimension_numbers<[1], [0], [0], [1], [0, 0, 1, 1], [], []>} : vector<8x896xbf16>, vector<896x128xbf16>, vector<8x128xf32> -> vector<8x128xf32>
    %7 = arith.addf %3, %6 : vector<8x128xf32>
    %c0_6 = arith.constant 0 : index
    %c0_7 = arith.constant 0 : index
    %8 = vector.load %arg10[%c0_6, %c0_7] : memref<8x128xf32, #tpu.memory_space<vmem>>, vector<8x128xf32>
    tpu.vector_store %arg10[%c0_6, %c0_7], %7 {strides = array<i32>} : memref<8x128xf32, #tpu.memory_space<vmem>>, vector<8x128xf32>,
    %c6_i32 = arith.constant 6 : i32
    %9 = arith.cmpi eq, %arg1, %c6_i32 : i32
    %10 = arith.extui %9 : i1 to i32
    %c0_i32_8 = arith.constant 0 : i32
    %11 = arith.cmpi ne, %10, %c0_i32_8 : i32
    scf.if %11 {
      %c0_9 = arith.constant 0 : index
      %c0_10 = arith.constant 0 : index
      %12 = vector.load %arg10[%c0_9, %c0_10] : memref<8x128xf32, #tpu.memory_space<vmem>>, vector<8x128xf32>
      %c0_11 = arith.constant 0 : index
      %c0_12 = arith.constant 0 : index
      %13 = vector.load %arg4[%c0_11, %c0_12] : memref<1x128xf32, #tpu.memory_space<vmem>>, vector<1x128xf32>
      %14 = vector.broadcast %13 : vector<1x128xf32> to vector<8x128xf32>
      %15 = arith.addf %12, %14 : vector<8x128xf32>
      %cst_13 = arith.constant 0.000000e+00 : f32
      %16 = vector.broadcast %cst_13 : f32 to vector<8x128xf32>
      %17 = arith.maximumf %15, %16 : vector<8x128xf32>
      %18 = arith.truncf %17 : vector<8x128xf32> to vector<8x128xbf16>
      %c0_14 = arith.constant 0 : index
      %c0_15 = arith.constant 0 : index
      %19 = vector.load %arg5[%c0_14, %c0_15] : memref<128x128xbf16, #tpu.memory_space<vmem>>, vector<128x128xbf16>
      %cst_16 = arith.constant dense<0.000000e+00> : vector<8x128xf32>
      %20 = tpu.matmul %18, %19, %cst_16 {dimension_numbers = #tpu.dot_dimension_numbers<[1], [0], [0], [1], [0, 0, 1, 1], [], []>} : vector<8x128xbf16>, vector<128x128xbf16>, vector<8x128xf32> -> vector<8x128xf32>
      %c0_17 = arith.constant 0 : index
      %c0_18 = arith.constant 0 : index
      %21 = vector.load %arg6[%c0_17, %c0_18] : memref<1x128xf32, #tpu.memory_space<vmem>>, vector<1x128xf32>
      %22 = vector.broadcast %21 : vector<1x128xf32> to vector<8x128xf32>
      %23 = arith.addf %20, %22 : vector<8x128xf32>
      %cst_19 = arith.constant 0.000000e+00 : f32
      %24 = vector.broadcast %cst_19 : f32 to vector<8x128xf32>
      %25 = arith.maximumf %23, %24 : vector<8x128xf32>
      %26 = arith.truncf %25 : vector<8x128xf32> to vector<8x128xbf16>
      %c0_20 = arith.constant 0 : index
      %c0_21 = arith.constant 0 : index
      %27 = vector.load %arg7[%c0_20, %c0_21] : memref<128x128xbf16, #tpu.memory_space<vmem>>, vector<128x128xbf16>
      %cst_22 = arith.constant dense<0.000000e+00> : vector<8x128xf32>
      %28 = tpu.matmul %26, %27, %cst_22 {dimension_numbers = #tpu.dot_dimension_numbers<[1], [0], [0], [1], [0, 0, 1, 1], [], []>} : vector<8x128xbf16>, vector<128x128xbf16>, vector<8x128xf32> -> vector<8x128xf32>
      %c0_23 = arith.constant 0 : index
      %c0_24 = arith.constant 0 : index
      %29 = vector.load %arg8[%c0_23, %c0_24] : memref<1x128xf32, #tpu.memory_space<vmem>>, vector<1x128xf32>
      %30 = vector.broadcast %29 : vector<1x128xf32> to vector<8x128xf32>
      %31 = arith.addf %28, %30 : vector<8x128xf32>
      %c0_25 = arith.constant 0 : index
      %c0_26 = arith.constant 0 : index
      %32 = vector.load %arg9[%c0_25, %c0_26] : memref<8x128xf32, #tpu.memory_space<vmem>>, vector<8x128xf32>
      tpu.vector_store %arg9[%c0_25, %c0_26], %31 {strides = array<i32>} : memref<8x128xf32, #tpu.memory_space<vmem>>, vector<8x128xf32>,
    } else {
    }
    return
  }
  func.func @transform_0(%arg0: i32, %arg1: i32) -> (i32, i32) {
    %c0_i32 = arith.constant 0 : i32
    return %arg0, %arg1 : i32, i32
  }
  func.func @transform_1(%arg0: i32, %arg1: i32) -> (i32, i32) {
    %c0_i32 = arith.constant 0 : i32
    %c0_i32_0 = arith.constant 0 : i32
    return %arg1, %c0_i32 : i32, i32
  }
  func.func @transform_2(%arg0: i32, %arg1: i32) -> (i32, i32) {
    %c0_i32 = arith.constant 0 : i32
    %c0_i32_0 = arith.constant 0 : i32
    %c0_i32_1 = arith.constant 0 : i32
    return %c0_i32, %c0_i32_0 : i32, i32
  }
  func.func @transform_3(%arg0: i32, %arg1: i32) -> (i32, i32) {
    %c0_i32 = arith.constant 0 : i32
    %c0_i32_0 = arith.constant 0 : i32
    %c0_i32_1 = arith.constant 0 : i32
    return %c0_i32, %c0_i32_0 : i32, i32
  }
  func.func @transform_4(%arg0: i32, %arg1: i32) -> (i32, i32) {
    %c0_i32 = arith.constant 0 : i32
    %c0_i32_0 = arith.constant 0 : i32
    %c0_i32_1 = arith.constant 0 : i32
    return %c0_i32, %c0_i32_0 : i32, i32
  }
  func.func @transform_5(%arg0: i32, %arg1: i32) -> (i32, i32) {
    %c0_i32 = arith.constant 0 : i32
    %c0_i32_0 = arith.constant 0 : i32
    %c0_i32_1 = arith.constant 0 : i32
    return %c0_i32, %c0_i32_0 : i32, i32
  }
  func.func @transform_6(%arg0: i32, %arg1: i32) -> (i32, i32) {
    %c0_i32 = arith.constant 0 : i32
    %c0_i32_0 = arith.constant 0 : i32
    %c0_i32_1 = arith.constant 0 : i32
    return %c0_i32, %c0_i32_0 : i32, i32
  }
  func.func @transform_7(%arg0: i32, %arg1: i32) -> (i32, i32) {
    %c0_i32 = arith.constant 0 : i32
    %c0_i32_0 = arith.constant 0 : i32
    return %arg0, %c0_i32 : i32, i32
  }
}

</mosaic_0001>

<llo_original>
// kernel: faster_rcnn_forward.2
$region0: #{faster_rcnn_forward.2}
  #allocation0 [shape = 'u32[]', space=smem, size = 0x4, offset = 0x4, fixed_abs, tag = 'smem constant byte address 0x4 - core index']
  #allocation1 [shape = 'u32[144,128]{1,0:T(1,128)}', space=vmem, size = 0x12000, scoped, tag = 'internal scratch']
  %s0 = inlined_call_operand.vmem [shape: f32[2,1088,3], index: 0, kind: input, shape index: {}]
  %s1 = inlined_call_operand.vmem [shape: bf16[9,3,128], index: 1, kind: input, shape index: {}]
  %s2 = inlined_call_operand.vmem [shape: f32[1,128], index: 2, kind: input, shape index: {}]
  %s3 = inlined_call_operand.vmem [shape: bf16[2,1024,128], index: 3, kind: output, shape index: {}]
  %s4 = sld [smem:[#allocation0]]
  $region45: #{faster_rcnn_forward.2} parent=0
    _
  %s6 = ssub.s32 1, %s4
  %s7 = scalar_select 0, %s6, %s4
  loop: start=0, step=1, limit=10
  $region2: #{faster_rcnn_forward.2} parent=0 // loop_pre_header
    _
  $region3: #{faster_rcnn_forward.2} parent=0 // loop_header
    %s9 = sphi 0, %s13
    %p10 = scmp.ge.s32.totalorder %s9, 10
    %s16 = sphi 0, %s28
    %s17 = sphi 0, %s24
    %s18 = sphi 0, %s16
    %s19 = sphi 0, %s17
    %s20 = sphi 0, %s18
    %s21 = sphi 0, %s19
    %s31 = sphi 0, %s33
    %s34 = sphi 0, %s31
    %s35 = sphi 0, %s34
    %s51 = sphi 0, %s35
    %s55 = sphi 0, %s55
    %s57 = sphi 0, %s55
    %s58 = sphi 0, %s57
    %s72 = sphi 0, %s58
    %s76 = sphi 0, %s76
    %s78 = sphi 0, %s76
    %s79 = sphi 0, %s78
    %s93 = sphi 0, %s79
    %s101 = sphi 0, %s103
    %s104 = sphi 0, %s101
    %s105 = sphi 0, %s104
    %s121 = sphi 0, %s105
  $region4: #{faster_rcnn_forward.2} parent=0 // loop_header_branch
    %12 = sbr.rel (%p10) target = $region8
  $region5: #{faster_rcnn_forward.2} parent=0 // loop_body
    %s14 = ssub.s32 %s9, 1
    %s15 = ssub.s32 %s9, 2
    %s22 = sadd.s32 1, %s17
    %p23 = scmp.ge.s32.totalorder %s22, 4
    %s24 = scalar_select %p23, 0, %s22
    %s25 = sadd.s32 1, %s16
    %s26 = scalar_select %p23, %s25, %s16
    %p27 = scmp.ge.s32.totalorder %s26, 2
    %s28 = scalar_select %p27, 0, %s26
    %s29 = ssub.s32 %s16, %s28
    %p30 = scmp.eq.s32.totalorder %s29, 0
    %s32 = sadd.s32 %s31, 1
    %s33 = scalar_select %p30, %s31, %s32
    %p36 = pneg %p30
    %p37 = scmp.eq.s32.totalorder %s9, 7
    %p38 = por %p36, %p37
    %p39 = scmp.ne.s32.totalorder %s31, %s34
    %p40 = scmp.eq.s32.totalorder %s9, 0
    %p41 = por %p39, %p40
    %p42 = scmp.ne.s32.totalorder %s31, %s34
    %p43 = scmp.eq.s32.totalorder %s14, 7
    %p44 = por %p42, %p43
    %p45 = scmp.ne.s32.totalorder %s34, %s35
    %p46 = scmp.eq.s32.totalorder %s14, 0
    %p47 = por %p45, %p46
    %p48 = scmp.ne.s32.totalorder %s34, %s35
    %p49 = scmp.eq.s32.totalorder %s15, 7
    %p50 = por %p48, %p49
    %p52 = scmp.ne.s32.totalorder %s35, %s51
    %p53 = scmp.eq.s32.totalorder %s15, 0
    %p54 = por %p52, %p53
    %s56 = sadd.s32 %s55, 1
    %p59 = scmp.eq.s32.totalorder %s9, 7
    %p60 = scmp.ne.s32.totalorder %s55, %s57
    %p61 = scmp.eq.s32.totalorder %s9, 0
    %p62 = por %p60, %p61
    %p63 = scmp.ne.s32.totalorder %s55, %s57
    %p64 = scmp.eq.s32.totalorder %s14, 7
    %p65 = por %p63, %p64
    %p66 = scmp.ne.s32.totalorder %s57, %s58
    %p67 = scmp.eq.s32.totalorder %s14, 0
    %p68 = por %p66, %p67
    %p69 = scmp.ne.s32.totalorder %s57, %s58
    %p70 = scmp.eq.s32.totalorder %s15, 7
    %p71 = por %p69, %p70
    %p73 = scmp.ne.s32.totalorder %s58, %s72
    %p74 = scmp.eq.s32.totalorder %s15, 0
    %p75 = por %p73, %p74
    %s77 = sadd.s32 %s76, 1
    %p80 = scmp.eq.s32.totalorder %s9, 7
    %p81 = scmp.ne.s32.totalorder %s76, %s78
    %p82 = scmp.eq.s32.totalorder %s9, 0
    %p83 = por %p81, %p82
    %p84 = scmp.ne.s32.totalorder %s76, %s78
    %p85 = scmp.eq.s32.totalorder %s14, 7
    %p86 = por %p84, %p85
    %p87 = scmp.ne.s32.totalorder %s78, %s79
    %p88 = scmp.eq.s32.totalorder %s14, 0
    %p89 = por %p87, %p88
    %p90 = scmp.ne.s32.totalorder %s78, %s79
    %p91 = scmp.eq.s32.totalorder %s15, 7
    %p92 = por %p90, %p91
    %p94 = scmp.ne.s32.totalorder %s79, %s93
    %p95 = scmp.eq.s32.totalorder %s15, 0
    %p96 = por %p94, %p95
    %s97 = ssub.s32 %s16, %s28
    %s98 = ssub.s32 %s17, %s24
    %s99 = sor.u32 %s97, %s98
    %p100 = scmp.eq.s32.totalorder %s99, 0
    %s102 = sadd.s32 %s101, 1
    %s103 = scalar_select %p100, %s101, %s102
    %p106 = pneg %p100
    %p107 = scmp.eq.s32.totalorder %s9, 7
    %p108 = por %p106, %p107
    %p109 = scmp.ne.s32.totalorder %s101, %s104
    %p110 = scmp.eq.s32.totalorder %s9, 0
    %p111 = por %p109, %p110
    %p112 = scmp.ne.s32.totalorder %s101, %s104
    %p113 = scmp.eq.s32.totalorder %s14, 7
    %p114 = por %p112, %p113
    %p115 = scmp.ne.s32.totalorder %s104, %s105
    %p116 = scmp.eq.s32.totalorder %s14, 0
    %p117 = por %p115, %p116
    %p118 = scmp.ne.s32.totalorder %s104, %s105
    %p119 = scmp.eq.s32.totalorder %s15, 7
    %p120 = por %p118, %p119
    %p122 = scmp.ne.s32.totalorder %s105, %s121
    %p123 = scmp.eq.s32.totalorder %s15, 0
    %p124 = por %p122, %p123
    %p125 = scmp.le.s32.totalorder 1, %s9
    %p126 = scmp.lt.s32.totalorder %s9, 9
    %p127 = pnand %p125, %p126
    %p128 = pneg %p127
    // Predicated region
    $region9: #{faster_rcnn_forward.2} parent=5 // pred_check
      _
    $region10: #{faster_rcnn_forward.2} parent=5 // pred_check_branch
      %130 = sbr.rel (%p127) target = $region12
    $region11: #{faster_rcnn_forward.2} parent=5 // pred_region
      %s131 = ssub.s32 %s9, 1
      // Predicated region
      $region13: #{faster_rcnn_forward.2} parent=11 // pred_check
        %p132 = pneg %p68
      $region14: #{faster_rcnn_forward.2} parent=11 // pred_check_branch
        %134 = sbr.rel (%p132) target = $region16
      $region15: #{faster_rcnn_forward.2} parent=11 // pred_region
        _
      $region16: #{faster_rcnn_forward.2} parent=11 // pred_fallthru
        _
      // Predicated region
      $region17: #{faster_rcnn_forward.2} parent=11 // pred_check
        %p135 = pneg %p89
      $region18: #{faster_rcnn_forward.2} parent=11 // pred_check_branch
        %137 = sbr.rel (%p135) target = $region20
      $region19: #{faster_rcnn_forward.2} parent=11 // pred_region
        _
      $region20: #{faster_rcnn_forward.2} parent=11 // pred_fallthru
        _
    $region12: #{faster_rcnn_forward.2} parent=5 // pred_fallthru
      _
    %p138 = scmp.lt.s32.totalorder %s9, 8
    // Predicated region
    $region21: #{faster_rcnn_forward.2} parent=5 // pred_check
      %p139 = pneg %p138
    $region22: #{faster_rcnn_forward.2} parent=5 // pred_check_branch
      %141 = sbr.rel (%p139) target = $region24
    $region23: #{faster_rcnn_forward.2} parent=5 // pred_region
      // Predicated region
      $region25: #{faster_rcnn_forward.2} parent=23 // pred_check
        %p142 = pneg %p41
      $region26: #{faster_rcnn_forward.2} parent=23 // pred_check_branch
        %144 = sbr.rel (%p142) target = $region28
      $region27: #{faster_rcnn_forward.2} parent=23 // pred_region
        %p145 = scmp.lt.s32.totalorder %s16, 1
        %s146 = scalar_select %p145, %s16, 1
        %s147 = smul.addr %s146, 136
        %s148 = smul.addr %s147, 8
        %s149 = scalar_lea.vmem %s0, %s148
      $region28: #{faster_rcnn_forward.2} parent=23 // pred_fallthru
        _
    $region24: #{faster_rcnn_forward.2} parent=5 // pred_fallthru
      _
    %p150 = scmp.le.s32.totalorder 1, %s9
    %p151 = scmp.lt.s32.totalorder %s9, 9
    %p152 = pnand %p150, %p151
    %p153 = pneg %p152
    // Predicated region
    $region29: #{faster_rcnn_forward.2} parent=5 // pred_check
      _
    $region30: #{faster_rcnn_forward.2} parent=5 // pred_check_branch
      %155 = sbr.rel (%p152) target = $region32
    $region31: #{faster_rcnn_forward.2} parent=5 // pred_region
      %s156 = ssub.s32 %s9, 1
      %p157 = scmp.lt.s32.totalorder %s18, 1
      %s158 = scalar_select %p157, %s18, 1
      %s159 = smul.addr %s158, 136
      %s160 = smul.addr %s159, 8
      %s161 = scalar_lea.vmem %s0, %s160
      %p162 = pneg %p47
      %p163 = pneg %p44
      %p164 = pneg %p68
      %p165 = pneg %p65
      %p166 = pneg %p89
      %p167 = pneg %p86
      %p168 = pneg %p117
      %p169 = pneg %p114
      %s170 = smul.u32 32, %s19
      %p171 = scmp.lt.s32.totalorder %s18, 1
      %s172 = scalar_select %p171, %s18, 1
      %p173 = scmp.lt.s32.totalorder %s170, 127
      %s174 = scalar_select %p173, %s170, 127
      %s175 = smul.addr %s172, 128
      %s176 = sadd.s32 %s174, %s175
      %s177 = smul.addr %s176, 4
      %s178 = scalar_lea.vmem %s3, %s177
      %p179 = scmp.lt.s32.totalorder %s18, 1
      %s180 = scalar_select %p179, %s18, 1
      %s181 = smul.addr %s180, 136
      %s182 = smul.addr %s181, 8
      %s183 = scalar_lea.vmem %s0, %s182
      %s184 = smul.u32 32, %s19
      %p185 = scmp.lt.s32.totalorder %s18, 1
      %s186 = scalar_select %p185, %s18, 1
      %p187 = scmp.lt.s32.totalorder %s184, 127
      %s188 = scalar_select %p187, %s184, 127
      %s189 = smul.addr %s186, 128
      %s190 = sadd.s32 %s188, %s189
      %s191 = smul.addr %s190, 4
      %s192 = scalar_lea.vmem %s3, %s191
      %s193 = smul.u32 32, %s19
      %s195 = smul.u32 %s19, 256
      %s196 = scalar_lea.vmem %s183, %s195
      %v197 = vld [vmem:[%s196] sm:$0xff]
      %v198 = vld [vmem:[%s196 + $0x8] sm:$0xff]
      %v199 = vld [vmem:[%s196 + $0x10] sm:$0xff]
      %v200 = vld [vmem:[%s196 + $0x18] sm:$0xff]
      %v201 = vld [vmem:[%s196 + $0x20] sm:$0xff]
      %v202 = vld [vmem:[%s196 + $0x28] sm:$0xff]
      %v203 = vld [vmem:[%s196 + $0x30] sm:$0xff]
      %v204 = vld [vmem:[%s196 + $0x38] sm:$0xff]
      %v205 = vld [vmem:[%s196 + $0x40] sm:$0xff]
      %v206 = vld [vmem:[%s196 + $0x48] sm:$0xff]
      %v207 = vld [vmem:[%s196 + $0x50] sm:$0xff]
      %v208 = vld [vmem:[%s196 + $0x58] sm:$0xff]
      %v209 = vld [vmem:[%s196 + $0x60] sm:$0xff]
      %v210 = vld [vmem:[%s196 + $0x68] sm:$0xff]
      %v211 = vld [vmem:[%s196 + $0x70] sm:$0xff]
      %v212 = vld [vmem:[%s196 + $0x78] sm:$0xff]
      %v213 = vld [vmem:[%s196 + $0x80] sm:$0xff]
      %v214 = vld [vmem:[%s196 + $0x88] sm:$0xff]
      %v215 = vld [vmem:[%s196 + $0x90] sm:$0xff]
      %v216 = vld [vmem:[%s196 + $0x98] sm:$0xff]
      %v217 = vld [vmem:[%s196 + $0xa0] sm:$0xff]
      %v218 = vld [vmem:[%s196 + $0xa8] sm:$0xff]
      %v219 = vld [vmem:[%s196 + $0xb0] sm:$0xff]
      %v220 = vld [vmem:[%s196 + $0xb8] sm:$0xff]
      %v221 = vld [vmem:[%s196 + $0xc0] sm:$0xff]
      %v222 = vld [vmem:[%s196 + $0xc8] sm:$0xff]
      %v223 = vld [vmem:[%s196 + $0xd0] sm:$0xff]
      %v224 = vld [vmem:[%s196 + $0xd8] sm:$0xff]
      %v225 = vld [vmem:[%s196 + $0xe0] sm:$0xff]
      %v226 = vld [vmem:[%s196 + $0xe8] sm:$0xff]
      %v227 = vld [vmem:[%s196 + $0xf0] sm:$0xff]
      %v228 = vld [vmem:[%s196 + $0xf8] sm:$0xff]
      %v229 = vpack.c.bf16 %v198, %v197
      %v230 = vpack.c.bf16 %v200, %v199
      %v231 = vpack.c.bf16 %v202, %v201
      %v232 = vpack.c.bf16 %v204, %v203
      %v233 = vpack.c.bf16 %v206, %v205
      %v234 = vpack.c.bf16 %v208, %v207
      %v235 = vpack.c.bf16 %v210, %v209
      %v236 = vpack.c.bf16 %v212, %v211
      %v237 = vpack.c.bf16 %v214, %v213
      %v238 = vpack.c.bf16 %v216, %v215
      %v239 = vpack.c.bf16 %v218, %v217
      %v240 = vpack.c.bf16 %v220, %v219
      %v241 = vpack.c.bf16 %v222, %v221
      %v242 = vpack.c.bf16 %v224, %v223
      %v243 = vpack.c.bf16 %v226, %v225
      %v244 = vpack.c.bf16 %v228, %v227
      %v245 = vld [vmem:[%s1] sm:$0x3]
      %s246 = sadd.s32 %s195, 1
      %s247 = scalar_lea.vmem %s183, %s246
      %v248 = vld [vmem:[%s247] sm:$0xff]
      %v249 = vld [vmem:[%s247 + $0x8] sm:$0xff]
      %v250 = vld [vmem:[%s247 + $0x10] sm:$0xff]
      %v251 = vld [vmem:[%s247 + $0x18] sm:$0xff]
      %v252 = vld [vmem:[%s247 + $0x20] sm:$0xff]
      %v253 = vld [vmem:[%s247 + $0x28] sm:$0xff]
      %v254 = vld [vmem:[%s247 + $0x30] sm:$0xff]
      %v255 = vld [vmem:[%s247 + $0x38] sm:$0xff]
      %v256 = vld [vmem:[%s247 + $0x40] sm:$0xff]
      %v257 = vld [vmem:[%s247 + $0x48] sm:$0xff]
      %v258 = vld [vmem:[%s247 + $0x50] sm:$0xff]
      %v259 = vld [vmem:[%s247 + $0x58] sm:$0xff]
      %v260 = vld [vmem:[%s247 + $0x60] sm:$0xff]
      %v261 = vld [vmem:[%s247 + $0x68] sm:$0xff]
      %v262 = vld [vmem:[%s247 + $0x70] sm:$0xff]
      %v263 = vld [vmem:[%s247 + $0x78] sm:$0xff]
      %v264 = vld [vmem:[%s247 + $0x80] sm:$0xff]
      %v265 = vld [vmem:[%s247 + $0x88] sm:$0xff]
      %v266 = vld [vmem:[%s247 + $0x90] sm:$0xff]
      %v267 = vld [vmem:[%s247 + $0x98] sm:$0xff]
      %v268 = vld [vmem:[%s247 + $0xa0] sm:$0xff]
      %v269 = vld [vmem:[%s247 + $0xa8] sm:$0xff]
      %v270 = vld [vmem:[%s247 + $0xb0] sm:$0xff]
      %v271 = vld [vmem:[%s247 + $0xb8] sm:$0xff]
      %v272 = vld [vmem:[%s247 + $0xc0] sm:$0xff]
      %v273 = vld [vmem:[%s247 + $0xc8] sm:$0xff]
      %v274 = vld [vmem:[%s247 + $0xd0] sm:$0xff]
      %v275 = vld [vmem:[%s247 + $0xd8] sm:$0xff]
      %v276 = vld [vmem:[%s247 + $0xe0] sm:$0xff]
      %v277 = vld [vmem:[%s247 + $0xe8] sm:$0xff]
      %v278 = vld [vmem:[%s247 + $0xf0] sm:$0xff]
      %v279 = vld [vmem:[%s247 + $0xf8] sm:$0xff]
      %v280 = vpack.c.bf16 %v249, %v248
      %v281 = vpack.c.bf16 %v251, %v250
      %v282 = vpack.c.bf16 %v253, %v252
      %v283 = vpack.c.bf16 %v255, %v254
      %v284 = vpack.c.bf16 %v257, %v256
      %v285 = vpack.c.bf16 %v259, %v258
      %v286 = vpack.c.bf16 %v261, %v260
      %v287 = vpack.c.bf16 %v263, %v262
      %v288 = vpack.c.bf16 %v265, %v264
      %v289 = vpack.c.bf16 %v267, %v266
      %v290 = vpack.c.bf16 %v269, %v268
      %v291 = vpack.c.bf16 %v271, %v270
      %v292 = vpack.c.bf16 %v273, %v272
      %v293 = vpack.c.bf16 %v275, %v274
      %v294 = vpack.c.bf16 %v277, %v276
      %v295 = vpack.c.bf16 %v279, %v278
      %s296 = scalar_lea.vmem %s1, 2
      %v297 = vld [vmem:[%s296] sm:$0x3]
      %vm298 = vcmask 23552
      %v300 = vsel %vm298, %v280, 0
      %v303 = vsel %vm298, %v281, 0
      %v306 = vsel %vm298, %v282, 0
      %v309 = vsel %vm298, %v283, 0
      %v312 = vsel %vm298, %v284, 0
      %v315 = vsel %vm298, %v285, 0
      %v318 = vsel %vm298, %v286, 0
      %v321 = vsel %vm298, %v287, 0
      %v324 = vsel %vm298, %v288, 0
      %v327 = vsel %vm298, %v289, 0
      %v330 = vsel %vm298, %v290, 0
      %v333 = vsel %vm298, %v291, 0
      %v336 = vsel %vm298, %v292, 0
      %v339 = vsel %vm298, %v293, 0
      %v342 = vsel %vm298, %v294, 0
      %v345 = vsel %vm298, %v295, 0
      %vm347 = vcmask 1040384
      %vm348 = vcmask 1041408
      %v349 = vsel %vm347, 4294967295, 65535
      %v350 = vsel %vm348, %v349, 0
      %v352 = vand.u32 %v297, %v350
      %354 = vmatprep.subr.bf16.mxu0 0
      %355 = vmatpush1.bf16.msra.mxu0 %v352
      %356 = vmatprep.subr.bf16.mxu0 0
      %357 = vmatpush1.bf16.msra.mxu0 0
      %358 = vmatprep.subr.bf16.mxu0 0
      %359 = vmatpush1.bf16.msra.mxu0 0
      %360 = vmatprep.subr.bf16.mxu0 0
      %361 = vmatpush1.bf16.msra.mxu0 0
      %362 = vmatprep.subr.bf16.mxu0 0
      %363 = vmatpush1.bf16.msra.mxu0 0
      %364 = vmatprep.subr.bf16.mxu0 0
      %365 = vmatpush1.bf16.msra.mxu0 0
      %366 = vmatprep.subr.bf16.mxu0 0
      %367 = vmatpush1.bf16.msra.mxu0 0
      %368 = vmatprep.subr.bf16.mxu0 0
      %369 = vmatpush1.bf16.msra.mxu0 0
      %370 = vmatprep.subr.bf16.mxu0 0
      %371 = vmatpush1.bf16.msra.mxu0 0
      %372 = vmatprep.subr.bf16.mxu0 0
      %373 = vmatpush1.bf16.msra.mxu0 0
      %374 = vmatprep.subr.bf16.mxu0 0
      %375 = vmatpush1.bf16.msra.mxu0 0
      %376 = vmatprep.subr.bf16.mxu0 0
      %377 = vmatpush1.bf16.msra.mxu0 0
      %378 = vmatprep.subr.bf16.mxu0 0
      %379 = vmatpush1.bf16.msra.mxu0 0
      %380 = vmatprep.subr.bf16.mxu0 0
      %381 = vmatpush1.bf16.msra.mxu0 0
      %382 = vmatprep.subr.bf16.mxu0 0
      %383 = vmatpush1.bf16.msra.mxu0 0
      %384 = vmatprep.subr.bf16.mxu0 0
      %385 = vmatpush1.bf16.msra.mxu0 0
      %386 = vmatprep.mubr.bf16.mxu0 0
      %387 = vmatmul.mubr.bf16.gmra.mrb[0].mxu0 %v300
      %v388 = vpop.f32.mrb[0].mxu0
      %v389 = vadd.f32 0.0, %v388
      %v390 = vpop.f32.mrb[0].mxu0
      %v391 = vpop.f32.mrb[0].mxu0
      %v392 = vadd.f32 0.0, %v391
      %v393 = vpop.f32.mrb[0].mxu0
      %394 = vmatprep.mubr.bf16.mxu0 0
      %395 = vmatmul.mubr.bf16.gmra.mrb[0].mxu0 %v303
      %v396 = vpop.f32.mrb[0].mxu0
      %v397 = vadd.f32 0.0, %v396
      %v398 = vpop.f32.mrb[0].mxu0
      %v399 = vpop.f32.mrb[0].mxu0
      %v400 = vadd.f32 0.0, %v399
      %v401 = vpop.f32.mrb[0].mxu0
      %402 = vmatprep.mubr.bf16.mxu0 0
      %403 = vmatmul.mubr.bf16.gmra.mrb[0].mxu0 %v306
      %v404 = vpop.f32.mrb[0].mxu0
      %v405 = vadd.f32 0.0, %v404
      %v406 = vpop.f32.mrb[0].mxu0
      %v407 = vpop.f32.mrb[0].mxu0
      %v408 = vadd.f32 0.0, %v407
      %v409 = vpop.f32.mrb[0].mxu0
      %410 = vmatprep.mubr.bf16.mxu0 0
      %411 = vmatmul.mubr.bf16.gmra.mrb[0].mxu0 %v309
      %v412 = vpop.f32.mrb[0].mxu0
      %v413 = vadd.f32 0.0, %v412
      %v414 = vpop.f32.mrb[0].mxu0
      %v415 = vpop.f32.mrb[0].mxu0
      %v416 = vadd.f32 0.0, %v415
      %v417 = vpop.f32.mrb[0].mxu0
      %418 = vmatprep.mubr.bf16.mxu0 0
      %419 = vmatmul.mubr.bf16.gmra.mrb[0].mxu0 %v312
      %v420 = vpop.f32.mrb[0].mxu0
      %v421 = vadd.f32 0.0, %v420
      %v422 = vpop.f32.mrb[0].mxu0
      %v423 = vpop.f32.mrb[0].mxu0
      %v424 = vadd.f32 0.0, %v423
      %v425 = vpop.f32.mrb[0].mxu0
      %426 = vmatprep.mubr.bf16.mxu0 0
      %427 = vmatmul.mubr.bf16.gmra.mrb[0].mxu0 %v315
      %v428 = vpop.f32.mrb[0].mxu0
      %v429 = vadd.f32 0.0, %v428
      %v430 = vpop.f32.mrb[0].mxu0
      %v431 = vpop.f32.mrb[0].mxu0
      %v432 = vadd.f32 0.0, %v431
      %v433 = vpop.f32.mrb[0].mxu0
      %434 = vmatprep.mubr.bf16.mxu0 0
      %435 = vmatmul.mubr.bf16.gmra.mrb[0].mxu0 %v318
      %v436 = vpop.f32.mrb[0].mxu0
      %v437 = vadd.f32 0.0, %v436
      %v438 = vpop.f32.mrb[0].mxu0
      %v439 = vpop.f32.mrb[0].mxu0
      %v440 = vadd.f32 0.0, %v439
      %v441 = vpop.f32.mrb[0].mxu0
      %442 = vmatprep.mubr.bf16.mxu0 0
      %443 = vmatmul.mubr.bf16.gmra.mrb[0].mxu0 %v321
      %v444 = vpop.f32.mrb[0].mxu0
      %v445 = vadd.f32 0.0, %v444
      %v446 = vpop.f32.mrb[0].mxu0
      %v447 = vpop.f32.mrb[0].mxu0
      %v448 = vadd.f32 0.0, %v447
      %v449 = vpop.f32.mrb[0].mxu0
      %450 = vmatprep.mubr.bf16.mxu0 0
      %451 = vmatmul.mubr.bf16.gmra.mrb[0].mxu0 %v324
      %v452 = vpop.f32.mrb[0].mxu0
      %v453 = vadd.f32 0.0, %v452
      %v454 = vpop.f32.mrb[0].mxu0
      %v455 = vpop.f32.mrb[0].mxu0
      %v456 = vadd.f32 0.0, %v455
      %v457 = vpop.f32.mrb[0].mxu0
      %458 = vmatprep.mubr.bf16.mxu0 0
      %459 = vmatmul.mubr.bf16.gmra.mrb[0].mxu0 %v327
      %v460 = vpop.f32.mrb[0].mxu0
      %v461 = vadd.f32 0.0, %v460
      %v462 = vpop.f32.mrb[0].mxu0
      %v463 = vpop.f32.mrb[0].mxu0
      %v464 = vadd.f32 0.0, %v463
      %v465 = vpop.f32.mrb[0].mxu0
      %466 = vmatprep.mubr.bf16.mxu0 0
      %467 = vmatmul.mubr.bf16.gmra.mrb[0].mxu0 %v330
      %v468 = vpop.f32.mrb[0].mxu0
      %v469 = vadd.f32 0.0, %v468
      %v470 = vpop.f32.mrb[0].mxu0
      %v471 = vpop.f32.mrb[0].mxu0
      %v472 = vadd.f32 0.0, %v471
      %v473 = vpop.f32.mrb[0].mxu0
      %474 = vmatprep.mubr.bf16.mxu0 0
      %475 = vmatmul.mubr.bf16.gmra.mrb[0].mxu0 %v333
      %v476 = vpop.f32.mrb[0].mxu0
      %v477 = vadd.f32 0.0, %v476
      %v478 = vpop.f32.mrb[0].mxu0
      %v479 = vpop.f32.mrb[0].mxu0
      %v480 = vadd.f32 0.0, %v479
      %v481 = vpop.f32.mrb[0].mxu0
      %482 = vmatprep.mubr.bf16.mxu0 0
      %483 = vmatmul.mubr.bf16.gmra.mrb[0].mxu0 %v336
      %v484 = vpop.f32.mrb[0].mxu0
      %v485 = vadd.f32 0.0, %v484
      %v486 = vpop.f32.mrb[0].mxu0
      %v487 = vpop.f32.mrb[0].mxu0
      %v488 = vadd.f32 0.0, %v487
      %v489 = vpop.f32.mrb[0].mxu0
      %490 = vmatprep.mubr.bf16.mxu0 0
      %491 = vmatmul.mubr.bf16.gmra.mrb[0].mxu0 %v339
      %v492 = vpop.f32.mrb[0].mxu0
      %v493 = vadd.f32 0.0, %v492
      %v494 = vpop.f32.mrb[0].mxu0
      %v495 = vpop.f32.mrb[0].mxu0
      %v496 = vadd.f32 0.0, %v495
      %v497 = vpop.f32.mrb[0].mxu0
      %498 = vmatprep.mubr.bf16.mxu0 0
      %499 = vmatmul.mubr.bf16.gmra.mrb[0].mxu0 %v342
      %v500 = vpop.f32.mrb[0].mxu0
      %v501 = vadd.f32 0.0, %v500
      %v502 = vpop.f32.mrb[0].mxu0
      %v503 = vpop.f32.mrb[0].mxu0
      %v504 = vadd.f32 0.0, %v503
      %v505 = vpop.f32.mrb[0].mxu0
      %506 = vmatprep.mubr.bf16.mxu0 0
      %507 = vmatmul.mubr.bf16.gmra.mrb[0].mxu0 %v345
      %v508 = vpop.f32.mrb[0].mxu0
      %v509 = vadd.f32 0.0, %v508
      %v510 = vpop.f32.mrb[0].mxu0
      %v511 = vpop.f32.mrb[0].mxu0
      %v512 = vadd.f32 0.0, %v511
      %v513 = vpop.f32.mrb[0].mxu0
      %514 = vdwg.mxu0
      %v516 = vsel %vm298, %v229, 0
      %v519 = vsel %vm298, %v230, 0
      %v522 = vsel %vm298, %v231, 0
      %v525 = vsel %vm298, %v232, 0
      %v528 = vsel %vm298, %v233, 0
      %v531 = vsel %vm298, %v234, 0
      %v534 = vsel %vm298, %v235, 0
      %v537 = vsel %vm298, %v236, 0
      %v540 = vsel %vm298, %v237, 0
      %v543 = vsel %vm298, %v238, 0
      %v546 = vsel %vm298, %v239, 0
      %v549 = vsel %vm298, %v240, 0
      %v552 = vsel %vm298, %v241, 0
      %v555 = vsel %vm298, %v242, 0
      %v558 = vsel %vm298, %v243, 0
      %v561 = vsel %vm298, %v244, 0
      %v564 = vand.u32 %v245, %v350
      %566 = vmatprep.subr.bf16.mxu0 0
      %567 = vmatpush1.bf16.msra.mxu0 %v564
      %568 = vmatprep.subr.bf16.mxu0 0
      %569 = vmatpush1.bf16.msra.mxu0 0
      %570 = vmatprep.subr.bf16.mxu0 0
      %571 = vmatpush1.bf16.msra.mxu0 0
      %572 = vmatprep.subr.bf16.mxu0 0
      %573 = vmatpush1.bf16.msra.mxu0 0
      %574 = vmatprep.subr.bf16.mxu0 0
      %575 = vmatpush1.bf16.msra.mxu0 0
      %576 = vmatprep.subr.bf16.mxu0 0
      %577 = vmatpush1.bf16.msra.mxu0 0
      %578 = vmatprep.subr.bf16.mxu0 0
      %579 = vmatpush1.bf16.msra.mxu0 0
      %580 = vmatprep.subr.bf16.mxu0 0
      %581 = vmatpush1.bf16.msra.mxu0 0
      %582 = vmatprep.subr.bf16.mxu0 0
      %583 = vmatpush1.bf16.msra.mxu0 0
      %584 = vmatprep.subr.bf16.mxu0 0
      %585 = vmatpush1.bf16.msra.mxu0 0
      %586 = vmatprep.subr.bf16.mxu0 0
      %587 = vmatpush1.bf16.msra.mxu0 0
      %588 = vmatprep.subr.bf16.mxu0 0
      %589 = vmatpush1.bf16.msra.mxu0 0
      %590 = vmatprep.subr.bf16.mxu0 0
      %591 = vmatpush1.bf16.msra.mxu0 0
      %592 = vmatprep.subr.bf16.mxu0 0
      %593 = vmatpush1.bf16.msra.mxu0 0
      %594 = vmatprep.subr.bf16.mxu0 0
      %595 = vmatpush1.bf16.msra.mxu0 0
      %596 = vmatprep.subr.bf16.mxu0 0
      %597 = vmatpush1.bf16.msra.mxu0 0
      %598 = vmatprep.mubr.bf16.mxu0 0
      %599 = vmatmul.mubr.bf16.gmra.mrb[0].mxu0 %v516
      %v600 = vpop.f32.mrb[0].mxu0
      %v601 = vadd.f32 %v389, %v600
      %v602 = vpop.f32.mrb[0].mxu0
      %v603 = vpop.f32.mrb[0].mxu0
      %v604 = vadd.f32 %v392, %v603
      %v605 = vpop.f32.mrb[0].mxu0
      %606 = vmatprep.mubr.bf16.mxu0 0
      %607 = vmatmul.mubr.bf16.gmra.mrb[0].mxu0 %v519
      %v608 = vpop.f32.mrb[0].mxu0
      %v609 = vadd.f32 %v397, %v608
      %v610 = vpop.f32.mrb[0].mxu0
      %v611 = vpop.f32.mrb[0].mxu0
      %v612 = vadd.f32 %v400, %v611
      %v613 = vpop.f32.mrb[0].mxu0
      %614 = vmatprep.mubr.bf16.mxu0 0
      %615 = vmatmul.mubr.bf16.gmra.mrb[0].mxu0 %v522
      %v616 = vpop.f32.mrb[0].mxu0
      %v617 = vadd.f32 %v405, %v616
      %v618 = vpop.f32.mrb[0].mxu0
      %v619 = vpop.f32.mrb[0].mxu0
      %v620 = vadd.f32 %v408, %v619
      %v621 = vpop.f32.mrb[0].mxu0
      %622 = vmatprep.mubr.bf16.mxu0 0
      %623 = vmatmul.mubr.bf16.gmra.mrb[0].mxu0 %v525
      %v624 = vpop.f32.mrb[0].mxu0
      %v625 = vadd.f32 %v413, %v624
      %v626 = vpop.f32.mrb[0].mxu0
      %v627 = vpop.f32.mrb[0].mxu0
      %v628 = vadd.f32 %v416, %v627
      %v629 = vpop.f32.mrb[0].mxu0
      %630 = vmatprep.mubr.bf16.mxu0 0
      %631 = vmatmul.mubr.bf16.gmra.mrb[0].mxu0 %v528
      %v632 = vpop.f32.mrb[0].mxu0
      %v633 = vadd.f32 %v421, %v632
      %v634 = vpop.f32.mrb[0].mxu0
      %v635 = vpop.f32.mrb[0].mxu0
      %v636 = vadd.f32 %v424, %v635
      %v637 = vpop.f32.mrb[0].mxu0
      %638 = vmatprep.mubr.bf16.mxu0 0
      %639 = vmatmul.mubr.bf16.gmra.mrb[0].mxu0 %v531
      %v640 = vpop.f32.mrb[0].mxu0
      %v641 = vadd.f32 %v429, %v640
      %v642 = vpop.f32.mrb[0].mxu0
      %v643 = vpop.f32.mrb[0].mxu0
      %v644 = vadd.f32 %v432, %v643
      %v645 = vpop.f32.mrb[0].mxu0
      %646 = vmatprep.mubr.bf16.mxu0 0
      %647 = vmatmul.mubr.bf16.gmra.mrb[0].mxu0 %v534
      %v648 = vpop.f32.mrb[0].mxu0
      %v649 = vadd.f32 %v437, %v648
      %v650 = vpop.f32.mrb[0].mxu0
      %v651 = vpop.f32.mrb[0].mxu0
      %v652 = vadd.f32 %v440, %v651
      %v653 = vpop.f32.mrb[0].mxu0
      %654 = vmatprep.mubr.bf16.mxu0 0
      %655 = vmatmul.mubr.bf16.gmra.mrb[0].mxu0 %v537
      %v656 = vpop.f32.mrb[0].mxu0
      %v657 = vadd.f32 %v445, %v656
      %v658 = vpop.f32.mrb[0].mxu0
      %v659 = vpop.f32.mrb[0].mxu0
      %v660 = vadd.f32 %v448, %v659
      %v661 = vpop.f32.mrb[0].mxu0
      %662 = vmatprep.mubr.bf16.mxu0 0
      %663 = vmatmul.mubr.bf16.gmra.mrb[0].mxu0 %v540
      %v664 = vpop.f32.mrb[0].mxu0
      %v665 = vadd.f32 %v453, %v664
      %v666 = vpop.f32.mrb[0].mxu0
      %v667 = vpop.f32.mrb[0].mxu0
      %v668 = vadd.f32 %v456, %v667
      %v669 = vpop.f32.mrb[0].mxu0
      %670 = vmatprep.mubr.bf16.mxu0 0
      %671 = vmatmul.mubr.bf16.gmra.mrb[0].mxu0 %v543
      %v672 = vpop.f32.mrb[0].mxu0
      %v673 = vadd.f32 %v461, %v672
      %v674 = vpop.f32.mrb[0].mxu0
      %v675 = vpop.f32.mrb[0].mxu0
      %v676 = vadd.f32 %v464, %v675
      %v677 = vpop.f32.mrb[0].mxu0
      %678 = vmatprep.mubr.bf16.mxu0 0
      %679 = vmatmul.mubr.bf16.gmra.mrb[0].mxu0 %v546
      %v680 = vpop.f32.mrb[0].mxu0
      %v681 = vadd.f32 %v469, %v680
      %v682 = vpop.f32.mrb[0].mxu0
      %v683 = vpop.f32.mrb[0].mxu0
      %v684 = vadd.f32 %v472, %v683
      %v685 = vpop.f32.mrb[0].mxu0
      %686 = vmatprep.mubr.bf16.mxu0 0
      %687 = vmatmul.mubr.bf16.gmra.mrb[0].mxu0 %v549
      %v688 = vpop.f32.mrb[0].mxu0
      %v689 = vadd.f32 %v477, %v688
      %v690 = vpop.f32.mrb[0].mxu0
      %v691 = vpop.f32.mrb[0].mxu0
      %v692 = vadd.f32 %v480, %v691
      %v693 = vpop.f32.mrb[0].mxu0
      %694 = vmatprep.mubr.bf16.mxu0 0
      %695 = vmatmul.mubr.bf16.gmra.mrb[0].mxu0 %v552
      %v696 = vpop.f32.mrb[0].mxu0
      %v697 = vadd.f32 %v485, %v696
      %v698 = vpop.f32.mrb[0].mxu0
      %v699 = vpop.f32.mrb[0].mxu0
      %v700 = vadd.f32 %v488, %v699
      %v701 = vpop.f32.mrb[0].mxu0
      %702 = vmatprep.mubr.bf16.mxu0 0
      %703 = vmatmul.mubr.bf16.gmra.mrb[0].mxu0 %v555
      %v704 = vpop.f32.mrb[0].mxu0
      %v705 = vadd.f32 %v493, %v704
      %v706 = vpop.f32.mrb[0].mxu0
      %v707 = vpop.f32.mrb[0].mxu0
      %v708 = vadd.f32 %v496, %v707
      %v709 = vpop.f32.mrb[0].mxu0
      %710 = vmatprep.mubr.bf16.mxu0 0
      %711 = vmatmul.mubr.bf16.gmra.mrb[0].mxu0 %v558
      %v712 = vpop.f32.mrb[0].mxu0
      %v713 = vadd.f32 %v501, %v712
      %v714 = vpop.f32.mrb[0].mxu0
      %v715 = vpop.f32.mrb[0].mxu0
      %v716 = vadd.f32 %v504, %v715
      %v717 = vpop.f32.mrb[0].mxu0
      %718 = vmatprep.mubr.bf16.mxu0 0
      %719 = vmatmul.mubr.bf16.gmra.mrb[0].mxu0 %v561
      %v720 = vpop.f32.mrb[0].mxu0
      %v721 = vadd.f32 %v509, %v720
      %v722 = vpop.f32.mrb[0].mxu0
      %v723 = vpop.f32.mrb[0].mxu0
      %v724 = vadd.f32 %v512, %v723
      %v725 = vpop.f32.mrb[0].mxu0
      %726 = vdwg.mxu0
      %s727 = sadd.s32 %s195, 2
      %s728 = scalar_lea.vmem %s183, %s727
      %v729 = vld [vmem:[%s728] sm:$0xff]
      %v730 = vld [vmem:[%s728 + $0x8] sm:$0xff]
      %v731 = vld [vmem:[%s728 + $0x10] sm:$0xff]
      %v732 = vld [vmem:[%s728 + $0x18] sm:$0xff]
      %v733 = vld [vmem:[%s728 + $0x20] sm:$0xff]
      %v734 = vld [vmem:[%s728 + $0x28] sm:$0xff]
      %v735 = vld [vmem:[%s728 + $0x30] sm:$0xff]
      %v736 = vld [vmem:[%s728 + $0x38] sm:$0xff]
      %v737 = vld [vmem:[%s728 + $0x40] sm:$0xff]
      %v738 = vld [vmem:[%s728 + $0x48] sm:$0xff]
      %v739 = vld [vmem:[%s728 + $0x50] sm:$0xff]
      %v740 = vld [vmem:[%s728 + $0x58] sm:$0xff]
      %v741 = vld [vmem:[%s728 + $0x60] sm:$0xff]
      %v742 = vld [vmem:[%s728 + $0x68] sm:$0xff]
      %v743 = vld [vmem:[%s728 + $0x70] sm:$0xff]
      %v744 = vld [vmem:[%s728 + $0x78] sm:$0xff]
      %v745 = vld [vmem:[%s728 + $0x80] sm:$0xff]
      %v746 = vld [vmem:[%s728 + $0x88] sm:$0xff]
      %v747 = vld [vmem:[%s728 + $0x90] sm:$0xff]
      %v748 = vld [vmem:[%s728 + $0x98] sm:$0xff]
      %v749 = vld [vmem:[%s728 + $0xa0] sm:$0xff]
      %v750 = vld [vmem:[%s728 + $0xa8] sm:$0xff]
      %v751 = vld [vmem:[%s728 + $0xb0] sm:$0xff]
      %v752 = vld [vmem:[%s728 + $0xb8] sm:$0xff]
      %v753 = vld [vmem:[%s728 + $0xc0] sm:$0xff]
      %v754 = vld [vmem:[%s728 + $0xc8] sm:$0xff]
      %v755 = vld [vmem:[%s728 + $0xd0] sm:$0xff]
      %v756 = vld [vmem:[%s728 + $0xd8] sm:$0xff]
      %v757 = vld [vmem:[%s728 + $0xe0] sm:$0xff]
      %v758 = vld [vmem:[%s728 + $0xe8] sm:$0xff]
      %v759 = vld [vmem:[%s728 + $0xf0] sm:$0xff]
      %v760 = vld [vmem:[%s728 + $0xf8] sm:$0xff]
      %v761 = vpack.c.bf16 %v730, %v729
      %v762 = vpack.c.bf16 %v732, %v731
      %v763 = vpack.c.bf16 %v734, %v733
      %v764 = vpack.c.bf16 %v736, %v735
      %v765 = vpack.c.bf16 %v738, %v737
      %v766 = vpack.c.bf16 %v740, %v739
      %v767 = vpack.c.bf16 %v742, %v741
      %v768 = vpack.c.bf16 %v744, %v743
      %v769 = vpack.c.bf16 %v746, %v745
      %v770 = vpack.c.bf16 %v748, %v747
      %v771 = vpack.c.bf16 %v750, %v749
      %v772 = vpack.c.bf16 %v752, %v751
      %v773 = vpack.c.bf16 %v754, %v753
      %v774 = vpack.c.bf16 %v756, %v755
      %v775 = vpack.c.bf16 %v758, %v757
      %v776 = vpack.c.bf16 %v760, %v759
      %s777 = scalar_lea.vmem %s1, 4
      %v778 = vld [vmem:[%s777] sm:$0x3]
      %v780 = vsel %vm298, %v761, 0
      %v783 = vsel %vm298, %v762, 0
      %v786 = vsel %vm298, %v763, 0
      %v789 = vsel %vm298, %v764, 0
      %v792 = vsel %vm298, %v765, 0
      %v795 = vsel %vm298, %v766, 0
      %v798 = vsel %vm298, %v767, 0
      %v801 = vsel %vm298, %v768, 0
      %v804 = vsel %vm298, %v769, 0
      %v807 = vsel %vm298, %v770, 0
      %v810 = vsel %vm298, %v771, 0
      %v813 = vsel %vm298, %v772, 0
      %v816 = vsel %vm298, %v773, 0
      %v819 = vsel %vm298, %v774, 0
      %v822 = vsel %vm298, %v775, 0
      %v825 = vsel %vm298, %v776, 0
      %v828 = vand.u32 %v778, %v350
      %830 = vmatprep.subr.bf16.mxu0 0
      %831 = vmatpush1.bf16.msra.mxu0 %v828
      %832 = vmatprep.subr.bf16.mxu0 0
      %833 = vmatpush1.bf16.msra.mxu0 0
      %834 = vmatprep.subr.bf16.mxu0 0
      %835 = vmatpush1.bf16.msra.mxu0 0
      %836 = vmatprep.subr.bf16.mxu0 0
      %837 = vmatpush1.bf16.msra.mxu0 0
      %838 = vmatprep.subr.bf16.mxu0 0
      %839 = vmatpush1.bf16.msra.mxu0 0
      %840 = vmatprep.subr.bf16.mxu0 0
      %841 = vmatpush1.bf16.msra.mxu0 0
      %842 = vmatprep.subr.bf16.mxu0 0
      %843 = vmatpush1.bf16.msra.mxu0 0
      %844 = vmatprep.subr.bf16.mxu0 0
      %845 = vmatpush1.bf16.msra.mxu0 0
      %846 = vmatprep.subr.bf16.mxu0 0
      %847 = vmatpush1.bf16.msra.mxu0 0
      %848 = vmatprep.subr.bf16.mxu0 0
      %849 = vmatpush1.bf16.msra.mxu0 0
      %850 = vmatprep.subr.bf16.mxu0 0
      %851 = vmatpush1.bf16.msra.mxu0 0
      %852 = vmatprep.subr.bf16.mxu0 0
      %853 = vmatpush1.bf16.msra.mxu0 0
      %854 = vmatprep.subr.bf16.mxu0 0
      %855 = vmatpush1.bf16.msra.mxu0 0
      %856 = vmatprep.subr.bf16.mxu0 0
      %857 = vmatpush1.bf16.msra.mxu0 0
      %858 = vmatprep.subr.bf16.mxu0 0
      %859 = vmatpush1.bf16.msra.mxu0 0
      %860 = vmatprep.subr.bf16.mxu0 0
      %861 = vmatpush1.bf16.msra.mxu0 0
      %862 = vmatprep.mubr.bf16.mxu0 0
      %863 = vmatmul.mubr.bf16.gmra.mrb[0].mxu0 %v780
      %v864 = vpop.f32.mrb[0].mxu0
      %v865 = vadd.f32 0.0, %v864
      %v866 = vpop.f32.mrb[0].mxu0
      %v867 = vpop.f32.mrb[0].mxu0
      %v868 = vadd.f32 0.0, %v867
      %v869 = vpop.f32.mrb[0].mxu0
      %870 = vmatprep.mubr.bf16.mxu0 0
      %871 = vmatmul.mubr.bf16.gmra.mrb[0].mxu0 %v783
      %v872 = vpop.f32.mrb[0].mxu0
      %v873 = vadd.f32 0.0, %v872
      %v874 = vpop.f32.mrb[0].mxu0
      %v875 = vpop.f32.mrb[0].mxu0
      %v876 = vadd.f32 0.0, %v875
      %v877 = vpop.f32.mrb[0].mxu0
      %878 = vmatprep.mubr.bf16.mxu0 0
      %879 = vmatmul.mubr.bf16.gmra.mrb[0].mxu0 %v786
      %v880 = vpop.f32.mrb[0].mxu0
      %v881 = vadd.f32 0.0, %v880
      %v882 = vpop.f32.mrb[0].mxu0
      %v883 = vpop.f32.mrb[0].mxu0
      %v884 = vadd.f32 0.0, %v883
      %v885 = vpop.f32.mrb[0].mxu0
      %886 = vmatprep.mubr.bf16.mxu0 0
      %887 = vmatmul.mubr.bf16.gmra.mrb[0].mxu0 %v789
      %v888 = vpop.f32.mrb[0].mxu0
      %v889 = vadd.f32 0.0, %v888
      %v890 = vpop.f32.mrb[0].mxu0
      %v891 = vpop.f32.mrb[0].mxu0
      %v892 = vadd.f32 0.0, %v891
      %v893 = vpop.f32.mrb[0].mxu0
      %894 = vmatprep.mubr.bf16.mxu0 0
      %895 = vmatmul.mubr.bf16.gmra.mrb[0].mxu0 %v792
      %v896 = vpop.f32.mrb[0].mxu0
      %v897 = vadd.f32 0.0, %v896
      %v898 = vpop.f32.mrb[0].mxu0
      %v899 = vpop.f32.mrb[0].mxu0
      %v900 = vadd.f32 0.0, %v899
      %v901 = vpop.f32.mrb[0].mxu0
      %902 = vmatprep.mubr.bf16.mxu0 0
      %903 = vmatmul.mubr.bf16.gmra.mrb[0].mxu0 %v795
      %v904 = vpop.f32.mrb[0].mxu0
      %v905 = vadd.f32 0.0, %v904
      %v906 = vpop.f32.mrb[0].mxu0
      %v907 = vpop.f32.mrb[0].mxu0
      %v908 = vadd.f32 0.0, %v907
      %v909 = vpop.f32.mrb[0].mxu0
      %910 = vmatprep.mubr.bf16.mxu0 0
      %911 = vmatmul.mubr.bf16.gmra.mrb[0].mxu0 %v798
      %v912 = vpop.f32.mrb[0].mxu0
      %v913 = vadd.f32 0.0, %v912
      %v914 = vpop.f32.mrb[0].mxu0
      %v915 = vpop.f32.mrb[0].mxu0
      %v916 = vadd.f32 0.0, %v915
      %v917 = vpop.f32.mrb[0].mxu0
      %918 = vmatprep.mubr.bf16.mxu0 0
      %919 = vmatmul.mubr.bf16.gmra.mrb[0].mxu0 %v801
      %v920 = vpop.f32.mrb[0].mxu0
      %v921 = vadd.f32 0.0, %v920
      %v922 = vpop.f32.mrb[0].mxu0
      %v923 = vpop.f32.mrb[0].mxu0
      %v924 = vadd.f32 0.0, %v923
      %v925 = vpop.f32.mrb[0].mxu0
      %926 = vmatprep.mubr.bf16.mxu0 0
      %927 = vmatmul.mubr.bf16.gmra.mrb[0].mxu0 %v804
      %v928 = vpop.f32.mrb[0].mxu0
      %v929 = vadd.f32 0.0, %v928
      %v930 = vpop.f32.mrb[0].mxu0
      %v931 = vpop.f32.mrb[0].mxu0
      %v932 = vadd.f32 0.0, %v931
      %v933 = vpop.f32.mrb[0].mxu0
      %934 = vmatprep.mubr.bf16.mxu0 0
      %935 = vmatmul.mubr.bf16.gmra.mrb[0].mxu0 %v807
      %v936 = vpop.f32.mrb[0].mxu0
      %v937 = vadd.f32 0.0, %v936
      %v938 = vpop.f32.mrb[0].mxu0
      %v939 = vpop.f32.mrb[0].mxu0
      %v940 = vadd.f32 0.0, %v939
      %v941 = vpop.f32.mrb[0].mxu0
      %942 = vmatprep.mubr.bf16.mxu0 0
      %943 = vmatmul.mubr.bf16.gmra.mrb[0].mxu0 %v810
      %v944 = vpop.f32.mrb[0].mxu0
      %v945 = vadd.f32 0.0, %v944
      %v946 = vpop.f32.mrb[0].mxu0
      %v947 = vpop.f32.mrb[0].mxu0
      %v948 = vadd.f32 0.0, %v947
      %v949 = vpop.f32.mrb[0].mxu0
      %950 = vmatprep.mubr.bf16.mxu0 0
      %951 = vmatmul.mubr.bf16.gmra.mrb[0].mxu0 %v813
      %v952 = vpop.f32.mrb[0].mxu0
      %v953 = vadd.f32 0.0, %v952
      %v954 = vpop.f32.mrb[0].mxu0
      %v955 = vpop.f32.mrb[0].mxu0
      %v956 = vadd.f32 0.0, %v955
      %v957 = vpop.f32.mrb[0].mxu0
      %958 = vmatprep.mubr.bf16.mxu0 0
      %959 = vmatmul.mubr.bf16.gmra.mrb[0].mxu0 %v816
      %v960 = vpop.f32.mrb[0].mxu0
      %v961 = vadd.f32 0.0, %v960
      %v962 = vpop.f32.mrb[0].mxu0
      %v963 = vpop.f32.mrb[0].mxu0
      %v964 = vadd.f32 0.0, %v963
      %v965 = vpop.f32.mrb[0].mxu0
      %966 = vmatprep.mubr.bf16.mxu0 0
      %967 = vmatmul.mubr.bf16.gmra.mrb[0].mxu0 %v819
      %v968 = vpop.f32.mrb[0].mxu0
      %v969 = vadd.f32 0.0, %v968
      %v970 = vpop.f32.mrb[0].mxu0
      %v971 = vpop.f32.mrb[0].mxu0
      %v972 = vadd.f32 0.0, %v971
      %v973 = vpop.f32.mrb[0].mxu0
      %974 = vmatprep.mubr.bf16.mxu0 0
      %975 = vmatmul.mubr.bf16.gmra.mrb[0].mxu0 %v822
      %v976 = vpop.f32.mrb[0].mxu0
      %v977 = vadd.f32 0.0, %v976
      %v978 = vpop.f32.mrb[0].mxu0
      %v979 = vpop.f32.mrb[0].mxu0
      %v980 = vadd.f32 0.0, %v979
      %v981 = vpop.f32.mrb[0].mxu0
      %982 = vmatprep.mubr.bf16.mxu0 0
      %983 = vmatmul.mubr.bf16.gmra.mrb[0].mxu0 %v825
      %v984 = vpop.f32.mrb[0].mxu0
      %v985 = vadd.f32 0.0, %v984
      %v986 = vpop.f32.mrb[0].mxu0
      %v987 = vpop.f32.mrb[0].mxu0
      %v988 = vadd.f32 0.0, %v987
      %v989 = vpop.f32.mrb[0].mxu0
      %990 = vdwg.mxu0
      %v991 = vadd.f32 %v601, %v865
      %v992 = vadd.f32 %v604, %v868
      %v993 = vadd.f32 %v609, %v873
      %v994 = vadd.f32 %v612, %v876
      %v995 = vadd.f32 %v617, %v881
      %v996 = vadd.f32 %v620, %v884
      %v997 = vadd.f32 %v625, %v889
      %v998 = vadd.f32 %v628, %v892
      %v999 = vadd.f32 %v633, %v897
      %v1000 = vadd.f32 %v636, %v900
      %v1001 = vadd.f32 %v641, %v905
      %v1002 = vadd.f32 %v644, %v908
      %v1003 = vadd.f32 %v649, %v913
      %v1004 = vadd.f32 %v652, %v916
      %v1005 = vadd.f32 %v657, %v921
      %v1006 = vadd.f32 %v660, %v924
      %v1007 = vadd.f32 %v665, %v929
      %v1008 = vadd.f32 %v668, %v932
      %v1009 = vadd.f32 %v673, %v937
      %v1010 = vadd.f32 %v676, %v940
      %v1011 = vadd.f32 %v681, %v945
      %v1012 = vadd.f32 %v684, %v948
      %v1013 = vadd.f32 %v689, %v953
      %v1014 = vadd.f32 %v692, %v956
      %v1015 = vadd.f32 %v697, %v961
      %v1016 = vadd.f32 %v700, %v964
      %v1017 = vadd.f32 %v705, %v969
      %v1018 = vadd.f32 %v708, %v972
      %v1019 = vadd.f32 %v713, %v977
      %v1020 = vadd.f32 %v716, %v980
      %v1021 = vadd.f32 %v721, %v985
      %v1022 = vadd.f32 %v724, %v988
      %s1023 = sadd.s32 %s195, 30
      %s1024 = scalar_lea.vmem %s183, %s1023
      %v1025 = vld [vmem:[%s1024] sm:$0xff]
      %v1026 = vld [vmem:[%s1024 + $0x8] sm:$0xff]
      %v1027 = vld [vmem:[%s1024 + $0x10] sm:$0xff]
      %v1028 = vld [vmem:[%s1024 + $0x18] sm:$0xff]
      %v1029 = vld [vmem:[%s1024 + $0x20] sm:$0xff]
      %v1030 = vld [vmem:[%s1024 + $0x28] sm:$0xff]
      %v1031 = vld [vmem:[%s1024 + $0x30] sm:$0xff]
      %v1032 = vld [vmem:[%s1024 + $0x38] sm:$0xff]
      %v1033 = vld [vmem:[%s1024 + $0x40] sm:$0xff]
      %v1034 = vld [vmem:[%s1024 + $0x48] sm:$0xff]
      %v1035 = vld [vmem:[%s1024 + $0x50] sm:$0xff]
      %v1036 = vld [vmem:[%s1024 + $0x58] sm:$0xff]
      %v1037 = vld [vmem:[%s1024 + $0x60] sm:$0xff]
      %v1038 = vld [vmem:[%s1024 + $0x68] sm:$0xff]
      %v1039 = vld [vmem:[%s1024 + $0x70] sm:$0xff]
      %v1040 = vld [vmem:[%s1024 + $0x78] sm:$0xff]
      %v1041 = vld [vmem:[%s1024 + $0x80] sm:$0xff]
      %v1042 = vld [vmem:[%s1024 + $0x88] sm:$0xff]
      %v1043 = vld [vmem:[%s1024 + $0x90] sm:$0xff]
      %v1044 = vld [vmem:[%s1024 + $0x98] sm:$0xff]
      %v1045 = vld [vmem:[%s1024 + $0xa0] sm:$0xff]
      %v1046 = vld [vmem:[%s1024 + $0xa8] sm:$0xff]
      %v1047 = vld [vmem:[%s1024 + $0xb0] sm:$0xff]
      %v1048 = vld [vmem:[%s1024 + $0xb8] sm:$0xff]
      %v1049 = vld [vmem:[%s1024 + $0xc0] sm:$0xff]
      %v1050 = vld [vmem:[%s1024 + $0xc8] sm:$0xff]
      %v1051 = vld [vmem:[%s1024 + $0xd0] sm:$0xff]
      %v1052 = vld [vmem:[%s1024 + $0xd8] sm:$0xff]
      %v1053 = vld [vmem:[%s1024 + $0xe0] sm:$0xff]
      %v1054 = vld [vmem:[%s1024 + $0xe8] sm:$0xff]
      %v1055 = vld [vmem:[%s1024 + $0xf0] sm:$0xff]
      %v1056 = vld [vmem:[%s1024 + $0xf8] sm:$0xff]
      %v1057 = vpack.c.bf16 %v1026, %v1025
      %v1058 = vpack.c.bf16 %v1028, %v1027
      %v1059 = vpack.c.bf16 %v1030, %v1029
      %v1060 = vpack.c.bf16 %v1032, %v1031
      %v1061 = vpack.c.bf16 %v1034, %v1033
      %v1062 = vpack.c.bf16 %v1036, %v1035
      %v1063 = vpack.c.bf16 %v1038, %v1037
      %v1064 = vpack.c.bf16 %v1040, %v1039
      %v1065 = vpack.c.bf16 %v1042, %v1041
      %v1066 = vpack.c.bf16 %v1044, %v1043
      %v1067 = vpack.c.bf16 %v1046, %v1045
      %v1068 = vpack.c.bf16 %v1048, %v1047
      %v1069 = vpack.c.bf16 %v1050, %v1049
      %v1070 = vpack.c.bf16 %v1052, %v1051
      %v1071 = vpack.c.bf16 %v1054, %v1053
      %v1072 = vpack.c.bf16 %v1056, %v1055
      %s1073 = scalar_lea.vmem %s1, 6
      %v1074 = vld [vmem:[%s1073] sm:$0x3]
      %v1076 = vsel %vm298, %v1057, 0
      %v1079 = vsel %vm298, %v1058, 0
      %v1082 = vsel %vm298, %v1059, 0
      %v1085 = vsel %vm298, %v1060, 0
      %v1088 = vsel %vm298, %v1061, 0
      %v1091 = vsel %vm298, %v1062, 0
      %v1094 = vsel %vm298, %v1063, 0
      %v1097 = vsel %vm298, %v1064, 0
      %v1100 = vsel %vm298, %v1065, 0
      %v1103 = vsel %vm298, %v1066, 0
      %v1106 = vsel %vm298, %v1067, 0
      %v1109 = vsel %vm298, %v1068, 0
      %v1112 = vsel %vm298, %v1069, 0
      %v1115 = vsel %vm298, %v1070, 0
      %v1118 = vsel %vm298, %v1071, 0
      %v1121 = vsel %vm298, %v1072, 0
      %v1124 = vand.u32 %v1074, %v350
      %1126 = vmatprep.subr.bf16.mxu0 0
      %1127 = vmatpush1.bf16.msra.mxu0 %v1124
      %1128 = vmatprep.subr.bf16.mxu0 0
      %1129 = vmatpush1.bf16.msra.mxu0 0
      %1130 = vmatprep.subr.bf16.mxu0 0
      %1131 = vmatpush1.bf16.msra.mxu0 0
      %1132 = vmatprep.subr.bf16.mxu0 0
      %1133 = vmatpush1.bf16.msra.mxu0 0
      %1134 = vmatprep.subr.bf16.mxu0 0
      %1135 = vmatpush1.bf16.msra.mxu0 0
      %1136 = vmatprep.subr.bf16.mxu0 0
      %1137 = vmatpush1.bf16.msra.mxu0 0
      %1138 = vmatprep.subr.bf16.mxu0 0
      %1139 = vmatpush1.bf16.msra.mxu0 0
      %1140 = vmatprep.subr.bf16.mxu0 0
      %1141 = vmatpush1.bf16.msra.mxu0 0
      %1142 = vmatprep.subr.bf16.mxu0 0
      %1143 = vmatpush1.bf16.msra.mxu0 0
      %1144 = vmatprep.subr.bf16.mxu0 0
      %1145 = vmatpush1.bf16.msra.mxu0 0
      %1146 = vmatprep.subr.bf16.mxu0 0
      %1147 = vmatpush1.bf16.msra.mxu0 0
      %1148 = vmatprep.subr.bf16.mxu0 0
      %1149 = vmatpush1.bf16.msra.mxu0 0
      %1150 = vmatprep.subr.bf16.mxu0 0
      %1151 = vmatpush1.bf16.msra.mxu0 0
      %1152 = vmatprep.subr.bf16.mxu0 0
      %1153 = vmatpush1.bf16.msra.mxu0 0
      %1154 = vmatprep.subr.bf16.mxu0 0
      %1155 = vmatpush1.bf16.msra.mxu0 0
      %1156 = vmatprep.subr.bf16.mxu0 0
      %1157 = vmatpush1.bf16.msra.mxu0 0
      %1158 = vmatprep.mubr.bf16.mxu0 0
      %1159 = vmatmul.mubr.bf16.gmra.mrb[0].mxu0 %v1076
      %v1160 = vpop.f32.mrb[0].mxu0
      %v1161 = vadd.f32 0.0, %v1160
      %v1162 = vpop.f32.mrb[0].mxu0
      %v1163 = vpop.f32.mrb[0].mxu0
      %v1164 = vadd.f32 0.0, %v1163
      %v1165 = vpop.f32.mrb[0].mxu0
      %1166 = vmatprep.mubr.bf16.mxu0 0
      %1167 = vmatmul.mubr.bf16.gmra.mrb[0].mxu0 %v1079
      %v1168 = vpop.f32.mrb[0].mxu0
      %v1169 = vadd.f32 0.0, %v1168
      %v1170 = vpop.f32.mrb[0].mxu0
      %v1171 = vpop.f32.mrb[0].mxu0
      %v1172 = vadd.f32 0.0, %v1171
      %v1173 = vpop.f32.mrb[0].mxu0
      %1174 = vmatprep.mubr.bf16.mxu0 0
      %1175 = vmatmul.mubr.bf16.gmra.mrb[0].mxu0 %v1082
      %v1176 = vpop.f32.mrb[0].mxu0
      %v1177 = vadd.f32 0.0, %v1176
      %v1178 = vpop.f32.mrb[0].mxu0
      %v1179 = vpop.f32.mrb[0].mxu0
      %v1180 = vadd.f32 0.0, %v1179
      %v1181 = vpop.f32.mrb[0].mxu0
      %1182 = vmatprep.mubr.bf16.mxu0 0
      %1183 = vmatmul.mubr.bf16.gmra.mrb[0].mxu0 %v1085
      %v1184 = vpop.f32.mrb[0].mxu0
      %v1185 = vadd.f32 0.0, %v1184
      %v1186 = vpop.f32.mrb[0].mxu0
      %v1187 = vpop.f32.mrb[0].mxu0
      %v1188 = vadd.f32 0.0, %v1187
      %v1189 = vpop.f32.mrb[0].mxu0
      %1190 = vmatprep.mubr.bf16.mxu0 0
      %1191 = vmatmul.mubr.bf16.gmra.mrb[0].mxu0 %v1088
      %v1192 = vpop.f32.mrb[0].mxu0
      %v1193 = vadd.f32 0.0, %v1192
      %v1194 = vpop.f32.mrb[0].mxu0
      %v1195 = vpop.f32.mrb[0].mxu0
      %v1196 = vadd.f32 0.0, %v1195
      %v1197 = vpop.f32.mrb[0].mxu0
      %1198 = vmatprep.mubr.bf16.mxu0 0
      %1199 = vmatmul.mubr.bf16.gmra.mrb[0].mxu0 %v1091
      %v1200 = vpop.f32.mrb[0].mxu0
      %v1201 = vadd.f32 0.0, %v1200
      %v1202 = vpop.f32.mrb[0].mxu0
      %v1203 = vpop.f32.mrb[0].mxu0
      %v1204 = vadd.f32 0.0, %v1203
      %v1205 = vpop.f32.mrb[0].mxu0
      %1206 = vmatprep.mubr.bf16.mxu0 0
      %1207 = vmatmul.mubr.bf16.gmra.mrb[0].mxu0 %v1094
      %v1208 = vpop.f32.mrb[0].mxu0
      %v1209 = vadd.f32 0.0, %v1208
      %v1210 = vpop.f32.mrb[0].mxu0
      %v1211 = vpop.f32.mrb[0].mxu0
      %v1212 = vadd.f32 0.0, %v1211
      %v1213 = vpop.f32.mrb[0].mxu0
      %1214 = vmatprep.mubr.bf16.mxu0 0
      %1215 = vmatmul.mubr.bf16.gmra.mrb[0].mxu0 %v1097
      %v1216 = vpop.f32.mrb[0].mxu0
      %v1217 = vadd.f32 0.0, %v1216
      %v1218 = vpop.f32.mrb[0].mxu0
      %v1219 = vpop.f32.mrb[0].mxu0
      %v1220 = vadd.f32 0.0, %v1219
      %v1221 = vpop.f32.mrb[0].mxu0
      %1222 = vmatprep.mubr.bf16.mxu0 0
      %1223 = vmatmul.mubr.bf16.gmra.mrb[0].mxu0 %v1100
      %v1224 = vpop.f32.mrb[0].mxu0
      %v1225 = vadd.f32 0.0, %v1224
      %v1226 = vpop.f32.mrb[0].mxu0
      %v1227 = vpop.f32.mrb[0].mxu0
      %v1228 = vadd.f32 0.0, %v1227
      %v1229 = vpop.f32.mrb[0].mxu0
      %1230 = vmatprep.mubr.bf16.mxu0 0
      %1231 = vmatmul.mubr.bf16.gmra.mrb[0].mxu0 %v1103
      %v1232 = vpop.f32.mrb[0].mxu0
      %v1233 = vadd.f32 0.0, %v1232
      %v1234 = vpop.f32.mrb[0].mxu0
      %v1235 = vpop.f32.mrb[0].mxu0
      %v1236 = vadd.f32 0.0, %v1235
      %v1237 = vpop.f32.mrb[0].mxu0
      %1238 = vmatprep.mubr.bf16.mxu0 0
      %1239 = vmatmul.mubr.bf16.gmra.mrb[0].mxu0 %v1106
      %v1240 = vpop.f32.mrb[0].mxu0
      %v1241 = vadd.f32 0.0, %v1240
      %v1242 = vpop.f32.mrb[0].mxu0
      %v1243 = vpop.f32.mrb[0].mxu0
      %v1244 = vadd.f32 0.0, %v1243
      %v1245 = vpop.f32.mrb[0].mxu0
      %1246 = vmatprep.mubr.bf16.mxu0 0
      %1247 = vmatmul.mubr.bf16.gmra.mrb[0].mxu0 %v1109
      %v1248 = vpop.f32.mrb[0].mxu0
      %v1249 = vadd.f32 0.0, %v1248
      %v1250 = vpop.f32.mrb[0].mxu0
      %v1251 = vpop.f32.mrb[0].mxu0
      %v1252 = vadd.f32 0.0, %v1251
      %v1253 = vpop.f32.mrb[0].mxu0
      %1254 = vmatprep.mubr.bf16.mxu0 0
      %1255 = vmatmul.mubr.bf16.gmra.mrb[0].mxu0 %v1112
      %v1256 = vpop.f32.mrb[0].mxu0
      %v1257 = vadd.f32 0.0, %v1256
      %v1258 = vpop.f32.mrb[0].mxu0
      %v1259 = vpop.f32.mrb[0].mxu0
      %v1260 = vadd.f32 0.0, %v1259
      %v1261 = vpop.f32.mrb[0].mxu0
      %1262 = vmatprep.mubr.bf16.mxu0 0
      %1263 = vmatmul.mubr.bf16.gmra.mrb[0].mxu0 %v1115
      %v1264 = vpop.f32.mrb[0].mxu0
      %v1265 = vadd.f32 0.0, %v1264
      %v1266 = vpop.f32.mrb[0].mxu0
      %v1267 = vpop.f32.mrb[0].mxu0
      %v1268 = vadd.f32 0.0, %v1267
      %v1269 = vpop.f32.mrb[0].mxu0
      %1270 = vmatprep.mubr.bf16.mxu0 0
      %1271 = vmatmul.mubr.bf16.gmra.mrb[0].mxu0 %v1118
      %v1272 = vpop.f32.mrb[0].mxu0
      %v1273 = vadd.f32 0.0, %v1272
      %v1274 = vpop.f32.mrb[0].mxu0
      %v1275 = vpop.f32.mrb[0].mxu0
      %v1276 = vadd.f32 0.0, %v1275
      %v1277 = vpop.f32.mrb[0].mxu0
      %1278 = vmatprep.mubr.bf16.mxu0 0
      %1279 = vmatmul.mubr.bf16.gmra.mrb[0].mxu0 %v1121
      %v1280 = vpop.f32.mrb[0].mxu0
      %v1281 = vadd.f32 0.0, %v1280
      %v1282 = vpop.f32.mrb[0].mxu0
      %v1283 = vpop.f32.mrb[0].mxu0
      %v1284 = vadd.f32 0.0, %v1283
      %v1285 = vpop.f32.mrb[0].mxu0
      %1286 = vdwg.mxu0
      %v1287 = vadd.f32 %v991, %v1161
      %v1288 = vadd.f32 %v992, %v1164
      %v1289 = vadd.f32 %v993, %v1169
      %v1290 = vadd.f32 %v994, %v1172
      %v1291 = vadd.f32 %v995, %v1177
      %v1292 = vadd.f32 %v996, %v1180
      %v1293 = vadd.f32 %v997, %v1185
      %v1294 = vadd.f32 %v998, %v1188
      %v1295 = vadd.f32 %v999, %v1193
      %v1296 = vadd.f32 %v1000, %v1196
      %v1297 = vadd.f32 %v1001, %v1201
      %v1298 = vadd.f32 %v1002, %v1204
      %v1299 = vadd.f32 %v1003, %v1209
      %v1300 = vadd.f32 %v1004, %v1212
      %v1301 = vadd.f32 %v1005, %v1217
      %v1302 = vadd.f32 %v1006, %v1220
      %v1303 = vadd.f32 %v1007, %v1225
      %v1304 = vadd.f32 %v1008, %v1228
      %v1305 = vadd.f32 %v1009, %v1233
      %v1306 = vadd.f32 %v1010, %v1236
      %v1307 = vadd.f32 %v1011, %v1241
      %v1308 = vadd.f32 %v1012, %v1244
      %v1309 = vadd.f32 %v1013, %v1249
      %v1310 = vadd.f32 %v1014, %v1252
      %v1311 = vadd.f32 %v1015, %v1257
      %v1312 = vadd.f32 %v1016, %v1260
      %v1313 = vadd.f32 %v1017, %v1265
      %v1314 = vadd.f32 %v1018, %v1268
      %v1315 = vadd.f32 %v1019, %v1273
      %v1316 = vadd.f32 %v1020, %v1276
      %v1317 = vadd.f32 %v1021, %v1281
      %v1318 = vadd.f32 %v1022, %v1284
      %s1319 = sadd.s32 %s195, 31
      %s1320 = scalar_lea.vmem %s183, %s1319
      %v1321 = vld [vmem:[%s1320] sm:$0xff]
      %v1322 = vld [vmem:[%s1320 + $0x8] sm:$0xff]
      %v1323 = vld [vmem:[%s1320 + $0x10] sm:$0xff]
      %v1324 = vld [vmem:[%s1320 + $0x18] sm:$0xff]
      %v1325 = vld [vmem:[%s1320 + $0x20] sm:$0xff]
      %v1326 = vld [vmem:[%s1320 + $0x28] sm:$0xff]
      %v1327 = vld [vmem:[%s1320 + $0x30] sm:$0xff]
      %v1328 = vld [vmem:[%s1320 + $0x38] sm:$0xff]
      %v1329 = vld [vmem:[%s1320 + $0x40] sm:$0xff]
      %v1330 = vld [vmem:[%s1320 + $0x48] sm:$0xff]
      %v1331 = vld [vmem:[%s1320 + $0x50] sm:$0xff]
      %v1332 = vld [vmem:[%s1320 + $0x58] sm:$0xff]
      %v1333 = vld [vmem:[%s1320 + $0x60] sm:$0xff]
      %v1334 = vld [vmem:[%s1320 + $0x68] sm:$0xff]
      %v1335 = vld [vmem:[%s1320 + $0x70] sm:$0xff]
      %v1336 = vld [vmem:[%s1320 + $0x78] sm:$0xff]
      %v1337 = vld [vmem:[%s1320 + $0x80] sm:$0xff]
      %v1338 = vld [vmem:[%s1320 + $0x88] sm:$0xff]
      %v1339 = vld [vmem:[%s1320 + $0x90] sm:$0xff]
      %v1340 = vld [vmem:[%s1320 + $0x98] sm:$0xff]
      %v1341 = vld [vmem:[%s1320 + $0xa0] sm:$0xff]
      %v1342 = vld [vmem:[%s1320 + $0xa8] sm:$0xff]
      %v1343 = vld [vmem:[%s1320 + $0xb0] sm:$0xff]
      %v1344 = vld [vmem:[%s1320 + $0xb8] sm:$0xff]
      %v1345 = vld [vmem:[%s1320 + $0xc0] sm:$0xff]
      %v1346 = vld [vmem:[%s1320 + $0xc8] sm:$0xff]
      %v1347 = vld [vmem:[%s1320 + $0xd0] sm:$0xff]
      %v1348 = vld [vmem:[%s1320 + $0xd8] sm:$0xff]
      %v1349 = vld [vmem:[%s1320 + $0xe0] sm:$0xff]
      %v1350 = vld [vmem:[%s1320 + $0xe8] sm:$0xff]
      %v1351 = vld [vmem:[%s1320 + $0xf0] sm:$0xff]
      %v1352 = vld [vmem:[%s1320 + $0xf8] sm:$0xff]
      %v1353 = vpack.c.bf16 %v1322, %v1321
      %v1354 = vpack.c.bf16 %v1324, %v1323
      %v1355 = vpack.c.bf16 %v1326, %v1325
      %v1356 = vpack.c.bf16 %v1328, %v1327
      %v1357 = vpack.c.bf16 %v1330, %v1329
      %v1358 = vpack.c.bf16 %v1332, %v1331
      %v1359 = vpack.c.bf16 %v1334, %v1333
      %v1360 = vpack.c.bf16 %v1336, %v1335
      %v1361 = vpack.c.bf16 %v1338, %v1337
      %v1362 = vpack.c.bf16 %v1340, %v1339
      %v1363 = vpack.c.bf16 %v1342, %v1341
      %v1364 = vpack.c.bf16 %v1344, %v1343
      %v1365 = vpack.c.bf16 %v1346, %v1345
      %v1366 = vpack.c.bf16 %v1348, %v1347
      %v1367 = vpack.c.bf16 %v1350, %v1349
      %v1368 = vpack.c.bf16 %v1352, %v1351
      %s1369 = scalar_lea.vmem %s1, 8
      %v1370 = vld [vmem:[%s1369] sm:$0x3]
      %v1372 = vsel %vm298, %v1353, 0
      %v1375 = vsel %vm298, %v1354, 0
      %v1378 = vsel %vm298, %v1355, 0
      %v1381 = vsel %vm298, %v1356, 0
      %v1384 = vsel %vm298, %v1357, 0
      %v1387 = vsel %vm298, %v1358, 0
      %v1390 = vsel %vm298, %v1359, 0
      %v1393 = vsel %vm298, %v1360, 0
      %v1396 = vsel %vm298, %v1361, 0
      %v1399 = vsel %vm298, %v1362, 0
      %v1402 = vsel %vm298, %v1363, 0
      %v1405 = vsel %vm298, %v1364, 0
      %v1408 = vsel %vm298, %v1365, 0
      %v1411 = vsel %vm298, %v1366, 0
      %v1414 = vsel %vm298, %v1367, 0
      %v1417 = vsel %vm298, %v1368, 0
      %v1420 = vand.u32 %v1370, %v350
      %1422 = vmatprep.subr.bf16.mxu0 0
      %1423 = vmatpush1.bf16.msra.mxu0 %v1420
      %1424 = vmatprep.subr.bf16.mxu0 0
      %1425 = vmatpush1.bf16.msra.mxu0 0
      %1426 = vmatprep.subr.bf16.mxu0 0
      %1427 = vmatpush1.bf16.msra.mxu0 0
      %1428 = vmatprep.subr.bf16.mxu0 0
      %1429 = vmatpush1.bf16.msra.mxu0 0
      %1430 = vmatprep.subr.bf16.mxu0 0
      %1431 = vmatpush1.bf16.msra.mxu0 0
      %1432 = vmatprep.subr.bf16.mxu0 0
      %1433 = vmatpush1.bf16.msra.mxu0 0
      %1434 = vmatprep.subr.bf16.mxu0 0
      %1435 = vmatpush1.bf16.msra.mxu0 0
      %1436 = vmatprep.subr.bf16.mxu0 0
      %1437 = vmatpush1.bf16.msra.mxu0 0
      %1438 = vmatprep.subr.bf16.mxu0 0
      %1439 = vmatpush1.bf16.msra.mxu0 0
      %1440 = vmatprep.subr.bf16.mxu0 0
      %1441 = vmatpush1.bf16.msra.mxu0 0
      %1442 = vmatprep.subr.bf16.mxu0 0
      %1443 = vmatpush1.bf16.msra.mxu0 0
      %1444 = vmatprep.subr.bf16.mxu0 0
      %1445 = vmatpush1.bf16.msra.mxu0 0
      %1446 = vmatprep.subr.bf16.mxu0 0
      %1447 = vmatpush1.bf16.msra.mxu0 0
      %1448 = vmatprep.subr.bf16.mxu0 0
      %1449 = vmatpush1.bf16.msra.mxu0 0
      %1450 = vmatprep.subr.bf16.mxu0 0
      %1451 = vmatpush1.bf16.msra.mxu0 0
      %1452 = vmatprep.subr.bf16.mxu0 0
      %1453 = vmatpush1.bf16.msra.mxu0 0
      %1454 = vmatprep.mubr.bf16.mxu0 0
      %1455 = vmatmul.mubr.bf16.gmra.mrb[0].mxu0 %v1372
      %v1456 = vpop.f32.mrb[0].mxu0
      %v1457 = vadd.f32 0.0, %v1456
      %v1458 = vpop.f32.mrb[0].mxu0
      %v1459 = vpop.f32.mrb[0].mxu0
      %v1460 = vadd.f32 0.0, %v1459
      %v1461 = vpop.f32.mrb[0].mxu0
      %1462 = vmatprep.mubr.bf16.mxu0 0
      %1463 = vmatmul.mubr.bf16.gmra.mrb[0].mxu0 %v1375
      %v1464 = vpop.f32.mrb[0].mxu0
      %v1465 = vadd.f32 0.0, %v1464
      %v1466 = vpop.f32.mrb[0].mxu0
      %v1467 = vpop.f32.mrb[0].mxu0
      %v1468 = vadd.f32 0.0, %v1467
      %v1469 = vpop.f32.mrb[0].mxu0
      %1470 = vmatprep.mubr.bf16.mxu0 0
      %1471 = vmatmul.mubr.bf16.gmra.mrb[0].mxu0 %v1378
      %v1472 = vpop.f32.mrb[0].mxu0
      %v1473 = vadd.f32 0.0, %v1472
      %v1474 = vpop.f32.mrb[0].mxu0
      %v1475 = vpop.f32.mrb[0].mxu0
      %v1476 = vadd.f32 0.0, %v1475
      %v1477 = vpop.f32.mrb[0].mxu0
      %1478 = vmatprep.mubr.bf16.mxu0 0
      %1479 = vmatmul.mubr.bf16.gmra.mrb[0].mxu0 %v1381
      %v1480 = vpop.f32.mrb[0].mxu0
      %v1481 = vadd.f32 0.0, %v1480
      %v1482 = vpop.f32.mrb[0].mxu0
      %v1483 = vpop.f32.mrb[0].mxu0
      %v1484 = vadd.f32 0.0, %v1483
      %v1485 = vpop.f32.mrb[0].mxu0
      %1486 = vmatprep.mubr.bf16.mxu0 0
      %1487 = vmatmul.mubr.bf16.gmra.mrb[0].mxu0 %v1384
      %v1488 = vpop.f32.mrb[0].mxu0
      %v1489 = vadd.f32 0.0, %v1488
      %v1490 = vpop.f32.mrb[0].mxu0
      %v1491 = vpop.f32.mrb[0].mxu0
      %v1492 = vadd.f32 0.0, %v1491
      %v1493 = vpop.f32.mrb[0].mxu0
      %1494 = vmatprep.mubr.bf16.mxu0 0
      %1495 = vmatmul.mubr.bf16.gmra.mrb[0].mxu0 %v1387
      %v1496 = vpop.f32.mrb[0].mxu0
      %v1497 = vadd.f32 0.0, %v1496
      %v1498 = vpop.f32.mrb[0].mxu0
      %v1499 = vpop.f32.mrb[0].mxu0
      %v1500 = vadd.f32 0.0, %v1499
      %v1501 = vpop.f32.mrb[0].mxu0
      %1502 = vmatprep.mubr.bf16.mxu0 0
      %1503 = vmatmul.mubr.bf16.gmra.mrb[0].mxu0 %v1390
      %v1504 = vpop.f32.mrb[0].mxu0
      %v1505 = vadd.f32 0.0, %v1504
      %v1506 = vpop.f32.mrb[0].mxu0
      %v1507 = vpop.f32.mrb[0].mxu0
      %v1508 = vadd.f32 0.0, %v1507
      %v1509 = vpop.f32.mrb[0].mxu0
      %1510 = vmatprep.mubr.bf16.mxu0 0
      %1511 = vmatmul.mubr.bf16.gmra.mrb[0].mxu0 %v1393
      %v1512 = vpop.f32.mrb[0].mxu0
      %v1513 = vadd.f32 0.0, %v1512
      %v1514 = vpop.f32.mrb[0].mxu0
      %v1515 = vpop.f32.mrb[0].mxu0
      %v1516 = vadd.f32 0.0, %v1515
      %v1517 = vpop.f32.mrb[0].mxu0
      %1518 = vmatprep.mubr.bf16.mxu0 0
      %1519 = vmatmul.mubr.bf16.gmra.mrb[0].mxu0 %v1396
      %v1520 = vpop.f32.mrb[0].mxu0
      %v1521 = vadd.f32 0.0, %v1520
      %v1522 = vpop.f32.mrb[0].mxu0
      %v1523 = vpop.f32.mrb[0].mxu0
      %v1524 = vadd.f32 0.0, %v1523
      %v1525 = vpop.f32.mrb[0].mxu0
      %1526 = vmatprep.mubr.bf16.mxu0 0
      %1527 = vmatmul.mubr.bf16.gmra.mrb[0].mxu0 %v1399
      %v1528 = vpop.f32.mrb[0].mxu0
      %v1529 = vadd.f32 0.0, %v1528
      %v1530 = vpop.f32.mrb[0].mxu0
      %v1531 = vpop.f32.mrb[0].mxu0
      %v1532 = vadd.f32 0.0, %v1531
      %v1533 = vpop.f32.mrb[0].mxu0
      %1534 = vmatprep.mubr.bf16.mxu0 0
      %1535 = vmatmul.mubr.bf16.gmra.mrb[0].mxu0 %v1402
      %v1536 = vpop.f32.mrb[0].mxu0
      %v1537 = vadd.f32 0.0, %v1536
      %v1538 = vpop.f32.mrb[0].mxu0
      %v1539 = vpop.f32.mrb[0].mxu0
      %v1540 = vadd.f32 0.0, %v1539
      %v1541 = vpop.f32.mrb[0].mxu0
      %1542 = vmatprep.mubr.bf16.mxu0 0
      %1543 = vmatmul.mubr.bf16.gmra.mrb[0].mxu0 %v1405
      %v1544 = vpop.f32.mrb[0].mxu0
      %v1545 = vadd.f32 0.0, %v1544
      %v1546 = vpop.f32.mrb[0].mxu0
      %v1547 = vpop.f32.mrb[0].mxu0
      %v1548 = vadd.f32 0.0, %v1547
      %v1549 = vpop.f32.mrb[0].mxu0
      %1550 = vmatprep.mubr.bf16.mxu0 0
      %1551 = vmatmul.mubr.bf16.gmra.mrb[0].mxu0 %v1408
      %v1552 = vpop.f32.mrb[0].mxu0
      %v1553 = vadd.f32 0.0, %v1552
      %v1554 = vpop.f32.mrb[0].mxu0
      %v1555 = vpop.f32.mrb[0].mxu0
      %v1556 = vadd.f32 0.0, %v1555
      %v1557 = vpop.f32.mrb[0].mxu0
      %1558 = vmatprep.mubr.bf16.mxu0 0
      %1559 = vmatmul.mubr.bf16.gmra.mrb[0].mxu0 %v1411
      %v1560 = vpop.f32.mrb[0].mxu0
      %v1561 = vadd.f32 0.0, %v1560
      %v1562 = vpop.f32.mrb[0].mxu0
      %v1563 = vpop.f32.mrb[0].mxu0
      %v1564 = vadd.f32 0.0, %v1563
      %v1565 = vpop.f32.mrb[0].mxu0
      %1566 = vmatprep.mubr.bf16.mxu0 0
      %1567 = vmatmul.mubr.bf16.gmra.mrb[0].mxu0 %v1414
      %v1568 = vpop.f32.mrb[0].mxu0
      %v1569 = vadd.f32 0.0, %v1568
      %v1570 = vpop.f32.mrb[0].mxu0
      %v1571 = vpop.f32.mrb[0].mxu0
      %v1572 = vadd.f32 0.0, %v1571
      %v1573 = vpop.f32.mrb[0].mxu0
      %1574 = vmatprep.mubr.bf16.mxu0 0
      %1575 = vmatmul.mubr.bf16.gmra.mrb[0].mxu0 %v1417
      %v1576 = vpop.f32.mrb[0].mxu0
      %v1577 = vadd.f32 0.0, %v1576
      %v1578 = vpop.f32.mrb[0].mxu0
      %v1579 = vpop.f32.mrb[0].mxu0
      %v1580 = vadd.f32 0.0, %v1579
      %v1581 = vpop.f32.mrb[0].mxu0
      %1582 = vdwg.mxu0
      %v1583 = vadd.f32 %v1287, %v1457
      %v1584 = vadd.f32 %v1288, %v1460
      %v1585 = vadd.f32 %v1289, %v1465
      %v1586 = vadd.f32 %v1290, %v1468
      %v1587 = vadd.f32 %v1291, %v1473
      %v1588 = vadd.f32 %v1292, %v1476
      %v1589 = vadd.f32 %v1293, %v1481
      %v1590 = vadd.f32 %v1294, %v1484
      %v1591 = vadd.f32 %v1295, %v1489
      %v1592 = vadd.f32 %v1296, %v1492
      %v1593 = vadd.f32 %v1297, %v1497
      %v1594 = vadd.f32 %v1298, %v1500
      %v1595 = vadd.f32 %v1299, %v1505
      %v1596 = vadd.f32 %v1300, %v1508
      %v1597 = vadd.f32 %v1301, %v1513
      %v1598 = vadd.f32 %v1302, %v1516
      %v1599 = vadd.f32 %v1303, %v1521
      %v1600 = vadd.f32 %v1304, %v1524
      %v1601 = vadd.f32 %v1305, %v1529
      %v1602 = vadd.f32 %v1306, %v1532
      %v1603 = vadd.f32 %v1307, %v1537
      %v1604 = vadd.f32 %v1308, %v1540
      %v1605 = vadd.f32 %v1309, %v1545
      %v1606 = vadd.f32 %v1310, %v1548
      %v1607 = vadd.f32 %v1311, %v1553
      %v1608 = vadd.f32 %v1312, %v1556
      %v1609 = vadd.f32 %v1313, %v1561
      %v1610 = vadd.f32 %v1314, %v1564
      %v1611 = vadd.f32 %v1315, %v1569
      %v1612 = vadd.f32 %v1316, %v1572
      %v1613 = vadd.f32 %v1317, %v1577
      %v1614 = vadd.f32 %v1318, %v1580
      %s1615 = sadd.s32 %s195, 32
      %s1616 = scalar_lea.vmem %s183, %s1615
      %v1617 = vld [vmem:[%s1616] sm:$0xff]
      %v1618 = vld [vmem:[%s1616 + $0x8] sm:$0xff]
      %v1619 = vld [vmem:[%s1616 + $0x10] sm:$0xff]
      %v1620 = vld [vmem:[%s1616 + $0x18] sm:$0xff]
      %v1621 = vld [vmem:[%s1616 + $0x20] sm:$0xff]
      %v1622 = vld [vmem:[%s1616 + $0x28] sm:$0xff]
      %v1623 = vld [vmem:[%s1616 + $0x30] sm:$0xff]
      %v1624 = vld [vmem:[%s1616 + $0x38] sm:$0xff]
      %v1625 = vld [vmem:[%s1616 + $0x40] sm:$0xff]
      %v1626 = vld [vmem:[%s1616 + $0x48] sm:$0xff]
      %v1627 = vld [vmem:[%s1616 + $0x50] sm:$0xff]
      %v1628 = vld [vmem:[%s1616 + $0x58] sm:$0xff]
      %v1629 = vld [vmem:[%s1616 + $0x60] sm:$0xff]
      %v1630 = vld [vmem:[%s1616 + $0x68] sm:$0xff]
      %v1631 = vld [vmem:[%s1616 + $0x70] sm:$0xff]
      %v1632 = vld [vmem:[%s1616 + $0x78] sm:$0xff]
      %v1633 = vld [vmem:[%s1616 + $0x80] sm:$0xff]
      %v1634 = vld [vmem:[%s1616 + $0x88] sm:$0xff]
      %v1635 = vld [vmem:[%s1616 + $0x90] sm:$0xff]
      %v1636 = vld [vmem:[%s1616 + $0x98] sm:$0xff]
      %v1637 = vld [vmem:[%s1616 + $0xa0] sm:$0xff]
      %v1638 = vld [vmem:[%s1616 + $0xa8] sm:$0xff]
      %v1639 = vld [vmem:[%s1616 + $0xb0] sm:$0xff]
      %v1640 = vld [vmem:[%s1616 + $0xb8] sm:$0xff]
      %v1641 = vld [vmem:[%s1616 + $0xc0] sm:$0xff]
      %v1642 = vld [vmem:[%s1616 + $0xc8] sm:$0xff]
      %v1643 = vld [vmem:[%s1616 + $0xd0] sm:$0xff]
      %v1644 = vld [vmem:[%s1616 + $0xd8] sm:$0xff]
      %v1645 = vld [vmem:[%s1616 + $0xe0] sm:$0xff]
      %v1646 = vld [vmem:[%s1616 + $0xe8] sm:$0xff]
      %v1647 = vld [vmem:[%s1616 + $0xf0] sm:$0xff]
      %v1648 = vld [vmem:[%s1616 + $0xf8] sm:$0xff]
      %v1649 = vpack.c.bf16 %v1618, %v1617
      %v1650 = vpack.c.bf16 %v1620, %v1619
      %v1651 = vpack.c.bf16 %v1622, %v1621
      %v1652 = vpack.c.bf16 %v1624, %v1623
      %v1653 = vpack.c.bf16 %v1626, %v1625
      %v1654 = vpack.c.bf16 %v1628, %v1627
      %v1655 = vpack.c.bf16 %v1630, %v1629
      %v1656 = vpack.c.bf16 %v1632, %v1631
      %v1657 = vpack.c.bf16 %v1634, %v1633
      %v1658 = vpack.c.bf16 %v1636, %v1635
      %v1659 = vpack.c.bf16 %v1638, %v1637
      %v1660 = vpack.c.bf16 %v1640, %v1639
      %v1661 = vpack.c.bf16 %v1642, %v1641
      %v1662 = vpack.c.bf16 %v1644, %v1643
      %v1663 = vpack.c.bf16 %v1646, %v1645
      %v1664 = vpack.c.bf16 %v1648, %v1647
      %s1665 = scalar_lea.vmem %s1, 10
      %v1666 = vld [vmem:[%s1665] sm:$0x3]
      %v1668 = vsel %vm298, %v1649, 0
      %v1671 = vsel %vm298, %v1650, 0
      %v1674 = vsel %vm298, %v1651, 0
      %v1677 = vsel %vm298, %v1652, 0
      %v1680 = vsel %vm298, %v1653, 0
      %v1683 = vsel %vm298, %v1654, 0
      %v1686 = vsel %vm298, %v1655, 0
      %v1689 = vsel %vm298, %v1656, 0
      %v1692 = vsel %vm298, %v1657, 0
      %v1695 = vsel %vm298, %v1658, 0
      %v1698 = vsel %vm298, %v1659, 0
      %v1701 = vsel %vm298, %v1660, 0
      %v1704 = vsel %vm298, %v1661, 0
      %v1707 = vsel %vm298, %v1662, 0
      %v1710 = vsel %vm298, %v1663, 0
      %v1713 = vsel %vm298, %v1664, 0
      %v1716 = vand.u32 %v1666, %v350
      %1718 = vmatprep.subr.bf16.mxu0 0
      %1719 = vmatpush1.bf16.msra.mxu0 %v1716
      %1720 = vmatprep.subr.bf16.mxu0 0
      %1721 = vmatpush1.bf16.msra.mxu0 0
      %1722 = vmatprep.subr.bf16.mxu0 0
      %1723 = vmatpush1.bf16.msra.mxu0 0
      %1724 = vmatprep.subr.bf16.mxu0 0
      %1725 = vmatpush1.bf16.msra.mxu0 0
      %1726 = vmatprep.subr.bf16.mxu0 0
      %1727 = vmatpush1.bf16.msra.mxu0 0
      %1728 = vmatprep.subr.bf16.mxu0 0
      %1729 = vmatpush1.bf16.msra.mxu0 0
      %1730 = vmatprep.subr.bf16.mxu0 0
      %1731 = vmatpush1.bf16.msra.mxu0 0
      %1732 = vmatprep.subr.bf16.mxu0 0
      %1733 = vmatpush1.bf16.msra.mxu0 0
      %1734 = vmatprep.subr.bf16.mxu0 0
      %1735 = vmatpush1.bf16.msra.mxu0 0
      %1736 = vmatprep.subr.bf16.mxu0 0
      %1737 = vmatpush1.bf16.msra.mxu0 0
      %1738 = vmatprep.subr.bf16.mxu0 0
      %1739 = vmatpush1.bf16.msra.mxu0 0
      %1740 = vmatprep.subr.bf16.mxu0 0
      %1741 = vmatpush1.bf16.msra.mxu0 0
      %1742 = vmatprep.subr.bf16.mxu0 0
      %1743 = vmatpush1.bf16.msra.mxu0 0
      %1744 = vmatprep.subr.bf16.mxu0 0
      %1745 = vmatpush1.bf16.msra.mxu0 0
      %1746 = vmatprep.subr.bf16.mxu0 0
      %1747 = vmatpush1.bf16.msra.mxu0 0
      %1748 = vmatprep.subr.bf16.mxu0 0
      %1749 = vmatpush1.bf16.msra.mxu0 0
      %1750 = vmatprep.mubr.bf16.mxu0 0
      %1751 = vmatmul.mubr.bf16.gmra.mrb[0].mxu0 %v1668
      %v1752 = vpop.f32.mrb[0].mxu0
      %v1753 = vadd.f32 0.0, %v1752
      %v1754 = vpop.f32.mrb[0].mxu0
      %v1755 = vpop.f32.mrb[0].mxu0
      %v1756 = vadd.f32 0.0, %v1755
      %v1757 = vpop.f32.mrb[0].mxu0
      %1758 = vmatprep.mubr.bf16.mxu0 0
      %1759 = vmatmul.mubr.bf16.gmra.mrb[0].mxu0 %v1671
      %v1760 = vpop.f32.mrb[0].mxu0
      %v1761 = vadd.f32 0.0, %v1760
      %v1762 = vpop.f32.mrb[0].mxu0
      %v1763 = vpop.f32.mrb[0].mxu0
      %v1764 = vadd.f32 0.0, %v1763
      %v1765 = vpop.f32.mrb[0].mxu0
      %1766 = vmatprep.mubr.bf16.mxu0 0
      %1767 = vmatmul.mubr.bf16.gmra.mrb[0].mxu0 %v1674
      %v1768 = vpop.f32.mrb[0].mxu0
      %v1769 = vadd.f32 0.0, %v1768
      %v1770 = vpop.f32.mrb[0].mxu0
      %v1771 = vpop.f32.mrb[0].mxu0
      %v1772 = vadd.f32 0.0, %v1771
      %v1773 = vpop.f32.mrb[0].mxu0
      %1774 = vmatprep.mubr.bf16.mxu0 0
      %1775 = vmatmul.mubr.bf16.gmra.mrb[0].mxu0 %v1677
      %v1776 = vpop.f32.mrb[0].mxu0
      %v1777 = vadd.f32 0.0, %v1776
      %v1778 = vpop.f32.mrb[0].mxu0
      %v1779 = vpop.f32.mrb[0].mxu0
      %v1780 = vadd.f32 0.0, %v1779
      %v1781 = vpop.f32.mrb[0].mxu0
      %1782 = vmatprep.mubr.bf16.mxu0 0
      %1783 = vmatmul.mubr.bf16.gmra.mrb[0].mxu0 %v1680
      %v1784 = vpop.f32.mrb[0].mxu0
      %v1785 = vadd.f32 0.0, %v1784
      %v1786 = vpop.f32.mrb[0].mxu0
      %v1787 = vpop.f32.mrb[0].mxu0
      %v1788 = vadd.f32 0.0, %v1787
      %v1789 = vpop.f32.mrb[0].mxu0
      %1790 = vmatprep.mubr.bf16.mxu0 0
      %1791 = vmatmul.mubr.bf16.gmra.mrb[0].mxu0 %v1683
      %v1792 = vpop.f32.mrb[0].mxu0
      %v1793 = vadd.f32 0.0, %v1792
      %v1794 = vpop.f32.mrb[0].mxu0
      %v1795 = vpop.f32.mrb[0].mxu0
      %v1796 = vadd.f32 0.0, %v1795
      %v1797 = vpop.f32.mrb[0].mxu0
      %1798 = vmatprep.mubr.bf16.mxu0 0
      %1799 = vmatmul.mubr.bf16.gmra.mrb[0].mxu0 %v1686
      %v1800 = vpop.f32.mrb[0].mxu0
      %v1801 = vadd.f32 0.0, %v1800
      %v1802 = vpop.f32.mrb[0].mxu0
      %v1803 = vpop.f32.mrb[0].mxu0
      %v1804 = vadd.f32 0.0, %v1803
      %v1805 = vpop.f32.mrb[0].mxu0
      %1806 = vmatprep.mubr.bf16.mxu0 0
      %1807 = vmatmul.mubr.bf16.gmra.mrb[0].mxu0 %v1689
      %v1808 = vpop.f32.mrb[0].mxu0
      %v1809 = vadd.f32 0.0, %v1808
      %v1810 = vpop.f32.mrb[0].mxu0
      %v1811 = vpop.f32.mrb[0].mxu0
      %v1812 = vadd.f32 0.0, %v1811
      %v1813 = vpop.f32.mrb[0].mxu0
      %1814 = vmatprep.mubr.bf16.mxu0 0
      %1815 = vmatmul.mubr.bf16.gmra.mrb[0].mxu0 %v1692
      %v1816 = vpop.f32.mrb[0].mxu0
      %v1817 = vadd.f32 0.0, %v1816
      %v1818 = vpop.f32.mrb[0].mxu0
      %v1819 = vpop.f32.mrb[0].mxu0
      %v1820 = vadd.f32 0.0, %v1819
      %v1821 = vpop.f32.mrb[0].mxu0
      %1822 = vmatprep.mubr.bf16.mxu0 0
      %1823 = vmatmul.mubr.bf16.gmra.mrb[0].mxu0 %v1695
      %v1824 = vpop.f32.mrb[0].mxu0
      %v1825 = vadd.f32 0.0, %v1824
      %v1826 = vpop.f32.mrb[0].mxu0
      %v1827 = vpop.f32.mrb[0].mxu0
      %v1828 = vadd.f32 0.0, %v1827
      %v1829 = vpop.f32.mrb[0].mxu0
      %1830 = vmatprep.mubr.bf16.mxu0 0
      %1831 = vmatmul.mubr.bf16.gmra.mrb[0].mxu0 %v1698
      %v1832 = vpop.f32.mrb[0].mxu0
      %v1833 = vadd.f32 0.0, %v1832
      %v1834 = vpop.f32.mrb[0].mxu0
      %v1835 = vpop.f32.mrb[0].mxu0
      %v1836 = vadd.f32 0.0, %v1835
      %v1837 = vpop.f32.mrb[0].mxu0
      %1838 = vmatprep.mubr.bf16.mxu0 0
      %1839 = vmatmul.mubr.bf16.gmra.mrb[0].mxu0 %v1701
      %v1840 = vpop.f32.mrb[0].mxu0
      %v1841 = vadd.f32 0.0, %v1840
      %v1842 = vpop.f32.mrb[0].mxu0
      %v1843 = vpop.f32.mrb[0].mxu0
      %v1844 = vadd.f32 0.0, %v1843
      %v1845 = vpop.f32.mrb[0].mxu0
      %1846 = vmatprep.mubr.bf16.mxu0 0
      %1847 = vmatmul.mubr.bf16.gmra.mrb[0].mxu0 %v1704
      %v1848 = vpop.f32.mrb[0].mxu0
      %v1849 = vadd.f32 0.0, %v1848
      %v1850 = vpop.f32.mrb[0].mxu0
      %v1851 = vpop.f32.mrb[0].mxu0
      %v1852 = vadd.f32 0.0, %v1851
      %v1853 = vpop.f32.mrb[0].mxu0
      %1854 = vmatprep.mubr.bf16.mxu0 0
      %1855 = vmatmul.mubr.bf16.gmra.mrb[0].mxu0 %v1707
      %v1856 = vpop.f32.mrb[0].mxu0
      %v1857 = vadd.f32 0.0, %v1856
      %v1858 = vpop.f32.mrb[0].mxu0
      %v1859 = vpop.f32.mrb[0].mxu0
      %v1860 = vadd.f32 0.0, %v1859
      %v1861 = vpop.f32.mrb[0].mxu0
      %1862 = vmatprep.mubr.bf16.mxu0 0
      %1863 = vmatmul.mubr.bf16.gmra.mrb[0].mxu0 %v1710
      %v1864 = vpop.f32.mrb[0].mxu0
      %v1865 = vadd.f32 0.0, %v1864
      %v1866 = vpop.f32.mrb[0].mxu0
      %v1867 = vpop.f32.mrb[0].mxu0
      %v1868 = vadd.f32 0.0, %v1867
      %v1869 = vpop.f32.mrb[0].mxu0
      %1870 = vmatprep.mubr.bf16.mxu0 0
      %1871 = vmatmul.mubr.bf16.gmra.mrb[0].mxu0 %v1713
      %v1872 = vpop.f32.mrb[0].mxu0
      %v1873 = vadd.f32 0.0, %v1872
      %v1874 = vpop.f32.mrb[0].mxu0
      %v1875 = vpop.f32.mrb[0].mxu0
      %v1876 = vadd.f32 0.0, %v1875
      %v1877 = vpop.f32.mrb[0].mxu0
      %1878 = vdwg.mxu0
      %v1879 = vadd.f32 %v1583, %v1753
      %v1880 = vadd.f32 %v1584, %v1756
      %v1881 = vadd.f32 %v1585, %v1761
      %v1882 = vadd.f32 %v1586, %v1764
      %v1883 = vadd.f32 %v1587, %v1769
      %v1884 = vadd.f32 %v1588, %v1772
      %v1885 = vadd.f32 %v1589, %v1777
      %v1886 = vadd.f32 %v1590, %v1780
      %v1887 = vadd.f32 %v1591, %v1785
      %v1888 = vadd.f32 %v1592, %v1788
      %v1889 = vadd.f32 %v1593, %v1793
      %v1890 = vadd.f32 %v1594, %v1796
      %v1891 = vadd.f32 %v1595, %v1801
      %v1892 = vadd.f32 %v1596, %v1804
      %v1893 = vadd.f32 %v1597, %v1809
      %v1894 = vadd.f32 %v1598, %v1812
      %v1895 = vadd.f32 %v1599, %v1817
      %v1896 = vadd.f32 %v1600, %v1820
      %v1897 = vadd.f32 %v1601, %v1825
      %v1898 = vadd.f32 %v1602, %v1828
      %v1899 = vadd.f32 %v1603, %v1833
      %v1900 = vadd.f32 %v1604, %v1836
      %v1901 = vadd.f32 %v1605, %v1841
      %v1902 = vadd.f32 %v1606, %v1844
      %v1903 = vadd.f32 %v1607, %v1849
      %v1904 = vadd.f32 %v1608, %v1852
      %v1905 = vadd.f32 %v1609, %v1857
      %v1906 = vadd.f32 %v1610, %v1860
      %v1907 = vadd.f32 %v1611, %v1865
      %v1908 = vadd.f32 %v1612, %v1868
      %v1909 = vadd.f32 %v1613, %v1873
      %v1910 = vadd.f32 %v1614, %v1876
      %s1911 = sadd.s32 %s195, 60
      %s1912 = scalar_lea.vmem %s183, %s1911
      %v1913 = vld [vmem:[%s1912] sm:$0xff]
      %v1914 = vld [vmem:[%s1912 + $0x8] sm:$0xff]
      %v1915 = vld [vmem:[%s1912 + $0x10] sm:$0xff]
      %v1916 = vld [vmem:[%s1912 + $0x18] sm:$0xff]
      %v1917 = vld [vmem:[%s1912 + $0x20] sm:$0xff]
      %v1918 = vld [vmem:[%s1912 + $0x28] sm:$0xff]
      %v1919 = vld [vmem:[%s1912 + $0x30] sm:$0xff]
      %v1920 = vld [vmem:[%s1912 + $0x38] sm:$0xff]
      %v1921 = vld [vmem:[%s1912 + $0x40] sm:$0xff]
      %v1922 = vld [vmem:[%s1912 + $0x48] sm:$0xff]
      %v1923 = vld [vmem:[%s1912 + $0x50] sm:$0xff]
      %v1924 = vld [vmem:[%s1912 + $0x58] sm:$0xff]
      %v1925 = vld [vmem:[%s1912 + $0x60] sm:$0xff]
      %v1926 = vld [vmem:[%s1912 + $0x68] sm:$0xff]
      %v1927 = vld [vmem:[%s1912 + $0x70] sm:$0xff]
      %v1928 = vld [vmem:[%s1912 + $0x78] sm:$0xff]
      %v1929 = vld [vmem:[%s1912 + $0x80] sm:$0xff]
      %v1930 = vld [vmem:[%s1912 + $0x88] sm:$0xff]
      %v1931 = vld [vmem:[%s1912 + $0x90] sm:$0xff]
      %v1932 = vld [vmem:[%s1912 + $0x98] sm:$0xff]
      %v1933 = vld [vmem:[%s1912 + $0xa0] sm:$0xff]
      %v1934 = vld [vmem:[%s1912 + $0xa8] sm:$0xff]
      %v1935 = vld [vmem:[%s1912 + $0xb0] sm:$0xff]
      %v1936 = vld [vmem:[%s1912 + $0xb8] sm:$0xff]
      %v1937 = vld [vmem:[%s1912 + $0xc0] sm:$0xff]
      %v1938 = vld [vmem:[%s1912 + $0xc8] sm:$0xff]
      %v1939 = vld [vmem:[%s1912 + $0xd0] sm:$0xff]
      %v1940 = vld [vmem:[%s1912 + $0xd8] sm:$0xff]
      %v1941 = vld [vmem:[%s1912 + $0xe0] sm:$0xff]
      %v1942 = vld [vmem:[%s1912 + $0xe8] sm:$0xff]
      %v1943 = vld [vmem:[%s1912 + $0xf0] sm:$0xff]
      %v1944 = vld [vmem:[%s1912 + $0xf8] sm:$0xff]
      %v1945 = vpack.c.bf16 %v1914, %v1913
      %v1946 = vpack.c.bf16 %v1916, %v1915
      %v1947 = vpack.c.bf16 %v1918, %v1917
      %v1948 = vpack.c.bf16 %v1920, %v1919
      %v1949 = vpack.c.bf16 %v1922, %v1921
      %v1950 = vpack.c.bf16 %v1924, %v1923
      %v1951 = vpack.c.bf16 %v1926, %v1925
      %v1952 = vpack.c.bf16 %v1928, %v1927
      %v1953 = vpack.c.bf16 %v1930, %v1929
      %v1954 = vpack.c.bf16 %v1932, %v1931
      %v1955 = vpack.c.bf16 %v1934, %v1933
      %v1956 = vpack.c.bf16 %v1936, %v1935
      %v1957 = vpack.c.bf16 %v1938, %v1937
      %v1958 = vpack.c.bf16 %v1940, %v1939
      %v1959 = vpack.c.bf16 %v1942, %v1941
      %v1960 = vpack.c.bf16 %v1944, %v1943
      %s1961 = scalar_lea.vmem %s1, 12
      %v1962 = vld [vmem:[%s1961] sm:$0x3]
      %v1964 = vsel %vm298, %v1945, 0
      %v1967 = vsel %vm298, %v1946, 0
      %v1970 = vsel %vm298, %v1947, 0
      %v1973 = vsel %vm298, %v1948, 0
      %v1976 = vsel %vm298, %v1949, 0
      %v1979 = vsel %vm298, %v1950, 0
      %v1982 = vsel %vm298, %v1951, 0
      %v1985 = vsel %vm298, %v1952, 0
      %v1988 = vsel %vm298, %v1953, 0
      %v1991 = vsel %vm298, %v1954, 0
      %v1994 = vsel %vm298, %v1955, 0
      %v1997 = vsel %vm298, %v1956, 0
      %v2000 = vsel %vm298, %v1957, 0
      %v2003 = vsel %vm298, %v1958, 0
      %v2006 = vsel %vm298, %v1959, 0
      %v2009 = vsel %vm298, %v1960, 0
      %v2012 = vand.u32 %v1962, %v350
      %2014 = vmatprep.subr.bf16.mxu0 0
      %2015 = vmatpush1.bf16.msra.mxu0 %v2012
      %2016 = vmatprep.subr.bf16.mxu0 0
      %2017 = vmatpush1.bf16.msra.mxu0 0
      %2018 = vmatprep.subr.bf16.mxu0 0
      %2019 = vmatpush1.bf16.msra.mxu0 0
      %2020 = vmatprep.subr.bf16.mxu0 0
      %2021 = vmatpush1.bf16.msra.mxu0 0
      %2022 = vmatprep.subr.bf16.mxu0 0
      %2023 = vmatpush1.bf16.msra.mxu0 0
      %2024 = vmatprep.subr.bf16.mxu0 0
      %2025 = vmatpush1.bf16.msra.mxu0 0
      %2026 = vmatprep.subr.bf16.mxu0 0
      %2027 = vmatpush1.bf16.msra.mxu0 0
      %2028 = vmatprep.subr.bf16.mxu0 0
      %2029 = vmatpush1.bf16.msra.mxu0 0
      %2030 = vmatprep.subr.bf16.mxu0 0
      %2031 = vmatpush1.bf16.msra.mxu0 0
      %2032 = vmatprep.subr.bf16.mxu0 0
      %2033 = vmatpush1.bf16.msra.mxu0 0
      %2034 = vmatprep.subr.bf16.mxu0 0
      %2035 = vmatpush1.bf16.msra.mxu0 0
      %2036 = vmatprep.subr.bf16.mxu0 0
      %2037 = vmatpush1.bf16.msra.mxu0 0
      %2038 = vmatprep.subr.bf16.mxu0 0
      %2039 = vmatpush1.bf16.msra.mxu0 0
      %2040 = vmatprep.subr.bf16.mxu0 0
      %2041 = vmatpush1.bf16.msra.mxu0 0
      %2042 = vmatprep.subr.bf16.mxu0 0
      %2043 = vmatpush1.bf16.msra.mxu0 0
      %2044 = vmatprep.subr.bf16.mxu0 0
      %2045 = vmatpush1.bf16.msra.mxu0 0
      %2046 = vmatprep.mubr.bf16.mxu0 0
      %2047 = vmatmul.mubr.bf16.gmra.mrb[0].mxu0 %v1964
      %v2048 = vpop.f32.mrb[0].mxu0
      %v2049 = vadd.f32 0.0, %v2048
      %v2050 = vpop.f32.mrb[0].mxu0
      %v2051 = vpop.f32.mrb[0].mxu0
      %v2052 = vadd.f32 0.0, %v2051
      %v2053 = vpop.f32.mrb[0].mxu0
      %2054 = vmatprep.mubr.bf16.mxu0 0
      %2055 = vmatmul.mubr.bf16.gmra.mrb[0].mxu0 %v1967
      %v2056 = vpop.f32.mrb[0].mxu0
      %v2057 = vadd.f32 0.0, %v2056
      %v2058 = vpop.f32.mrb[0].mxu0
      %v2059 = vpop.f32.mrb[0].mxu0
      %v2060 = vadd.f32 0.0, %v2059
      %v2061 = vpop.f32.mrb[0].mxu0
      %2062 = vmatprep.mubr.bf16.mxu0 0
      %2063 = vmatmul.mubr.bf16.gmra.mrb[0].mxu0 %v1970
      %v2064 = vpop.f32.mrb[0].mxu0
      %v2065 = vadd.f32 0.0, %v2064
      %v2066 = vpop.f32.mrb[0].mxu0
      %v2067 = vpop.f32.mrb[0].mxu0
      %v2068 = vadd.f32 0.0, %v2067
      %v2069 = vpop.f32.mrb[0].mxu0
      %2070 = vmatprep.mubr.bf16.mxu0 0
      %2071 = vmatmul.mubr.bf16.gmra.mrb[0].mxu0 %v1973
      %v2072 = vpop.f32.mrb[0].mxu0
      %v2073 = vadd.f32 0.0, %v2072
      %v2074 = vpop.f32.mrb[0].mxu0
      %v2075 = vpop.f32.mrb[0].mxu0
      %v2076 = vadd.f32 0.0, %v2075
      %v2077 = vpop.f32.mrb[0].mxu0
      %2078 = vmatprep.mubr.bf16.mxu0 0
      %2079 = vmatmul.mubr.bf16.gmra.mrb[0].mxu0 %v1976
      %v2080 = vpop.f32.mrb[0].mxu0
      %v2081 = vadd.f32 0.0, %v2080
      %v2082 = vpop.f32.mrb[0].mxu0
      %v2083 = vpop.f32.mrb[0].mxu0
      %v2084 = vadd.f32 0.0, %v2083
      %v2085 = vpop.f32.mrb[0].mxu0
      %2086 = vmatprep.mubr.bf16.mxu0 0
      %2087 = vmatmul.mubr.bf16.gmra.mrb[0].mxu0 %v1979
      %v2088 = vpop.f32.mrb[0].mxu0
      %v2089 = vadd.f32 0.0, %v2088
      %v2090 = vpop.f32.mrb[0].mxu0
      %v2091 = vpop.f32.mrb[0].mxu0
      %v2092 = vadd.f32 0.0, %v2091
      %v2093 = vpop.f32.mrb[0].mxu0
      %2094 = vmatprep.mubr.bf16.mxu0 0
      %2095 = vmatmul.mubr.bf16.gmra.mrb[0].mxu0 %v1982
      %v2096 = vpop.f32.mrb[0].mxu0
      %v2097 = vadd.f32 0.0, %v2096
      %v2098 = vpop.f32.mrb[0].mxu0
      %v2099 = vpop.f32.mrb[0].mxu0
      %v2100 = vadd.f32 0.0, %v2099
      %v2101 = vpop.f32.mrb[0].mxu0
      %2102 = vmatprep.mubr.bf16.mxu0 0
      %2103 = vmatmul.mubr.bf16.gmra.mrb[0].mxu0 %v1985
      %v2104 = vpop.f32.mrb[0].mxu0
      %v2105 = vadd.f32 0.0, %v2104
      %v2106 = vpop.f32.mrb[0].mxu0
      %v2107 = vpop.f32.mrb[0].mxu0
      %v2108 = vadd.f32 0.0, %v2107
      %v2109 = vpop.f32.mrb[0].mxu0
      %2110 = vmatprep.mubr.bf16.mxu0 0
      %2111 = vmatmul.mubr.bf16.gmra.mrb[0].mxu0 %v1988
      %v2112 = vpop.f32.mrb[0].mxu0
      %v2113 = vadd.f32 0.0, %v2112
      %v2114 = vpop.f32.mrb[0].mxu0
      %v2115 = vpop.f32.mrb[0].mxu0
      %v2116 = vadd.f32 0.0, %v2115
      %v2117 = vpop.f32.mrb[0].mxu0
      %2118 = vmatprep.mubr.bf16.mxu0 0
      %2119 = vmatmul.mubr.bf16.gmra.mrb[0].mxu0 %v1991
      %v2120 = vpop.f32.mrb[0].mxu0
      %v2121 = vadd.f32 0.0, %v2120
      %v2122 = vpop.f32.mrb[0].mxu0
      %v2123 = vpop.f32.mrb[0].mxu0
      %v2124 = vadd.f32 0.0, %v2123
      %v2125 = vpop.f32.mrb[0].mxu0
      %2126 = vmatprep.mubr.bf16.mxu0 0
      %2127 = vmatmul.mubr.bf16.gmra.mrb[0].mxu0 %v1994
      %v2128 = vpop.f32.mrb[0].mxu0
      %v2129 = vadd.f32 0.0, %v2128
      %v2130 = vpop.f32.mrb[0].mxu0
      %v2131 = vpop.f32.mrb[0].mxu0
      %v2132 = vadd.f32 0.0, %v2131
      %v2133 = vpop.f32.mrb[0].mxu0
      %2134 = vmatprep.mubr.bf16.mxu0 0
      %2135 = vmatmul.mubr.bf16.gmra.mrb[0].mxu0 %v1997
      %v2136 = vpop.f32.mrb[0].mxu0
      %v2137 = vadd.f32 0.0, %v2136
      %v2138 = vpop.f32.mrb[0].mxu0
      %v2139 = vpop.f32.mrb[0].mxu0
      %v2140 = vadd.f32 0.0, %v2139
      %v2141 = vpop.f32.mrb[0].mxu0
      %2142 = vmatprep.mubr.bf16.mxu0 0
      %2143 = vmatmul.mubr.bf16.gmra.mrb[0].mxu0 %v2000
      %v2144 = vpop.f32.mrb[0].mxu0
      %v2145 = vadd.f32 0.0, %v2144
      %v2146 = vpop.f32.mrb[0].mxu0
      %v2147 = vpop.f32.mrb[0].mxu0
      %v2148 = vadd.f32 0.0, %v2147
      %v2149 = vpop.f32.mrb[0].mxu0
      %2150 = vmatprep.mubr.bf16.mxu0 0
      %2151 = vmatmul.mubr.bf16.gmra.mrb[0].mxu0 %v2003
      %v2152 = vpop.f32.mrb[0].mxu0
      %v2153 = vadd.f32 0.0, %v2152
      %v2154 = vpop.f32.mrb[0].mxu0
      %v2155 = vpop.f32.mrb[0].mxu0
      %v2156 = vadd.f32 0.0, %v2155
      %v2157 = vpop.f32.mrb[0].mxu0
      %2158 = vmatprep.mubr.bf16.mxu0 0
      %2159 = vmatmul.mubr.bf16.gmra.mrb[0].mxu0 %v2006
      %v2160 = vpop.f32.mrb[0].mxu0
      %v2161 = vadd.f32 0.0, %v2160
      %v2162 = vpop.f32.mrb[0].mxu0
      %v2163 = vpop.f32.mrb[0].mxu0
      %v2164 = vadd.f32 0.0, %v2163
      %v2165 = vpop.f32.mrb[0].mxu0
      %2166 = vmatprep.mubr.bf16.mxu0 0
      %2167 = vmatmul.mubr.bf16.gmra.mrb[0].mxu0 %v2009
      %v2168 = vpop.f32.mrb[0].mxu0
      %v2169 = vadd.f32 0.0, %v2168
      %v2170 = vpop.f32.mrb[0].mxu0
      %v2171 = vpop.f32.mrb[0].mxu0
      %v2172 = vadd.f32 0.0, %v2171
      %v2173 = vpop.f32.mrb[0].mxu0
      %2174 = vdwg.mxu0
      %v2175 = vadd.f32 %v1879, %v2049
      %v2176 = vadd.f32 %v1880, %v2052
      %v2177 = vadd.f32 %v1881, %v2057
      %v2178 = vadd.f32 %v1882, %v2060
      %v2179 = vadd.f32 %v1883, %v2065
      %v2180 = vadd.f32 %v1884, %v2068
      %v2181 = vadd.f32 %v1885, %v2073
      %v2182 = vadd.f32 %v1886, %v2076
      %v2183 = vadd.f32 %v1887, %v2081
      %v2184 = vadd.f32 %v1888, %v2084
      %v2185 = vadd.f32 %v1889, %v2089
      %v2186 = vadd.f32 %v1890, %v2092
      %v2187 = vadd.f32 %v1891, %v2097
      %v2188 = vadd.f32 %v1892, %v2100
      %v2189 = vadd.f32 %v1893, %v2105
      %v2190 = vadd.f32 %v1894, %v2108
      %v2191 = vadd.f32 %v1895, %v2113
      %v2192 = vadd.f32 %v1896, %v2116
      %v2193 = vadd.f32 %v1897, %v2121
      %v2194 = vadd.f32 %v1898, %v2124
      %v2195 = vadd.f32 %v1899, %v2129
      %v2196 = vadd.f32 %v1900, %v2132
      %v2197 = vadd.f32 %v1901, %v2137
      %v2198 = vadd.f32 %v1902, %v2140
      %v2199 = vadd.f32 %v1903, %v2145
      %v2200 = vadd.f32 %v1904, %v2148
      %v2201 = vadd.f32 %v1905, %v2153
      %v2202 = vadd.f32 %v1906, %v2156
      %v2203 = vadd.f32 %v1907, %v2161
      %v2204 = vadd.f32 %v1908, %v2164
      %v2205 = vadd.f32 %v1909, %v2169
      %v2206 = vadd.f32 %v1910, %v2172
      %s2207 = sadd.s32 %s195, 61
      %s2208 = scalar_lea.vmem %s183, %s2207
      %v2209 = vld [vmem:[%s2208] sm:$0xff]
      %v2210 = vld [vmem:[%s2208 + $0x8] sm:$0xff]
      %v2211 = vld [vmem:[%s2208 + $0x10] sm:$0xff]
      %v2212 = vld [vmem:[%s2208 + $0x18] sm:$0xff]
      %v2213 = vld [vmem:[%s2208 + $0x20] sm:$0xff]
      %v2214 = vld [vmem:[%s2208 + $0x28] sm:$0xff]
      %v2215 = vld [vmem:[%s2208 + $0x30] sm:$0xff]
      %v2216 = vld [vmem:[%s2208 + $0x38] sm:$0xff]
      %v2217 = vld [vmem:[%s2208 + $0x40] sm:$0xff]
      %v2218 = vld [vmem:[%s2208 + $0x48] sm:$0xff]
      %v2219 = vld [vmem:[%s2208 + $0x50] sm:$0xff]
      %v2220 = vld [vmem:[%s2208 + $0x58] sm:$0xff]
      %v2221 = vld [vmem:[%s2208 + $0x60] sm:$0xff]
      %v2222 = vld [vmem:[%s2208 + $0x68] sm:$0xff]
      %v2223 = vld [vmem:[%s2208 + $0x70] sm:$0xff]
      %v2224 = vld [vmem:[%s2208 + $0x78] sm:$0xff]
      %v2225 = vld [vmem:[%s2208 + $0x80] sm:$0xff]
      %v2226 = vld [vmem:[%s2208 + $0x88] sm:$0xff]
      %v2227 = vld [vmem:[%s2208 + $0x90] sm:$0xff]
      %v2228 = vld [vmem:[%s2208 + $0x98] sm:$0xff]
      %v2229 = vld [vmem:[%s2208 + $0xa0] sm:$0xff]
      %v2230 = vld [vmem:[%s2208 + $0xa8] sm:$0xff]
      %v2231 = vld [vmem:[%s2208 + $0xb0] sm:$0xff]
      %v2232 = vld [vmem:[%s2208 + $0xb8] sm:$0xff]
      %v2233 = vld [vmem:[%s2208 + $0xc0] sm:$0xff]
      %v2234 = vld [vmem:[%s2208 + $0xc8] sm:$0xff]
      %v2235 = vld [vmem:[%s2208 + $0xd0] sm:$0xff]
      %v2236 = vld [vmem:[%s2208 + $0xd8] sm:$0xff]
      %v2237 = vld [vmem:[%s2208 + $0xe0] sm:$0xff]
      %v2238 = vld [vmem:[%s2208 + $0xe8] sm:$0xff]
      %v2239 = vld [vmem:[%s2208 + $0xf0] sm:$0xff]
      %v2240 = vld [vmem:[%s2208 + $0xf8] sm:$0xff]
      %v2241 = vpack.c.bf16 %v2210, %v2209
      %v2242 = vpack.c.bf16 %v2212, %v2211
      %v2243 = vpack.c.bf16 %v2214, %v2213
      %v2244 = vpack.c.bf16 %v2216, %v2215
      %v2245 = vpack.c.bf16 %v2218, %v2217
      %v2246 = vpack.c.bf16 %v2220, %v2219
      %v2247 = vpack.c.bf16 %v2222, %v2221
      %v2248 = vpack.c.bf16 %v2224, %v2223
      %v2249 = vpack.c.bf16 %v2226, %v2225
      %v2250 = vpack.c.bf16 %v2228, %v2227
      %v2251 = vpack.c.bf16 %v2230, %v2229
      %v2252 = vpack.c.bf16 %v2232, %v2231
      %v2253 = vpack.c.bf16 %v2234, %v2233
      %v2254 = vpack.c.bf16 %v2236, %v2235
      %v2255 = vpack.c.bf16 %v2238, %v2237
      %v2256 = vpack.c.bf16 %v2240, %v2239
      %s2257 = scalar_lea.vmem %s1, 14
      %v2258 = vld [vmem:[%s2257] sm:$0x3]
      %v2260 = vsel %vm298, %v2241, 0
      %v2263 = vsel %vm298, %v2242, 0
      %v2266 = vsel %vm298, %v2243, 0
      %v2269 = vsel %vm298, %v2244, 0
      %v2272 = vsel %vm298, %v2245, 0
      %v2275 = vsel %vm298, %v2246, 0
      %v2278 = vsel %vm298, %v2247, 0
      %v2281 = vsel %vm298, %v2248, 0
      %v2284 = vsel %vm298, %v2249, 0
      %v2287 = vsel %vm298, %v2250, 0
      %v2290 = vsel %vm298, %v2251, 0
      %v2293 = vsel %vm298, %v2252, 0
      %v2296 = vsel %vm298, %v2253, 0
      %v2299 = vsel %vm298, %v2254, 0
      %v2302 = vsel %vm298, %v2255, 0
      %v2305 = vsel %vm298, %v2256, 0
      %v2308 = vand.u32 %v2258, %v350
      %2310 = vmatprep.subr.bf16.mxu0 0
      %2311 = vmatpush1.bf16.msra.mxu0 %v2308
      %2312 = vmatprep.subr.bf16.mxu0 0
      %2313 = vmatpush1.bf16.msra.mxu0 0
      %2314 = vmatprep.subr.bf16.mxu0 0
      %2315 = vmatpush1.bf16.msra.mxu0 0
      %2316 = vmatprep.subr.bf16.mxu0 0
      %2317 = vmatpush1.bf16.msra.mxu0 0
      %2318 = vmatprep.subr.bf16.mxu0 0
      %2319 = vmatpush1.bf16.msra.mxu0 0
      %2320 = vmatprep.subr.bf16.mxu0 0
      %2321 = vmatpush1.bf16.msra.mxu0 0
      %2322 = vmatprep.subr.bf16.mxu0 0
      %2323 = vmatpush1.bf16.msra.mxu0 0
      %2324 = vmatprep.subr.bf16.mxu0 0
      %2325 = vmatpush1.bf16.msra.mxu0 0
      %2326 = vmatprep.subr.bf16.mxu0 0
      %2327 = vmatpush1.bf16.msra.mxu0 0
      %2328 = vmatprep.subr.bf16.mxu0 0
      %2329 = vmatpush1.bf16.msra.mxu0 0
      %2330 = vmatprep.subr.bf16.mxu0 0
      %2331 = vmatpush1.bf16.msra.mxu0 0
      %2332 = vmatprep.subr.bf16.mxu0 0
      %2333 = vmatpush1.bf16.msra.mxu0 0
      %2334 = vmatprep.subr.bf16.mxu0 0
      %2335 = vmatpush1.bf16.msra.mxu0 0
      %2336 = vmatprep.subr.bf16.mxu0 0
      %2337 = vmatpush1.bf16.msra.mxu0 0
      %2338 = vmatprep.subr.bf16.mxu0 0
      %2339 = vmatpush1.bf16.msra.mxu0 0
      %2340 = vmatprep.subr.bf16.mxu0 0
      %2341 = vmatpush1.bf16.msra.mxu0 0
      %2342 = vmatprep.mubr.bf16.mxu0 0
      %2343 = vmatmul.mubr.bf16.gmra.mrb[0].mxu0 %v2260
      %v2344 = vpop.f32.mrb[0].mxu0
      %v2345 = vadd.f32 0.0, %v2344
      %v2346 = vpop.f32.mrb[0].mxu0
      %v2347 = vpop.f32.mrb[0].mxu0
      %v2348 = vadd.f32 0.0, %v2347
      %v2349 = vpop.f32.mrb[0].mxu0
      %2350 = vmatprep.mubr.bf16.mxu0 0
      %2351 = vmatmul.mubr.bf16.gmra.mrb[0].mxu0 %v2263
      %v2352 = vpop.f32.mrb[0].mxu0
      %v2353 = vadd.f32 0.0, %v2352
      %v2354 = vpop.f32.mrb[0].mxu0
      %v2355 = vpop.f32.mrb[0].mxu0
      %v2356 = vadd.f32 0.0, %v2355
      %v2357 = vpop.f32.mrb[0].mxu0
      %2358 = vmatprep.mubr.bf16.mxu0 0
      %2359 = vmatmul.mubr.bf16.gmra.mrb[0].mxu0 %v2266
      %v2360 = vpop.f32.mrb[0].mxu0
      %v2361 = vadd.f32 0.0, %v2360
      %v2362 = vpop.f32.mrb[0].mxu0
      %v2363 = vpop.f32.mrb[0].mxu0
      %v2364 = vadd.f32 0.0, %v2363
      %v2365 = vpop.f32.mrb[0].mxu0
      %2366 = vmatprep.mubr.bf16.mxu0 0
      %2367 = vmatmul.mubr.bf16.gmra.mrb[0].mxu0 %v2269
      %v2368 = vpop.f32.mrb[0].mxu0
      %v2369 = vadd.f32 0.0, %v2368
      %v2370 = vpop.f32.mrb[0].mxu0
      %v2371 = vpop.f32.mrb[0].mxu0
      %v2372 = vadd.f32 0.0, %v2371
      %v2373 = vpop.f32.mrb[0].mxu0
      %2374 = vmatprep.mubr.bf16.mxu0 0
      %2375 = vmatmul.mubr.bf16.gmra.mrb[0].mxu0 %v2272
      %v2376 = vpop.f32.mrb[0].mxu0
      %v2377 = vadd.f32 0.0, %v2376
      %v2378 = vpop.f32.mrb[0].mxu0
      %v2379 = vpop.f32.mrb[0].mxu0
      %v2380 = vadd.f32 0.0, %v2379
      %v2381 = vpop.f32.mrb[0].mxu0
      %2382 = vmatprep.mubr.bf16.mxu0 0
      %2383 = vmatmul.mubr.bf16.gmra.mrb[0].mxu0 %v2275
      %v2384 = vpop.f32.mrb[0].mxu0
      %v2385 = vadd.f32 0.0, %v2384
      %v2386 = vpop.f32.mrb[0].mxu0
      %v2387 = vpop.f32.mrb[0].mxu0
      %v2388 = vadd.f32 0.0, %v2387
      %v2389 = vpop.f32.mrb[0].mxu0
      %2390 = vmatprep.mubr.bf16.mxu0 0
      %2391 = vmatmul.mubr.bf16.gmra.mrb[0].mxu0 %v2278
      %v2392 = vpop.f32.mrb[0].mxu0
      %v2393 = vadd.f32 0.0, %v2392
      %v2394 = vpop.f32.mrb[0].mxu0
      %v2395 = vpop.f32.mrb[0].mxu0
      %v2396 = vadd.f32 0.0, %v2395
      %v2397 = vpop.f32.mrb[0].mxu0
      %2398 = vmatprep.mubr.bf16.mxu0 0
      %2399 = vmatmul.mubr.bf16.gmra.mrb[0].mxu0 %v2281
      %v2400 = vpop.f32.mrb[0].mxu0
      %v2401 = vadd.f32 0.0, %v2400
      %v2402 = vpop.f32.mrb[0].mxu0
      %v2403 = vpop.f32.mrb[0].mxu0
      %v2404 = vadd.f32 0.0, %v2403
      %v2405 = vpop.f32.mrb[0].mxu0
      %2406 = vmatprep.mubr.bf16.mxu0 0
      %2407 = vmatmul.mubr.bf16.gmra.mrb[0].mxu0 %v2284
      %v2408 = vpop.f32.mrb[0].mxu0
      %v2409 = vadd.f32 0.0, %v2408
      %v2410 = vpop.f32.mrb[0].mxu0
      %v2411 = vpop.f32.mrb[0].mxu0
      %v2412 = vadd.f32 0.0, %v2411
      %v2413 = vpop.f32.mrb[0].mxu0
      %2414 = vmatprep.mubr.bf16.mxu0 0
      %2415 = vmatmul.mubr.bf16.gmra.mrb[0].mxu0 %v2287
      %v2416 = vpop.f32.mrb[0].mxu0
      %v2417 = vadd.f32 0.0, %v2416
      %v2418 = vpop.f32.mrb[0].mxu0
      %v2419 = vpop.f32.mrb[0].mxu0
      %v2420 = vadd.f32 0.0, %v2419
      %v2421 = vpop.f32.mrb[0].mxu0
      %2422 = vmatprep.mubr.bf16.mxu0 0
      %2423 = vmatmul.mubr.bf16.gmra.mrb[0].mxu0 %v2290
      %v2424 = vpop.f32.mrb[0].mxu0
      %v2425 = vadd.f32 0.0, %v2424
      %v2426 = vpop.f32.mrb[0].mxu0
      %v2427 = vpop.f32.mrb[0].mxu0
      %v2428 = vadd.f32 0.0, %v2427
      %v2429 = vpop.f32.mrb[0].mxu0
      %2430 = vmatprep.mubr.bf16.mxu0 0
      %2431 = vmatmul.mubr.bf16.gmra.mrb[0].mxu0 %v2293
      %v2432 = vpop.f32.mrb[0].mxu0
      %v2433 = vadd.f32 0.0, %v2432
      %v2434 = vpop.f32.mrb[0].mxu0
      %v2435 = vpop.f32.mrb[0].mxu0
      %v2436 = vadd.f32 0.0, %v2435
      %v2437 = vpop.f32.mrb[0].mxu0
      %2438 = vmatprep.mubr.bf16.mxu0 0
      %2439 = vmatmul.mubr.bf16.gmra.mrb[0].mxu0 %v2296
      %v2440 = vpop.f32.mrb[0].mxu0
      %v2441 = vadd.f32 0.0, %v2440
      %v2442 = vpop.f32.mrb[0].mxu0
      %v2443 = vpop.f32.mrb[0].mxu0
      %v2444 = vadd.f32 0.0, %v2443
      %v2445 = vpop.f32.mrb[0].mxu0
      %2446 = vmatprep.mubr.bf16.mxu0 0
      %2447 = vmatmul.mubr.bf16.gmra.mrb[0].mxu0 %v2299
      %v2448 = vpop.f32.mrb[0].mxu0
      %v2449 = vadd.f32 0.0, %v2448
      %v2450 = vpop.f32.mrb[0].mxu0
      %v2451 = vpop.f32.mrb[0].mxu0
      %v2452 = vadd.f32 0.0, %v2451
      %v2453 = vpop.f32.mrb[0].mxu0
      %2454 = vmatprep.mubr.bf16.mxu0 0
      %2455 = vmatmul.mubr.bf16.gmra.mrb[0].mxu0 %v2302
      %v2456 = vpop.f32.mrb[0].mxu0
      %v2457 = vadd.f32 0.0, %v2456
      %v2458 = vpop.f32.mrb[0].mxu0
      %v2459 = vpop.f32.mrb[0].mxu0
      %v2460 = vadd.f32 0.0, %v2459
      %v2461 = vpop.f32.mrb[0].mxu0
      %2462 = vmatprep.mubr.bf16.mxu0 0
      %2463 = vmatmul.mubr.bf16.gmra.mrb[0].mxu0 %v2305
      %v2464 = vpop.f32.mrb[0].mxu0
      %v2465 = vadd.f32 0.0, %v2464
      %v2466 = vpop.f32.mrb[0].mxu0
      %v2467 = vpop.f32.mrb[0].mxu0
      %v2468 = vadd.f32 0.0, %v2467
      %v2469 = vpop.f32.mrb[0].mxu0
      %2470 = vdwg.mxu0
      %v2471 = vadd.f32 %v2175, %v2345
      %v2472 = vadd.f32 %v2176, %v2348
      %v2473 = vadd.f32 %v2177, %v2353
      %v2474 = vadd.f32 %v2178, %v2356
      %v2475 = vadd.f32 %v2179, %v2361
      %v2476 = vadd.f32 %v2180, %v2364
      %v2477 = vadd.f32 %v2181, %v2369
      %v2478 = vadd.f32 %v2182, %v2372
      %v2479 = vadd.f32 %v2183, %v2377
      %v2480 = vadd.f32 %v2184, %v2380
      %v2481 = vadd.f32 %v2185, %v2385
      %v2482 = vadd.f32 %v2186, %v2388
      %v2483 = vadd.f32 %v2187, %v2393
      %v2484 = vadd.f32 %v2188, %v2396
      %v2485 = vadd.f32 %v2189, %v2401
      %v2486 = vadd.f32 %v2190, %v2404
      %v2487 = vadd.f32 %v2191, %v2409
      %v2488 = vadd.f32 %v2192, %v2412
      %v2489 = vadd.f32 %v2193, %v2417
      %v2490 = vadd.f32 %v2194, %v2420
      %v2491 = vadd.f32 %v2195, %v2425
      %v2492 = vadd.f32 %v2196, %v2428
      %v2493 = vadd.f32 %v2197, %v2433
      %v2494 = vadd.f32 %v2198, %v2436
      %v2495 = vadd.f32 %v2199, %v2441
      %v2496 = vadd.f32 %v2200, %v2444
      %v2497 = vadd.f32 %v2201, %v2449
      %v2498 = vadd.f32 %v2202, %v2452
      %v2499 = vadd.f32 %v2203, %v2457
      %v2500 = vadd.f32 %v2204, %v2460
      %v2501 = vadd.f32 %v2205, %v2465
      %v2502 = vadd.f32 %v2206, %v2468
      %s2503 = sadd.s32 %s195, 62
      %s2504 = scalar_lea.vmem %s183, %s2503
      %v2505 = vld [vmem:[%s2504] sm:$0xff]
      %v2506 = vld [vmem:[%s2504 + $0x8] sm:$0xff]
      %v2507 = vld [vmem:[%s2504 + $0x10] sm:$0xff]
      %v2508 = vld [vmem:[%s2504 + $0x18] sm:$0xff]
      %v2509 = vld [vmem:[%s2504 + $0x20] sm:$0xff]
      %v2510 = vld [vmem:[%s2504 + $0x28] sm:$0xff]
      %v2511 = vld [vmem:[%s2504 + $0x30] sm:$0xff]
      %v2512 = vld [vmem:[%s2504 + $0x38] sm:$0xff]
      %v2513 = vld [vmem:[%s2504 + $0x40] sm:$0xff]
      %v2514 = vld [vmem:[%s2504 + $0x48] sm:$0xff]
      %v2515 = vld [vmem:[%s2504 + $0x50] sm:$0xff]
      %v2516 = vld [vmem:[%s2504 + $0x58] sm:$0xff]
      %v2517 = vld [vmem:[%s2504 + $0x60] sm:$0xff]
      %v2518 = vld [vmem:[%s2504 + $0x68] sm:$0xff]
      %v2519 = vld [vmem:[%s2504 + $0x70] sm:$0xff]
      %v2520 = vld [vmem:[%s2504 + $0x78] sm:$0xff]
      %v2521 = vld [vmem:[%s2504 + $0x80] sm:$0xff]
      %v2522 = vld [vmem:[%s2504 + $0x88] sm:$0xff]
      %v2523 = vld [vmem:[%s2504 + $0x90] sm:$0xff]
      %v2524 = vld [vmem:[%s2504 + $0x98] sm:$0xff]
      %v2525 = vld [vmem:[%s2504 + $0xa0] sm:$0xff]
      %v2526 = vld [vmem:[%s2504 + $0xa8] sm:$0xff]
      %v2527 = vld [vmem:[%s2504 + $0xb0] sm:$0xff]
      %v2528 = vld [vmem:[%s2504 + $0xb8] sm:$0xff]
      %v2529 = vld [vmem:[%s2504 + $0xc0] sm:$0xff]
      %v2530 = vld [vmem:[%s2504 + $0xc8] sm:$0xff]
      %v2531 = vld [vmem:[%s2504 + $0xd0] sm:$0xff]
      %v2532 = vld [vmem:[%s2504 + $0xd8] sm:$0xff]
      %v2533 = vld [vmem:[%s2504 + $0xe0] sm:$0xff]
      %v2534 = vld [vmem:[%s2504 + $0xe8] sm:$0xff]
      %v2535 = vld [vmem:[%s2504 + $0xf0] sm:$0xff]
      %v2536 = vld [vmem:[%s2504 + $0xf8] sm:$0xff]
      %v2537 = vpack.c.bf16 %v2506, %v2505
      %v2538 = vpack.c.bf16 %v2508, %v2507
      %v2539 = vpack.c.bf16 %v2510, %v2509
      %v2540 = vpack.c.bf16 %v2512, %v2511
      %v2541 = vpack.c.bf16 %v2514, %v2513
      %v2542 = vpack.c.bf16 %v2516, %v2515
      %v2543 = vpack.c.bf16 %v2518, %v2517
      %v2544 = vpack.c.bf16 %v2520, %v2519
      %v2545 = vpack.c.bf16 %v2522, %v2521
      %v2546 = vpack.c.bf16 %v2524, %v2523
      %v2547 = vpack.c.bf16 %v2526, %v2525
      %v2548 = vpack.c.bf16 %v2528, %v2527
      %v2549 = vpack.c.bf16 %v2530, %v2529
      %v2550 = vpack.c.bf16 %v2532, %v2531
      %v2551 = vpack.c.bf16 %v2534, %v2533
      %v2552 = vpack.c.bf16 %v2536, %v2535
      %s2553 = scalar_lea.vmem %s1, 16
      %v2554 = vld [vmem:[%s2553] sm:$0x3]
      %v2556 = vsel %vm298, %v2537, 0
      %v2559 = vsel %vm298, %v2538, 0
      %v2562 = vsel %vm298, %v2539, 0
      %v2565 = vsel %vm298, %v2540, 0
      %v2568 = vsel %vm298, %v2541, 0
      %v2571 = vsel %vm298, %v2542, 0
      %v2574 = vsel %vm298, %v2543, 0
      %v2577 = vsel %vm298, %v2544, 0
      %v2580 = vsel %vm298, %v2545, 0
      %v2583 = vsel %vm298, %v2546, 0
      %v2586 = vsel %vm298, %v2547, 0
      %v2589 = vsel %vm298, %v2548, 0
      %v2592 = vsel %vm298, %v2549, 0
      %v2595 = vsel %vm298, %v2550, 0
      %v2598 = vsel %vm298, %v2551, 0
      %v2601 = vsel %vm298, %v2552, 0
      %v2604 = vand.u32 %v2554, %v350
      %2606 = vmatprep.subr.bf16.mxu0 0
      %2607 = vmatpush1.bf16.msra.mxu0 %v2604
      %2608 = vmatprep.subr.bf16.mxu0 0
      %2609 = vmatpush1.bf16.msra.mxu0 0
      %2610 = vmatprep.subr.bf16.mxu0 0
      %2611 = vmatpush1.bf16.msra.mxu0 0
      %2612 = vmatprep.subr.bf16.mxu0 0
      %2613 = vmatpush1.bf16.msra.mxu0 0
      %2614 = vmatprep.subr.bf16.mxu0 0
      %2615 = vmatpush1.bf16.msra.mxu0 0
      %2616 = vmatprep.subr.bf16.mxu0 0
      %2617 = vmatpush1.bf16.msra.mxu0 0
      %2618 = vmatprep.subr.bf16.mxu0 0
      %2619 = vmatpush1.bf16.msra.mxu0 0
      %2620 = vmatprep.subr.bf16.mxu0 0
      %2621 = vmatpush1.bf16.msra.mxu0 0
      %2622 = vmatprep.subr.bf16.mxu0 0
      %2623 = vmatpush1.bf16.msra.mxu0 0
      %2624 = vmatprep.subr.bf16.mxu0 0
      %2625 = vmatpush1.bf16.msra.mxu0 0
      %2626 = vmatprep.subr.bf16.mxu0 0
      %2627 = vmatpush1.bf16.msra.mxu0 0
      %2628 = vmatprep.subr.bf16.mxu0 0
      %2629 = vmatpush1.bf16.msra.mxu0 0
      %2630 = vmatprep.subr.bf16.mxu0 0
      %2631 = vmatpush1.bf16.msra.mxu0 0
      %2632 = vmatprep.subr.bf16.mxu0 0
      %2633 = vmatpush1.bf16.msra.mxu0 0
      %2634 = vmatprep.subr.bf16.mxu0 0
      %2635 = vmatpush1.bf16.msra.mxu0 0
      %2636 = vmatprep.subr.bf16.mxu0 0
      %2637 = vmatpush1.bf16.msra.mxu0 0
      %2638 = vmatprep.mubr.bf16.mxu0 0
      %2639 = vmatmul.mubr.bf16.gmra.mrb[0].mxu0 %v2556
      %v2640 = vpop.f32.mrb[0].mxu0
      %v2641 = vadd.f32 0.0, %v2640
      %v2642 = vpop.f32.mrb[0].mxu0
      %v2643 = vpop.f32.mrb[0].mxu0
      %v2644 = vadd.f32 0.0, %v2643
      %v2645 = vpop.f32.mrb[0].mxu0
      %2646 = vmatprep.mubr.bf16.mxu0 0
      %2647 = vmatmul.mubr.bf16.gmra.mrb[0].mxu0 %v2559
      %v2648 = vpop.f32.mrb[0].mxu0
      %v2649 = vadd.f32 0.0, %v2648
      %v2650 = vpop.f32.mrb[0].mxu0
      %v2651 = vpop.f32.mrb[0].mxu0
      %v2652 = vadd.f32 0.0, %v2651
      %v2653 = vpop.f32.mrb[0].mxu0
      %2654 = vmatprep.mubr.bf16.mxu0 0
      %2655 = vmatmul.mubr.bf16.gmra.mrb[0].mxu0 %v2562
      %v2656 = vpop.f32.mrb[0].mxu0
      %v2657 = vadd.f32 0.0, %v2656
      %v2658 = vpop.f32.mrb[0].mxu0
      %v2659 = vpop.f32.mrb[0].mxu0
      %v2660 = vadd.f32 0.0, %v2659
      %v2661 = vpop.f32.mrb[0].mxu0
      %2662 = vmatprep.mubr.bf16.mxu0 0
      %2663 = vmatmul.mubr.bf16.gmra.mrb[0].mxu0 %v2565
      %v2664 = vpop.f32.mrb[0].mxu0
      %v2665 = vadd.f32 0.0, %v2664
      %v2666 = vpop.f32.mrb[0].mxu0
      %v2667 = vpop.f32.mrb[0].mxu0
      %v2668 = vadd.f32 0.0, %v2667
      %v2669 = vpop.f32.mrb[0].mxu0
      %2670 = vmatprep.mubr.bf16.mxu0 0
      %2671 = vmatmul.mubr.bf16.gmra.mrb[0].mxu0 %v2568
      %v2672 = vpop.f32.mrb[0].mxu0
      %v2673 = vadd.f32 0.0, %v2672
      %v2674 = vpop.f32.mrb[0].mxu0
      %v2675 = vpop.f32.mrb[0].mxu0
      %v2676 = vadd.f32 0.0, %v2675
      %v2677 = vpop.f32.mrb[0].mxu0
      %2678 = vmatprep.mubr.bf16.mxu0 0
      %2679 = vmatmul.mubr.bf16.gmra.mrb[0].mxu0 %v2571
      %v2680 = vpop.f32.mrb[0].mxu0
      %v2681 = vadd.f32 0.0, %v2680
      %v2682 = vpop.f32.mrb[0].mxu0
      %v2683 = vpop.f32.mrb[0].mxu0
      %v2684 = vadd.f32 0.0, %v2683
      %v2685 = vpop.f32.mrb[0].mxu0
      %2686 = vmatprep.mubr.bf16.mxu0 0
      %2687 = vmatmul.mubr.bf16.gmra.mrb[0].mxu0 %v2574
      %v2688 = vpop.f32.mrb[0].mxu0
      %v2689 = vadd.f32 0.0, %v2688
      %v2690 = vpop.f32.mrb[0].mxu0
      %v2691 = vpop.f32.mrb[0].mxu0
      %v2692 = vadd.f32 0.0, %v2691
      %v2693 = vpop.f32.mrb[0].mxu0
      %2694 = vmatprep.mubr.bf16.mxu0 0
      %2695 = vmatmul.mubr.bf16.gmra.mrb[0].mxu0 %v2577
      %v2696 = vpop.f32.mrb[0].mxu0
      %v2697 = vadd.f32 0.0, %v2696
      %v2698 = vpop.f32.mrb[0].mxu0
      %v2699 = vpop.f32.mrb[0].mxu0
      %v2700 = vadd.f32 0.0, %v2699
      %v2701 = vpop.f32.mrb[0].mxu0
      %2702 = vmatprep.mubr.bf16.mxu0 0
      %2703 = vmatmul.mubr.bf16.gmra.mrb[0].mxu0 %v2580
      %v2704 = vpop.f32.mrb[0].mxu0
      %v2705 = vadd.f32 0.0, %v2704
      %v2706 = vpop.f32.mrb[0].mxu0
      %v2707 = vpop.f32.mrb[0].mxu0
      %v2708 = vadd.f32 0.0, %v2707
      %v2709 = vpop.f32.mrb[0].mxu0
      %2710 = vmatprep.mubr.bf16.mxu0 0
      %2711 = vmatmul.mubr.bf16.gmra.mrb[0].mxu0 %v2583
      %v2712 = vpop.f32.mrb[0].mxu0
      %v2713 = vadd.f32 0.0, %v2712
      %v2714 = vpop.f32.mrb[0].mxu0
      %v2715 = vpop.f32.mrb[0].mxu0
      %v2716 = vadd.f32 0.0, %v2715
      %v2717 = vpop.f32.mrb[0].mxu0
      %2718 = vmatprep.mubr.bf16.mxu0 0
      %2719 = vmatmul.mubr.bf16.gmra.mrb[0].mxu0 %v2586
      %v2720 = vpop.f32.mrb[0].mxu0
      %v2721 = vadd.f32 0.0, %v2720
      %v2722 = vpop.f32.mrb[0].mxu0
      %v2723 = vpop.f32.mrb[0].mxu0
      %v2724 = vadd.f32 0.0, %v2723
      %v2725 = vpop.f32.mrb[0].mxu0
      %2726 = vmatprep.mubr.bf16.mxu0 0
      %2727 = vmatmul.mubr.bf16.gmra.mrb[0].mxu0 %v2589
      %v2728 = vpop.f32.mrb[0].mxu0
      %v2729 = vadd.f32 0.0, %v2728
      %v2730 = vpop.f32.mrb[0].mxu0
      %v2731 = vpop.f32.mrb[0].mxu0
      %v2732 = vadd.f32 0.0, %v2731
      %v2733 = vpop.f32.mrb[0].mxu0
      %2734 = vmatprep.mubr.bf16.mxu0 0
      %2735 = vmatmul.mubr.bf16.gmra.mrb[0].mxu0 %v2592
      %v2736 = vpop.f32.mrb[0].mxu0
      %v2737 = vadd.f32 0.0, %v2736
      %v2738 = vpop.f32.mrb[0].mxu0
      %v2739 = vpop.f32.mrb[0].mxu0
      %v2740 = vadd.f32 0.0, %v2739
      %v2741 = vpop.f32.mrb[0].mxu0
      %2742 = vmatprep.mubr.bf16.mxu0 0
      %2743 = vmatmul.mubr.bf16.gmra.mrb[0].mxu0 %v2595
      %v2744 = vpop.f32.mrb[0].mxu0
      %v2745 = vadd.f32 0.0, %v2744
      %v2746 = vpop.f32.mrb[0].mxu0
      %v2747 = vpop.f32.mrb[0].mxu0
      %v2748 = vadd.f32 0.0, %v2747
      %v2749 = vpop.f32.mrb[0].mxu0
      %2750 = vmatprep.mubr.bf16.mxu0 0
      %2751 = vmatmul.mubr.bf16.gmra.mrb[0].mxu0 %v2598
      %v2752 = vpop.f32.mrb[0].mxu0
      %v2753 = vadd.f32 0.0, %v2752
      %v2754 = vpop.f32.mrb[0].mxu0
      %v2755 = vpop.f32.mrb[0].mxu0
      %v2756 = vadd.f32 0.0, %v2755
      %v2757 = vpop.f32.mrb[0].mxu0
      %2758 = vmatprep.mubr.bf16.mxu0 0
      %2759 = vmatmul.mubr.bf16.gmra.mrb[0].mxu0 %v2601
      %v2760 = vpop.f32.mrb[0].mxu0
      %v2761 = vadd.f32 0.0, %v2760
      %v2762 = vpop.f32.mrb[0].mxu0
      %v2763 = vpop.f32.mrb[0].mxu0
      %v2764 = vadd.f32 0.0, %v2763
      %v2765 = vpop.f32.mrb[0].mxu0
      %2766 = vdwg.mxu0
      %v2767 = vadd.f32 %v2471, %v2641
      %v2768 = vadd.f32 %v2472, %v2644
      %v2769 = vadd.f32 %v2473, %v2649
      %v2770 = vadd.f32 %v2474, %v2652
      %v2771 = vadd.f32 %v2475, %v2657
      %v2772 = vadd.f32 %v2476, %v2660
      %v2773 = vadd.f32 %v2477, %v2665
      %v2774 = vadd.f32 %v2478, %v2668
      %v2775 = vadd.f32 %v2479, %v2673
      %v2776 = vadd.f32 %v2480, %v2676
      %v2777 = vadd.f32 %v2481, %v2681
      %v2778 = vadd.f32 %v2482, %v2684
      %v2779 = vadd.f32 %v2483, %v2689
      %v2780 = vadd.f32 %v2484, %v2692
      %v2781 = vadd.f32 %v2485, %v2697
      %v2782 = vadd.f32 %v2486, %v2700
      %v2783 = vadd.f32 %v2487, %v2705
      %v2784 = vadd.f32 %v2488, %v2708
      %v2785 = vadd.f32 %v2489, %v2713
      %v2786 = vadd.f32 %v2490, %v2716
      %v2787 = vadd.f32 %v2491, %v2721
      %v2788 = vadd.f32 %v2492, %v2724
      %v2789 = vadd.f32 %v2493, %v2729
      %v2790 = vadd.f32 %v2494, %v2732
      %v2791 = vadd.f32 %v2495, %v2737
      %v2792 = vadd.f32 %v2496, %v2740
      %v2793 = vadd.f32 %v2497, %v2745
      %v2794 = vadd.f32 %v2498, %v2748
      %v2795 = vadd.f32 %v2499, %v2753
      %v2796 = vadd.f32 %v2500, %v2756
      %v2797 = vadd.f32 %v2501, %v2761
      %v2798 = vadd.f32 %v2502, %v2764
      %v2799 = vld [vmem:[%s2] sm:$0x1]
      %v2801 = vlaneseq
      %v2802 = vshrl.u32 %v2801, 7
      %v2803 = vsub.s32 0, %v2802
      %v2804 = vrot.slane %v2799, %v2803
      %v2806 = vadd.f32 %v2767, %v2804
      %v2807 = vadd.f32 %v2768, %v2804
      %v2808 = vadd.f32 %v2769, %v2804
      %v2809 = vadd.f32 %v2770, %v2804
      %v2810 = vadd.f32 %v2771, %v2804
      %v2811 = vadd.f32 %v2772, %v2804
      %v2812 = vadd.f32 %v2773, %v2804
      %v2813 = vadd.f32 %v2774, %v2804
      %v2814 = vadd.f32 %v2775, %v2804
      %v2815 = vadd.f32 %v2776, %v2804
      %v2816 = vadd.f32 %v2777, %v2804
      %v2817 = vadd.f32 %v2778, %v2804
      %v2818 = vadd.f32 %v2779, %v2804
      %v2819 = vadd.f32 %v2780, %v2804
      %v2820 = vadd.f32 %v2781, %v2804
      %v2821 = vadd.f32 %v2782, %v2804
      %v2822 = vadd.f32 %v2783, %v2804
      %v2823 = vadd.f32 %v2784, %v2804
      %v2824 = vadd.f32 %v2785, %v2804
      %v2825 = vadd.f32 %v2786, %v2804
      %v2826 = vadd.f32 %v2787, %v2804
      %v2827 = vadd.f32 %v2788, %v2804
      %v2828 = vadd.f32 %v2789, %v2804
      %v2829 = vadd.f32 %v2790, %v2804
      %v2830 = vadd.f32 %v2791, %v2804
      %v2831 = vadd.f32 %v2792, %v2804
      %v2832 = vadd.f32 %v2793, %v2804
      %v2833 = vadd.f32 %v2794, %v2804
      %v2834 = vadd.f32 %v2795, %v2804
      %v2835 = vadd.f32 %v2796, %v2804
      %v2836 = vadd.f32 %v2797, %v2804
      %v2837 = vadd.f32 %v2798, %v2804
      %v2838 = vmax.f32 %v2806, 0.0
      %v2839 = vmax.f32 %v2807, 0.0
      %v2840 = vmax.f32 %v2808, 0.0
      %v2841 = vmax.f32 %v2809, 0.0
      %v2842 = vmax.f32 %v2810, 0.0
      %v2843 = vmax.f32 %v2811, 0.0
      %v2844 = vmax.f32 %v2812, 0.0
      %v2845 = vmax.f32 %v2813, 0.0
      %v2846 = vmax.f32 %v2814, 0.0
      %v2847 = vmax.f32 %v2815, 0.0
      %v2848 = vmax.f32 %v2816, 0.0
      %v2849 = vmax.f32 %v2817, 0.0
      %v2850 = vmax.f32 %v2818, 0.0
      %v2851 = vmax.f32 %v2819, 0.0
      %v2852 = vmax.f32 %v2820, 0.0
      %v2853 = vmax.f32 %v2821, 0.0
      %v2854 = vmax.f32 %v2822, 0.0
      %v2855 = vmax.f32 %v2823, 0.0
      %v2856 = vmax.f32 %v2824, 0.0
      %v2857 = vmax.f32 %v2825, 0.0
      %v2858 = vmax.f32 %v2826, 0.0
      %v2859 = vmax.f32 %v2827, 0.0
      %v2860 = vmax.f32 %v2828, 0.0
      %v2861 = vmax.f32 %v2829, 0.0
      %v2862 = vmax.f32 %v2830, 0.0
      %v2863 = vmax.f32 %v2831, 0.0
      %v2864 = vmax.f32 %v2832, 0.0
      %v2865 = vmax.f32 %v2833, 0.0
      %v2866 = vmax.f32 %v2834, 0.0
      %v2867 = vmax.f32 %v2835, 0.0
      %v2868 = vmax.f32 %v2836, 0.0
      %v2869 = vmax.f32 %v2837, 0.0
      %v2870 = vpack.c.bf16 %v2839, %v2838
      %v2871 = vpack.c.bf16 %v2841, %v2840
      %v2872 = vpack.c.bf16 %v2843, %v2842
      %v2873 = vpack.c.bf16 %v2845, %v2844
      %v2874 = vpack.c.bf16 %v2847, %v2846
      %v2875 = vpack.c.bf16 %v2849, %v2848
      %v2876 = vpack.c.bf16 %v2851, %v2850
      %v2877 = vpack.c.bf16 %v2853, %v2852
      %v2878 = vpack.c.bf16 %v2855, %v2854
      %v2879 = vpack.c.bf16 %v2857, %v2856
      %v2880 = vpack.c.bf16 %v2859, %v2858
      %v2881 = vpack.c.bf16 %v2861, %v2860
      %v2882 = vpack.c.bf16 %v2863, %v2862
      %v2883 = vpack.c.bf16 %v2865, %v2864
      %v2884 = vpack.c.bf16 %v2867, %v2866
      %v2885 = vpack.c.bf16 %v2869, %v2868
      %v2902 = vunpack.c.l.b16 %v2870
      %v2903 = vunpack.c.h.b16 %v2870
      %v2904 = vunpack.c.l.b16 %v2871
      %v2905 = vunpack.c.h.b16 %v2871
      %v2906 = vunpack.c.l.b16 %v2872
      %v2907 = vunpack.c.h.b16 %v2872
      %v2908 = vunpack.c.l.b16 %v2873
      %v2909 = vunpack.c.h.b16 %v2873
      %v2910 = vunpack.c.l.b16 %v2874
      %v2911 = vunpack.c.h.b16 %v2874
      %v2912 = vunpack.c.l.b16 %v2875
      %v2913 = vunpack.c.h.b16 %v2875
      %v2914 = vunpack.c.l.b16 %v2876
      %v2915 = vunpack.c.h.b16 %v2876
      %v2916 = vunpack.c.l.b16 %v2877
      %v2917 = vunpack.c.h.b16 %v2877
      %v2918 = vunpack.c.l.b16 %v2878
      %v2919 = vunpack.c.h.b16 %v2878
      %v2920 = vunpack.c.l.b16 %v2879
      %v2921 = vunpack.c.h.b16 %v2879
      %v2922 = vunpack.c.l.b16 %v2880
      %v2923 = vunpack.c.h.b16 %v2880
      %v2924 = vunpack.c.l.b16 %v2881
      %v2925 = vunpack.c.h.b16 %v2881
      %v2926 = vunpack.c.l.b16 %v2882
      %v2927 = vunpack.c.h.b16 %v2882
      %v2928 = vunpack.c.l.b16 %v2883
      %v2929 = vunpack.c.h.b16 %v2883
      %v2930 = vunpack.c.l.b16 %v2884
      %v2931 = vunpack.c.h.b16 %v2884
      %v2932 = vunpack.c.l.b16 %v2885
      %v2933 = vunpack.c.h.b16 %v2885
      %v2934 = vpack.c.b16 %v2902, %v2902
      %v2935 = vpack.c.b16 %v2903, %v2903
      %v2936 = vpack.c.b16 %v2904, %v2904
      %v2937 = vpack.c.b16 %v2905, %v2905
      %v2938 = vpack.c.b16 %v2906, %v2906
      %v2939 = vpack.c.b16 %v2907, %v2907
      %v2940 = vpack.c.b16 %v2908, %v2908
      %v2941 = vpack.c.b16 %v2909, %v2909
      %v2942 = vpack.c.b16 %v2910, %v2910
      %v2943 = vpack.c.b16 %v2911, %v2911
      %v2944 = vpack.c.b16 %v2912, %v2912
      %v2945 = vpack.c.b16 %v2913, %v2913
      %v2946 = vpack.c.b16 %v2914, %v2914
      %v2947 = vpack.c.b16 %v2915, %v2915
      %v2948 = vpack.c.b16 %v2916, %v2916
      %v2949 = vpack.c.b16 %v2917, %v2917
      %v2950 = vpack.c.b16 %v2918, %v2918
      %v2951 = vpack.c.b16 %v2919, %v2919
      %v2952 = vpack.c.b16 %v2920, %v2920
      %v2953 = vpack.c.b16 %v2921, %v2921
      %v2954 = vpack.c.b16 %v2922, %v2922
      %v2955 = vpack.c.b16 %v2923, %v2923
      %v2956 = vpack.c.b16 %v2924, %v2924
      %v2957 = vpack.c.b16 %v2925, %v2925
      %v2958 = vpack.c.b16 %v2926, %v2926
      %v2959 = vpack.c.b16 %v2927, %v2927
      %v2960 = vpack.c.b16 %v2928, %v2928
      %v2961 = vpack.c.b16 %v2929, %v2929
      %v2962 = vpack.c.b16 %v2930, %v2930
      %v2963 = vpack.c.b16 %v2931, %v2931
      %v2964 = vpack.c.b16 %v2932, %v2932
      %v2965 = vpack.c.b16 %v2933, %v2933
      %2998 = vst [vmem:[%s192] sm:$0xf] %v2934
      %2999 = vst [vmem:[%s192 + $0x4] sm:$0xf] %v2935
      %3000 = vst [vmem:[%s192 + $0x8] sm:$0xf] %v2936
      %3001 = vst [vmem:[%s192 + $0xc] sm:$0xf] %v2937
      %3002 = vst [vmem:[%s192 + $0x10] sm:$0xf] %v2938
      %3003 = vst [vmem:[%s192 + $0x14] sm:$0xf] %v2939
      %3004 = vst [vmem:[%s192 + $0x18] sm:$0xf] %v2940
      %3005 = vst [vmem:[%s192 + $0x1c] sm:$0xf] %v2941
      %3006 = vst [vmem:[%s192 + $0x20] sm:$0xf] %v2942
      %3007 = vst [vmem:[%s192 + $0x24] sm:$0xf] %v2943
      %3008 = vst [vmem:[%s192 + $0x28] sm:$0xf] %v2944
      %3009 = vst [vmem:[%s192 + $0x2c] sm:$0xf] %v2945
      %3010 = vst [vmem:[%s192 + $0x30] sm:$0xf] %v2946
      %3011 = vst [vmem:[%s192 + $0x34] sm:$0xf] %v2947
      %3012 = vst [vmem:[%s192 + $0x38] sm:$0xf] %v2948
      %3013 = vst [vmem:[%s192 + $0x3c] sm:$0xf] %v2949
      %3014 = vst [vmem:[%s192 + $0x40] sm:$0xf] %v2950
      %3015 = vst [vmem:[%s192 + $0x44] sm:$0xf] %v2951
      %3016 = vst [vmem:[%s192 + $0x48] sm:$0xf] %v2952
      %3017 = vst [vmem:[%s192 + $0x4c] sm:$0xf] %v2953
      %3018 = vst [vmem:[%s192 + $0x50] sm:$0xf] %v2954
      %3019 = vst [vmem:[%s192 + $0x54] sm:$0xf] %v2955
      %3020 = vst [vmem:[%s192 + $0x58] sm:$0xf] %v2956
      %3021 = vst [vmem:[%s192 + $0x5c] sm:$0xf] %v2957
      %3022 = vst [vmem:[%s192 + $0x60] sm:$0xf] %v2958
      %3023 = vst [vmem:[%s192 + $0x64] sm:$0xf] %v2959
      %3024 = vst [vmem:[%s192 + $0x68] sm:$0xf] %v2960
      %3025 = vst [vmem:[%s192 + $0x6c] sm:$0xf] %v2961
      %3026 = vst [vmem:[%s192 + $0x70] sm:$0xf] %v2962
      %3027 = vst [vmem:[%s192 + $0x74] sm:$0xf] %v2963
      %3028 = vst [vmem:[%s192 + $0x78] sm:$0xf] %v2964
      %3029 = vst [vmem:[%s192 + $0x7c] sm:$0xf] %v2965
      %s3030 = smul.u32 32, %s19
      %p3031 = scmp.lt.s32.totalorder %s18, 1
      %s3032 = scalar_select %p3031, %s18, 1
      %p3033 = scmp.lt.s32.totalorder %s3030, 127
      %s3034 = scalar_select %p3033, %s3030, 127
      %s3035 = smul.addr %s3032, 128
      %s3036 = sadd.s32 %s3034, %s3035
      %s3037 = smul.addr %s3036, 4
      %s3038 = scalar_lea.vmem %s3, %s3037
      // Predicated region
      $region33: #{faster_rcnn_forward.2} parent=31 // pred_check
        %p3039 = pneg %p114
      $region34: #{faster_rcnn_forward.2} parent=31 // pred_check_branch
        %3041 = sbr.rel (%p3039) target = $region36
      $region35: #{faster_rcnn_forward.2} parent=31 // pred_region
        %s3042 = smul.u32 32, %s19
      $region36: #{faster_rcnn_forward.2} parent=31 // pred_fallthru
        _
    $region32: #{faster_rcnn_forward.2} parent=5 // pred_fallthru
      _
    %p3043 = scmp.le.s32.totalorder 2, %s9
    // Predicated region
    $region37: #{faster_rcnn_forward.2} parent=5 // pred_check
      %p3044 = pneg %p3043
    $region38: #{faster_rcnn_forward.2} parent=5 // pred_check_branch
      %3046 = sbr.rel (%p3044) target = $region40
    $region39: #{faster_rcnn_forward.2} parent=5 // pred_region
      %s3047 = ssub.s32 %s9, 2
      // Predicated region
      $region41: #{faster_rcnn_forward.2} parent=39 // pred_check
        %p3048 = pneg %p120
      $region42: #{faster_rcnn_forward.2} parent=39 // pred_check_branch
        %3050 = sbr.rel (%p3048) target = $region44
      $region43: #{faster_rcnn_forward.2} parent=39 // pred_region
        %s3051 = smul.u32 32, %s21
        %p3052 = scmp.lt.s32.totalorder %s20, 1
        %s3053 = scalar_select %p3052, %s20, 1
        %p3054 = scmp.lt.s32.totalorder %s3051, 127
        %s3055 = scalar_select %p3054, %s3051, 127
        %s3056 = smul.addr %s3053, 128
        %s3057 = sadd.s32 %s3055, %s3056
        %s3058 = smul.addr %s3057, 4
        %s3059 = scalar_lea.vmem %s3, %s3058
      $region44: #{faster_rcnn_forward.2} parent=39 // pred_fallthru
        _
    $region40: #{faster_rcnn_forward.2} parent=5 // pred_fallthru
      _
  $region6: #{faster_rcnn_forward.2} parent=0 // loop_footer
    %s13 = sadd.s32 1, %s9
  $region7: #{faster_rcnn_forward.2} parent=0 // loop_footer_branch
    %8 = sbr.rel target = $region3
  $region8: #{faster_rcnn_forward.2} parent=0 // loop_exit
    _

// kernel: faster_rcnn_forward.3
$region0: #{faster_rcnn_forward.3}
  #allocation0 [shape = 'u32[]', space=smem, size = 0x4, offset = 0x4, fixed_abs, tag = 'smem constant byte address 0x4 - core index']
  #allocation1 [shape = 'u32[144,128]{1,0:T(1,128)}', space=vmem, size = 0x12000, scoped, tag = 'internal scratch']
  #allocation2 [shape = 'f32[8,128]{1,0:T(8,128)}', space=vmem, size = 0x1000, scoped, tag = 'scratch operand']
  %s0 = inlined_call_operand.vmem [shape: bf16[8,6272], index: 0, kind: input, shape index: {}]
  %s1 = inlined_call_operand.vmem [shape: bf16[6272,128], index: 1, kind: input, shape index: {}]
  %s2 = inlined_call_operand.vmem [shape: f32[1,128], index: 2, kind: input, shape index: {}]
  %s3 = inlined_call_operand.vmem [shape: bf16[128,128], index: 3, kind: input, shape index: {}]
  %s4 = inlined_call_operand.vmem [shape: f32[1,128], index: 4, kind: input, shape index: {}]
  %s5 = inlined_call_operand.vmem [shape: bf16[128,128], index: 5, kind: input, shape index: {}]
  %s6 = inlined_call_operand.vmem [shape: f32[1,128], index: 6, kind: input, shape index: {}]
  %s7 = inlined_call_operand.vmem [shape: f32[8,128], index: 7, kind: output, shape index: {}]
  %s8 = sld [smem:[#allocation0]]
  $region69: #{faster_rcnn_forward.3} parent=0
    _
  %s10 = ssub.s32 1, %s8
  %s11 = scalar_select 0, %s10, %s8
  loop: start=0, step=1, limit=9
  $region2: #{faster_rcnn_forward.3} parent=0 // loop_pre_header
    _
  $region3: #{faster_rcnn_forward.3} parent=0 // loop_header
    %s13 = sphi 0, %s17
    %p14 = scmp.ge.s32.totalorder %s13, 9
    %s20 = sphi 0, %s32
    %s21 = sphi 0, %s28
    %s22 = sphi 0, %s20
    %s23 = sphi 0, %s21
    %s24 = sphi 0, %s22
    %s25 = sphi 0, %s23
    %s37 = sphi 0, %s39
    %s40 = sphi 0, %s37
    %s41 = sphi 0, %s40
    %s57 = sphi 0, %s41
    %s63 = sphi 0, %s65
    %s66 = sphi 0, %s63
    %s67 = sphi 0, %s66
    %s83 = sphi 0, %s67
    %s87 = sphi 0, %s87
    %s89 = sphi 0, %s87
    %s90 = sphi 0, %s89
    %s104 = sphi 0, %s90
    %s108 = sphi 0, %s108
    %s110 = sphi 0, %s108
    %s111 = sphi 0, %s110
    %s125 = sphi 0, %s111
    %s129 = sphi 0, %s129
    %s131 = sphi 0, %s129
    %s132 = sphi 0, %s131
    %s146 = sphi 0, %s132
    %s150 = sphi 0, %s150
    %s152 = sphi 0, %s150
    %s153 = sphi 0, %s152
    %s167 = sphi 0, %s153
    %s171 = sphi 0, %s171
    %s173 = sphi 0, %s171
    %s174 = sphi 0, %s173
    %s188 = sphi 0, %s174
    %s194 = sphi 0, %s196
    %s197 = sphi 0, %s194
    %s198 = sphi 0, %s197
    %s214 = sphi 0, %s198
  $region4: #{faster_rcnn_forward.3} parent=0 // loop_header_branch
    %16 = sbr.rel (%p14) target = $region8
  $region5: #{faster_rcnn_forward.3} parent=0 // loop_body
    %s18 = ssub.s32 %s13, 1
    %s19 = ssub.s32 %s13, 2
    %s26 = sadd.s32 1, %s21
    %p27 = scmp.ge.s32.totalorder %s26, 7
    %s28 = scalar_select %p27, 0, %s26
    %s29 = sadd.s32 1, %s20
    %s30 = scalar_select %p27, %s29, %s20
    %p31 = scmp.ge.s32.totalorder %s30, 1
    %s32 = scalar_select %p31, 0, %s30
    %s33 = ssub.s32 %s20, %s32
    %s34 = ssub.s32 %s21, %s28
    %s35 = sor.u32 %s33, %s34
    %p36 = scmp.eq.s32.totalorder %s35, 0
    %s38 = sadd.s32 %s37, 1
    %s39 = scalar_select %p36, %s37, %s38
    %p42 = pneg %p36
    %p43 = scmp.eq.s32.totalorder %s13, 6
    %p44 = por %p42, %p43
    %p45 = scmp.ne.s32.totalorder %s37, %s40
    %p46 = scmp.eq.s32.totalorder %s13, 0
    %p47 = por %p45, %p46
    %p48 = scmp.ne.s32.totalorder %s37, %s40
    %p49 = scmp.eq.s32.totalorder %s18, 6
    %p50 = por %p48, %p49
    %p51 = scmp.ne.s32.totalorder %s40, %s41
    %p52 = scmp.eq.s32.totalorder %s18, 0
    %p53 = por %p51, %p52
    %p54 = scmp.ne.s32.totalorder %s40, %s41
    %p55 = scmp.eq.s32.totalorder %s19, 6
    %p56 = por %p54, %p55
    %p58 = scmp.ne.s32.totalorder %s41, %s57
    %p59 = scmp.eq.s32.totalorder %s19, 0
    %p60 = por %p58, %p59
    %s61 = ssub.s32 %s21, %s28
    %p62 = scmp.eq.s32.totalorder %s61, 0
    %s64 = sadd.s32 %s63, 1
    %s65 = scalar_select %p62, %s63, %s64
    %p68 = pneg %p62
    %p69 = scmp.eq.s32.totalorder %s13, 6
    %p70 = por %p68, %p69
    %p71 = scmp.ne.s32.totalorder %s63, %s66
    %p72 = scmp.eq.s32.totalorder %s13, 0
    %p73 = por %p71, %p72
    %p74 = scmp.ne.s32.totalorder %s63, %s66
    %p75 = scmp.eq.s32.totalorder %s18, 6
    %p76 = por %p74, %p75
    %p77 = scmp.ne.s32.totalorder %s66, %s67
    %p78 = scmp.eq.s32.totalorder %s18, 0
    %p79 = por %p77, %p78
    %p80 = scmp.ne.s32.totalorder %s66, %s67
    %p81 = scmp.eq.s32.totalorder %s19, 6
    %p82 = por %p80, %p81
    %p84 = scmp.ne.s32.totalorder %s67, %s83
    %p85 = scmp.eq.s32.totalorder %s19, 0
    %p86 = por %p84, %p85
    %s88 = sadd.s32 %s87, 1
    %p91 = scmp.eq.s32.totalorder %s13, 6
    %p92 = scmp.ne.s32.totalorder %s87, %s89
    %p93 = scmp.eq.s32.totalorder %s13, 0
    %p94 = por %p92, %p93
    %p95 = scmp.ne.s32.totalorder %s87, %s89
    %p96 = scmp.eq.s32.totalorder %s18, 6
    %p97 = por %p95, %p96
    %p98 = scmp.ne.s32.totalorder %s89, %s90
    %p99 = scmp.eq.s32.totalorder %s18, 0
    %p100 = por %p98, %p99
    %p101 = scmp.ne.s32.totalorder %s89, %s90
    %p102 = scmp.eq.s32.totalorder %s19, 6
    %p103 = por %p101, %p102
    %p105 = scmp.ne.s32.totalorder %s90, %s104
    %p106 = scmp.eq.s32.totalorder %s19, 0
    %p107 = por %p105, %p106
    %s109 = sadd.s32 %s108, 1
    %p112 = scmp.eq.s32.totalorder %s13, 6
    %p113 = scmp.ne.s32.totalorder %s108, %s110
    %p114 = scmp.eq.s32.totalorder %s13, 0
    %p115 = por %p113, %p114
    %p116 = scmp.ne.s32.totalorder %s108, %s110
    %p117 = scmp.eq.s32.totalorder %s18, 6
    %p118 = por %p116, %p117
    %p119 = scmp.ne.s32.totalorder %s110, %s111
    %p120 = scmp.eq.s32.totalorder %s18, 0
    %p121 = por %p119, %p120
    %p122 = scmp.ne.s32.totalorder %s110, %s111
    %p123 = scmp.eq.s32.totalorder %s19, 6
    %p124 = por %p122, %p123
    %p126 = scmp.ne.s32.totalorder %s111, %s125
    %p127 = scmp.eq.s32.totalorder %s19, 0
    %p128 = por %p126, %p127
    %s130 = sadd.s32 %s129, 1
    %p133 = scmp.eq.s32.totalorder %s13, 6
    %p134 = scmp.ne.s32.totalorder %s129, %s131
    %p135 = scmp.eq.s32.totalorder %s13, 0
    %p136 = por %p134, %p135
    %p137 = scmp.ne.s32.totalorder %s129, %s131
    %p138 = scmp.eq.s32.totalorder %s18, 6
    %p139 = por %p137, %p138
    %p140 = scmp.ne.s32.totalorder %s131, %s132
    %p141 = scmp.eq.s32.totalorder %s18, 0
    %p142 = por %p140, %p141
    %p143 = scmp.ne.s32.totalorder %s131, %s132
    %p144 = scmp.eq.s32.totalorder %s19, 6
    %p145 = por %p143, %p144
    %p147 = scmp.ne.s32.totalorder %s132, %s146
    %p148 = scmp.eq.s32.totalorder %s19, 0
    %p149 = por %p147, %p148
    %s151 = sadd.s32 %s150, 1
    %p154 = scmp.eq.s32.totalorder %s13, 6
    %p155 = scmp.ne.s32.totalorder %s150, %s152
    %p156 = scmp.eq.s32.totalorder %s13, 0
    %p157 = por %p155, %p156
    %p158 = scmp.ne.s32.totalorder %s150, %s152
    %p159 = scmp.eq.s32.totalorder %s18, 6
    %p160 = por %p158, %p159
    %p161 = scmp.ne.s32.totalorder %s152, %s153
    %p162 = scmp.eq.s32.totalorder %s18, 0
    %p163 = por %p161, %p162
    %p164 = scmp.ne.s32.totalorder %s152, %s153
    %p165 = scmp.eq.s32.totalorder %s19, 6
    %p166 = por %p164, %p165
    %p168 = scmp.ne.s32.totalorder %s153, %s167
    %p169 = scmp.eq.s32.totalorder %s19, 0
    %p170 = por %p168, %p169
    %s172 = sadd.s32 %s171, 1
    %p175 = scmp.eq.s32.totalorder %s13, 6
    %p176 = scmp.ne.s32.totalorder %s171, %s173
    %p177 = scmp.eq.s32.totalorder %s13, 0
    %p178 = por %p176, %p177
    %p179 = scmp.ne.s32.totalorder %s171, %s173
    %p180 = scmp.eq.s32.totalorder %s18, 6
    %p181 = por %p179, %p180
    %p182 = scmp.ne.s32.totalorder %s173, %s174
    %p183 = scmp.eq.s32.totalorder %s18, 0
    %p184 = por %p182, %p183
    %p185 = scmp.ne.s32.totalorder %s173, %s174
    %p186 = scmp.eq.s32.totalorder %s19, 6
    %p187 = por %p185, %p186
    %p189 = scmp.ne.s32.totalorder %s174, %s188
    %p190 = scmp.eq.s32.totalorder %s19, 0
    %p191 = por %p189, %p190
    %s192 = ssub.s32 %s20, %s32
    %p193 = scmp.eq.s32.totalorder %s192, 0
    %s195 = sadd.s32 %s194, 1
    %s196 = scalar_select %p193, %s194, %s195
    %p199 = pneg %p193
    %p200 = scmp.eq.s32.totalorder %s13, 6
    %p201 = por %p199, %p200
    %p202 = scmp.ne.s32.totalorder %s194, %s197
    %p203 = scmp.eq.s32.totalorder %s13, 0
    %p204 = por %p202, %p203
    %p205 = scmp.ne.s32.totalorder %s194, %s197
    %p206 = scmp.eq.s32.totalorder %s18, 6
    %p207 = por %p205, %p206
    %p208 = scmp.ne.s32.totalorder %s197, %s198
    %p209 = scmp.eq.s32.totalorder %s18, 0
    %p210 = por %p208, %p209
    %p211 = scmp.ne.s32.totalorder %s197, %s198
    %p212 = scmp.eq.s32.totalorder %s19, 6
    %p213 = por %p211, %p212
    %p215 = scmp.ne.s32.totalorder %s198, %s214
    %p216 = scmp.eq.s32.totalorder %s19, 0
    %p217 = por %p215, %p216
    %p218 = scmp.le.s32.totalorder 1, %s13
    %p219 = scmp.lt.s32.totalorder %s13, 8
    %p220 = pnand %p218, %p219
    %p221 = pneg %p220
    // Predicated region
    $region9: #{faster_rcnn_forward.3} parent=5 // pred_check
      _
    $region10: #{faster_rcnn_forward.3} parent=5 // pred_check_branch
      %223 = sbr.rel (%p220) target = $region12
    $region11: #{faster_rcnn_forward.3} parent=5 // pred_region
      %s224 = ssub.s32 %s13, 1
      // Predicated region
      $region13: #{faster_rcnn_forward.3} parent=11 // pred_check
        %p225 = pneg %p100
      $region14: #{faster_rcnn_forward.3} parent=11 // pred_check_branch
        %227 = sbr.rel (%p225) target = $region16
      $region15: #{faster_rcnn_forward.3} parent=11 // pred_region
        _
      $region16: #{faster_rcnn_forward.3} parent=11 // pred_fallthru
        _
      // Predicated region
      $region17: #{faster_rcnn_forward.3} parent=11 // pred_check
        %p228 = pneg %p121
      $region18: #{faster_rcnn_forward.3} parent=11 // pred_check_branch
        %230 = sbr.rel (%p228) target = $region20
      $region19: #{faster_rcnn_forward.3} parent=11 // pred_region
        _
      $region20: #{faster_rcnn_forward.3} parent=11 // pred_fallthru
        _
      // Predicated region
      $region21: #{faster_rcnn_forward.3} parent=11 // pred_check
        %p231 = pneg %p142
      $region22: #{faster_rcnn_forward.3} parent=11 // pred_check_branch
        %233 = sbr.rel (%p231) target = $region24
      $region23: #{faster_rcnn_forward.3} parent=11 // pred_region
        _
      $region24: #{faster_rcnn_forward.3} parent=11 // pred_fallthru
        _
      // Predicated region
      $region25: #{faster_rcnn_forward.3} parent=11 // pred_check
        %p234 = pneg %p163
      $region26: #{faster_rcnn_forward.3} parent=11 // pred_check_branch
        %236 = sbr.rel (%p234) target = $region28
      $region27: #{faster_rcnn_forward.3} parent=11 // pred_region
        _
      $region28: #{faster_rcnn_forward.3} parent=11 // pred_fallthru
        _
      // Predicated region
      $region29: #{faster_rcnn_forward.3} parent=11 // pred_check
        %p237 = pneg %p184
      $region30: #{faster_rcnn_forward.3} parent=11 // pred_check_branch
        %239 = sbr.rel (%p237) target = $region32
      $region31: #{faster_rcnn_forward.3} parent=11 // pred_region
        _
      $region32: #{faster_rcnn_forward.3} parent=11 // pred_fallthru
        _
    $region12: #{faster_rcnn_forward.3} parent=5 // pred_fallthru
      _
    %p240 = scmp.lt.s32.totalorder %s13, 7
    // Predicated region
    $region33: #{faster_rcnn_forward.3} parent=5 // pred_check
      %p241 = pneg %p240
    $region34: #{faster_rcnn_forward.3} parent=5 // pred_check_branch
      %243 = sbr.rel (%p241) target = $region36
    $region35: #{faster_rcnn_forward.3} parent=5 // pred_region
      // Predicated region
      $region37: #{faster_rcnn_forward.3} parent=35 // pred_check
        %p244 = pneg %p47
      $region38: #{faster_rcnn_forward.3} parent=35 // pred_check_branch
        %246 = sbr.rel (%p244) target = $region40
      $region39: #{faster_rcnn_forward.3} parent=35 // pred_region
        %s247 = smul.u32 7, %s21
        %p248 = scmp.lt.s32.totalorder %s20, 0
        %s249 = scalar_select %p248, %s20, 0
        %p250 = scmp.lt.s32.totalorder %s247, 48
        %s251 = scalar_select %p250, %s247, 48
        %s252 = smul.addr %s249, 49
        %s253 = sadd.s32 %s251, %s252
        %s254 = smul.addr %s253, 4
        %s255 = scalar_lea.vmem %s0, %s254
        %s256 = smul.u32 7, %s21
      $region40: #{faster_rcnn_forward.3} parent=35 // pred_fallthru
        _
      // Predicated region
      $region41: #{faster_rcnn_forward.3} parent=35 // pred_check
        %p257 = pneg %p73
      $region42: #{faster_rcnn_forward.3} parent=35 // pred_check_branch
        %259 = sbr.rel (%p257) target = $region44
      $region43: #{faster_rcnn_forward.3} parent=35 // pred_region
        %s260 = smul.u32 112, %s21
        %p261 = scmp.lt.s32.totalorder %s260, 783
        %s262 = scalar_select %p261, %s260, 783
        %s263 = smul.addr %s262, 4
        %s264 = scalar_lea.vmem %s1, %s263
        %s265 = smul.u32 112, %s21
      $region44: #{faster_rcnn_forward.3} parent=35 // pred_fallthru
        _
    $region36: #{faster_rcnn_forward.3} parent=5 // pred_fallthru
      _
    %p266 = scmp.le.s32.totalorder 1, %s13
    %p267 = scmp.lt.s32.totalorder %s13, 8
    %p268 = pnand %p266, %p267
    %p269 = pneg %p268
    // Predicated region
    $region45: #{faster_rcnn_forward.3} parent=5 // pred_check
      _
    $region46: #{faster_rcnn_forward.3} parent=5 // pred_check_branch
      %271 = sbr.rel (%p268) target = $region48
    $region47: #{faster_rcnn_forward.3} parent=5 // pred_region
      %s272 = ssub.s32 %s13, 1
      %s273 = smul.u32 7, %s23
      %p274 = scmp.lt.s32.totalorder %s22, 0
      %s275 = scalar_select %p274, %s22, 0
      %p276 = scmp.lt.s32.totalorder %s273, 48
      %s277 = scalar_select %p276, %s273, 48
      %s278 = smul.addr %s275, 49
      %s279 = sadd.s32 %s277, %s278
      %s280 = smul.addr %s279, 4
      %s281 = scalar_lea.vmem %s0, %s280
      %p282 = pneg %p53
      %p283 = pneg %p50
      %s284 = smul.u32 112, %s23
      %p285 = scmp.lt.s32.totalorder %s284, 783
      %s286 = scalar_select %p285, %s284, 783
      %s287 = smul.addr %s286, 4
      %s288 = scalar_lea.vmem %s1, %s287
      %p289 = pneg %p79
      %p290 = pneg %p76
      %p291 = pneg %p100
      %p292 = pneg %p97
      %p293 = pneg %p121
      %p294 = pneg %p118
      %p295 = pneg %p142
      %p296 = pneg %p139
      %p297 = pneg %p163
      %p298 = pneg %p160
      %p299 = pneg %p184
      %p300 = pneg %p181
      %p301 = pneg %p210
      %p302 = pneg %p207
      %p303 = scmp.lt.s32.totalorder %s22, 0
      %s304 = scalar_select %p303, %s22, 0
      %s305 = smul.addr %s304, 8
      %s306 = scalar_lea.vmem %s7, %s305
      %s307 = smul.u32 7, %s23
      %p308 = scmp.lt.s32.totalorder %s22, 0
      %s309 = scalar_select %p308, %s22, 0
      %p310 = scmp.lt.s32.totalorder %s307, 48
      %s311 = scalar_select %p310, %s307, 48
      %s312 = smul.addr %s309, 49
      %s313 = sadd.s32 %s311, %s312
      %s314 = smul.addr %s313, 4
      %s315 = scalar_lea.vmem %s0, %s314
      %s316 = smul.u32 7, %s23
      %s317 = smul.u32 112, %s23
      %p318 = scmp.lt.s32.totalorder %s317, 783
      %s319 = scalar_select %p318, %s317, 783
      %s320 = smul.addr %s319, 4
      %s321 = scalar_lea.vmem %s1, %s320
      %s322 = smul.u32 112, %s23
      %p323 = scmp.lt.s32.totalorder %s22, 0
      %s324 = scalar_select %p323, %s22, 0
      %s325 = smul.addr %s324, 8
      %s326 = scalar_lea.vmem %s7, %s325
      %p328 = scmp.eq.s32.totalorder %s23, 0
      // Predicated region
      $region49: #{faster_rcnn_forward.3} parent=47 // pred_check
        %p329 = pneg %p328
      $region50: #{faster_rcnn_forward.3} parent=47 // pred_check_branch
        %331 = sbr.rel (%p329) target = $region52
      $region51: #{faster_rcnn_forward.3} parent=47 // pred_region
        %332 = vst [vmem:[#allocation2] sm:$0xff] 0.0
      $region52: #{faster_rcnn_forward.3} parent=47 // pred_fallthru
        _
      %v333 = vld [vmem:[#allocation2] sm:$0xff]
      %v334 = vld [vmem:[%s315] sm:$0xff]
      %v335 = vld [vmem:[%s315 + $0x8] sm:$0xff]
      %v336 = vld [vmem:[%s315 + $0x10] sm:$0xff]
      %v337 = vld [vmem:[%s315 + $0x18] sm:$0xf]
      %v338 = vld [vmem:[%s321] sm:$0xf]
      %v339 = vld [vmem:[%s321 + $0x4] sm:$0xf]
      %v340 = vld [vmem:[%s321 + $0x8] sm:$0xf]
      %v341 = vld [vmem:[%s321 + $0xc] sm:$0xf]
      %v342 = vld [vmem:[%s321 + $0x10] sm:$0xf]
      %v343 = vld [vmem:[%s321 + $0x14] sm:$0xf]
      %v344 = vld [vmem:[%s321 + $0x18] sm:$0xf]
      %v345 = vld [vmem:[%s321 + $0x1c] sm:$0xf]
      %v346 = vld [vmem:[%s321 + $0x20] sm:$0xf]
      %v347 = vld [vmem:[%s321 + $0x24] sm:$0xf]
      %v348 = vld [vmem:[%s321 + $0x28] sm:$0xf]
      %v349 = vld [vmem:[%s321 + $0x2c] sm:$0xf]
      %v350 = vld [vmem:[%s321 + $0x30] sm:$0xf]
      %v351 = vld [vmem:[%s321 + $0x34] sm:$0xf]
      %v352 = vld [vmem:[%s321 + $0x38] sm:$0xf]
      %v353 = vld [vmem:[%s321 + $0x3c] sm:$0xf]
      %v354 = vld [vmem:[%s321 + $0x40] sm:$0xf]
      %v355 = vld [vmem:[%s321 + $0x44] sm:$0xf]
      %v356 = vld [vmem:[%s321 + $0x48] sm:$0xf]
      %v357 = vld [vmem:[%s321 + $0x4c] sm:$0xf]
      %v358 = vld [vmem:[%s321 + $0x50] sm:$0xf]
      %v359 = vld [vmem:[%s321 + $0x54] sm:$0xf]
      %v360 = vld [vmem:[%s321 + $0x58] sm:$0xf]
      %v361 = vld [vmem:[%s321 + $0x5c] sm:$0xf]
      %v362 = vld [vmem:[%s321 + $0x60] sm:$0xf]
      %v363 = vld [vmem:[%s321 + $0x64] sm:$0xf]
      %v364 = vld [vmem:[%s321 + $0x68] sm:$0xf]
      %v365 = vld [vmem:[%s321 + $0x6c] sm:$0xf]
      %v366 = vld [vmem:[%s321 + $0x70] sm:$0xf]
      %v367 = vld [vmem:[%s321 + $0x74] sm:$0xf]
      %v368 = vld [vmem:[%s321 + $0x78] sm:$0xf]
      %v369 = vld [vmem:[%s321 + $0x7c] sm:$0xf]
      %v370 = vld [vmem:[%s321 + $0x80] sm:$0xf]
      %v371 = vld [vmem:[%s321 + $0x84] sm:$0xf]
      %v372 = vld [vmem:[%s321 + $0x88] sm:$0xf]
      %v373 = vld [vmem:[%s321 + $0x8c] sm:$0xf]
      %v374 = vld [vmem:[%s321 + $0x90] sm:$0xf]
      %v375 = vld [vmem:[%s321 + $0x94] sm:$0xf]
      %v376 = vld [vmem:[%s321 + $0x98] sm:$0xf]
      %v377 = vld [vmem:[%s321 + $0x9c] sm:$0xf]
      %v378 = vld [vmem:[%s321 + $0xa0] sm:$0xf]
      %v379 = vld [vmem:[%s321 + $0xa4] sm:$0xf]
      %v380 = vld [vmem:[%s321 + $0xa8] sm:$0xf]
      %v381 = vld [vmem:[%s321 + $0xac] sm:$0xf]
      %v382 = vld [vmem:[%s321 + $0xb0] sm:$0xf]
      %v383 = vld [vmem:[%s321 + $0xb4] sm:$0xf]
      %v384 = vld [vmem:[%s321 + $0xb8] sm:$0xf]
      %v385 = vld [vmem:[%s321 + $0xbc] sm:$0xf]
      %v386 = vld [vmem:[%s321 + $0xc0] sm:$0xf]
      %v387 = vld [vmem:[%s321 + $0xc4] sm:$0xf]
      %v388 = vld [vmem:[%s321 + $0xc8] sm:$0xf]
      %v389 = vld [vmem:[%s321 + $0xcc] sm:$0xf]
      %v390 = vld [vmem:[%s321 + $0xd0] sm:$0xf]
      %v391 = vld [vmem:[%s321 + $0xd4] sm:$0xf]
      %v392 = vld [vmem:[%s321 + $0xd8] sm:$0xf]
      %v393 = vld [vmem:[%s321 + $0xdc] sm:$0xf]
      %v394 = vld [vmem:[%s321 + $0xe0] sm:$0xf]
      %v395 = vld [vmem:[%s321 + $0xe4] sm:$0xf]
      %v396 = vld [vmem:[%s321 + $0xe8] sm:$0xf]
      %v397 = vld [vmem:[%s321 + $0xec] sm:$0xf]
      %v398 = vld [vmem:[%s321 + $0xf0] sm:$0xf]
      %v399 = vld [vmem:[%s321 + $0xf4] sm:$0xf]
      %v400 = vld [vmem:[%s321 + $0xf8] sm:$0xf]
      %v401 = vld [vmem:[%s321 + $0xfc] sm:$0xf]
      %v402 = vld [vmem:[%s321 + $0x100] sm:$0xf]
      %v403 = vld [vmem:[%s321 + $0x104] sm:$0xf]
      %v404 = vld [vmem:[%s321 + $0x108] sm:$0xf]
      %v405 = vld [vmem:[%s321 + $0x10c] sm:$0xf]
      %v406 = vld [vmem:[%s321 + $0x110] sm:$0xf]
      %v407 = vld [vmem:[%s321 + $0x114] sm:$0xf]
      %v408 = vld [vmem:[%s321 + $0x118] sm:$0xf]
      %v409 = vld [vmem:[%s321 + $0x11c] sm:$0xf]
      %v410 = vld [vmem:[%s321 + $0x120] sm:$0xf]
      %v411 = vld [vmem:[%s321 + $0x124] sm:$0xf]
      %v412 = vld [vmem:[%s321 + $0x128] sm:$0xf]
      %v413 = vld [vmem:[%s321 + $0x12c] sm:$0xf]
      %v414 = vld [vmem:[%s321 + $0x130] sm:$0xf]
      %v415 = vld [vmem:[%s321 + $0x134] sm:$0xf]
      %v416 = vld [vmem:[%s321 + $0x138] sm:$0xf]
      %v417 = vld [vmem:[%s321 + $0x13c] sm:$0xf]
      %v418 = vld [vmem:[%s321 + $0x140] sm:$0xf]
      %v419 = vld [vmem:[%s321 + $0x144] sm:$0xf]
      %v420 = vld [vmem:[%s321 + $0x148] sm:$0xf]
      %v421 = vld [vmem:[%s321 + $0x14c] sm:$0xf]
      %v422 = vld [vmem:[%s321 + $0x150] sm:$0xf]
      %v423 = vld [vmem:[%s321 + $0x154] sm:$0xf]
      %v424 = vld [vmem:[%s321 + $0x158] sm:$0xf]
      %v425 = vld [vmem:[%s321 + $0x15c] sm:$0xf]
      %v426 = vld [vmem:[%s321 + $0x160] sm:$0xf]
      %v427 = vld [vmem:[%s321 + $0x164] sm:$0xf]
      %v428 = vld [vmem:[%s321 + $0x168] sm:$0xf]
      %v429 = vld [vmem:[%s321 + $0x16c] sm:$0xf]
      %v430 = vld [vmem:[%s321 + $0x170] sm:$0xf]
      %v431 = vld [vmem:[%s321 + $0x174] sm:$0xf]
      %v432 = vld [vmem:[%s321 + $0x178] sm:$0xf]
      %v433 = vld [vmem:[%s321 + $0x17c] sm:$0xf]
      %v434 = vld [vmem:[%s321 + $0x180] sm:$0xf]
      %v435 = vld [vmem:[%s321 + $0x184] sm:$0xf]
      %v436 = vld [vmem:[%s321 + $0x188] sm:$0xf]
      %v437 = vld [vmem:[%s321 + $0x18c] sm:$0xf]
      %v438 = vld [vmem:[%s321 + $0x190] sm:$0xf]
      %v439 = vld [vmem:[%s321 + $0x194] sm:$0xf]
      %v440 = vld [vmem:[%s321 + $0x198] sm:$0xf]
      %v441 = vld [vmem:[%s321 + $0x19c] sm:$0xf]
      %v442 = vld [vmem:[%s321 + $0x1a0] sm:$0xf]
      %v443 = vld [vmem:[%s321 + $0x1a4] sm:$0xf]
      %v444 = vld [vmem:[%s321 + $0x1a8] sm:$0xf]
      %v445 = vld [vmem:[%s321 + $0x1ac] sm:$0xf]
      %v446 = vld [vmem:[%s321 + $0x1b0] sm:$0xf]
      %v447 = vld [vmem:[%s321 + $0x1b4] sm:$0xf]
      %v448 = vld [vmem:[%s321 + $0x1b8] sm:$0xf]
      %v449 = vld [vmem:[%s321 + $0x1bc] sm:$0xf]
      %v454 = vunpack.c.l.b16 %v334
      %v455 = vunpack.c.h.b16 %v334
      %v456 = vunpack.c.l.b16 %v335
      %v457 = vunpack.c.h.b16 %v335
      %v458 = vunpack.c.l.b16 %v336
      %v459 = vunpack.c.h.b16 %v336
      %v460 = vunpack.c.l.b16 %v337
      %v461 = vpack.c.b16 %v454, %v454
      %v462 = vpack.c.b16 %v455, %v455
      %v463 = vpack.c.b16 %v456, %v456
      %v464 = vpack.c.b16 %v457, %v457
      %v465 = vpack.c.b16 %v458, %v458
      %v466 = vpack.c.b16 %v459, %v459
      %v467 = vpack.c.b16 %v460, %v460
      %v587 = vunpack.c.l.b16 %v338
      %v588 = vunpack.c.l.b16 %v339
      %v589 = vunpack.c.l.b16 %v340
      %v590 = vunpack.c.l.b16 %v341
      %v591 = vunpack.c.l.b16 %v342
      %v592 = vunpack.c.l.b16 %v343
      %v593 = vunpack.c.l.b16 %v344
      %v594 = vunpack.c.l.b16 %v345
      %v595 = vunpack.c.l.b16 %v346
      %v596 = vunpack.c.l.b16 %v347
      %v597 = vunpack.c.l.b16 %v348
      %v598 = vunpack.c.l.b16 %v349
      %v599 = vunpack.c.l.b16 %v350
      %v600 = vunpack.c.l.b16 %v351
      %v601 = vunpack.c.l.b16 %v352
      %v602 = vunpack.c.l.b16 %v353
      %v603 = vunpack.c.l.b16 %v354
      %v604 = vunpack.c.l.b16 %v355
      %v605 = vunpack.c.l.b16 %v356
      %v606 = vunpack.c.l.b16 %v357
      %v607 = vunpack.c.l.b16 %v358
      %v608 = vunpack.c.l.b16 %v359
      %v609 = vunpack.c.l.b16 %v360
      %v610 = vunpack.c.l.b16 %v361
      %v611 = vunpack.c.l.b16 %v362
      %v612 = vunpack.c.l.b16 %v363
      %v613 = vunpack.c.l.b16 %v364
      %v614 = vunpack.c.l.b16 %v365
      %v615 = vunpack.c.l.b16 %v366
      %v616 = vunpack.c.l.b16 %v367
      %v617 = vunpack.c.l.b16 %v368
      %v618 = vunpack.c.l.b16 %v369
      %v619 = vunpack.c.l.b16 %v370
      %v620 = vunpack.c.l.b16 %v371
      %v621 = vunpack.c.l.b16 %v372
      %v622 = vunpack.c.l.b16 %v373
      %v623 = vunpack.c.l.b16 %v374
      %v624 = vunpack.c.l.b16 %v375
      %v625 = vunpack.c.l.b16 %v376
      %v626 = vunpack.c.l.b16 %v377
      %v627 = vunpack.c.l.b16 %v378
      %v628 = vunpack.c.l.b16 %v379
      %v629 = vunpack.c.l.b16 %v380
      %v630 = vunpack.c.l.b16 %v381
      %v631 = vunpack.c.l.b16 %v382
      %v632 = vunpack.c.l.b16 %v383
      %v633 = vunpack.c.l.b16 %v384
      %v634 = vunpack.c.l.b16 %v385
      %v635 = vunpack.c.l.b16 %v386
      %v636 = vunpack.c.l.b16 %v387
      %v637 = vunpack.c.l.b16 %v388
      %v638 = vunpack.c.l.b16 %v389
      %v639 = vunpack.c.l.b16 %v390
      %v640 = vunpack.c.l.b16 %v391
      %v641 = vunpack.c.l.b16 %v392
      %v642 = vunpack.c.l.b16 %v393
      %v643 = vunpack.c.l.b16 %v394
      %v644 = vunpack.c.l.b16 %v395
      %v645 = vunpack.c.l.b16 %v396
      %v646 = vunpack.c.l.b16 %v397
      %v647 = vunpack.c.l.b16 %v398
      %v648 = vunpack.c.l.b16 %v399
      %v649 = vunpack.c.l.b16 %v400
      %v650 = vunpack.c.l.b16 %v401
      %v651 = vunpack.c.l.b16 %v402
      %v652 = vunpack.c.l.b16 %v403
      %v653 = vunpack.c.l.b16 %v404
      %v654 = vunpack.c.l.b16 %v405
      %v655 = vunpack.c.l.b16 %v406
      %v656 = vunpack.c.l.b16 %v407
      %v657 = vunpack.c.l.b16 %v408
      %v658 = vunpack.c.l.b16 %v409
      %v659 = vunpack.c.l.b16 %v410
      %v660 = vunpack.c.l.b16 %v411
      %v661 = vunpack.c.l.b16 %v412
      %v662 = vunpack.c.l.b16 %v413
      %v663 = vunpack.c.l.b16 %v414
      %v664 = vunpack.c.l.b16 %v415
      %v665 = vunpack.c.l.b16 %v416
      %v666 = vunpack.c.l.b16 %v417
      %v667 = vunpack.c.l.b16 %v418
      %v668 = vunpack.c.l.b16 %v419
      %v669 = vunpack.c.l.b16 %v420
      %v670 = vunpack.c.l.b16 %v421
      %v671 = vunpack.c.l.b16 %v422
      %v672 = vunpack.c.l.b16 %v423
      %v673 = vunpack.c.l.b16 %v424
      %v674 = vunpack.c.l.b16 %v425
      %v675 = vunpack.c.l.b16 %v426
      %v676 = vunpack.c.l.b16 %v427
      %v677 = vunpack.c.l.b16 %v428
      %v678 = vunpack.c.l.b16 %v429
      %v679 = vunpack.c.l.b16 %v430
      %v680 = vunpack.c.l.b16 %v431
      %v681 = vunpack.c.l.b16 %v432
      %v682 = vunpack.c.l.b16 %v433
      %v683 = vunpack.c.l.b16 %v434
      %v684 = vunpack.c.l.b16 %v435
      %v685 = vunpack.c.l.b16 %v436
      %v686 = vunpack.c.l.b16 %v437
      %v687 = vunpack.c.l.b16 %v438
      %v688 = vunpack.c.l.b16 %v439
      %v689 = vunpack.c.l.b16 %v440
      %v690 = vunpack.c.l.b16 %v441
      %v691 = vunpack.c.l.b16 %v442
      %v692 = vunpack.c.l.b16 %v443
      %v693 = vunpack.c.l.b16 %v444
      %v694 = vunpack.c.l.b16 %v445
      %v695 = vunpack.c.l.b16 %v446
      %v696 = vunpack.c.l.b16 %v447
      %v697 = vunpack.c.l.b16 %v448
      %v698 = vunpack.c.l.b16 %v449
      %v699 = vpack.c.b16 %v588, %v587
      %v700 = vpack.c.b16 %v590, %v589
      %v701 = vpack.c.b16 %v592, %v591
      %v702 = vpack.c.b16 %v594, %v593
      %v703 = vpack.c.b16 %v596, %v595
      %v704 = vpack.c.b16 %v598, %v597
      %v705 = vpack.c.b16 %v600, %v599
      %v706 = vpack.c.b16 %v602, %v601
      %v707 = vpack.c.b16 %v604, %v603
      %v708 = vpack.c.b16 %v606, %v605
      %v709 = vpack.c.b16 %v608, %v607
      %v710 = vpack.c.b16 %v610, %v609
      %v711 = vpack.c.b16 %v612, %v611
      %v712 = vpack.c.b16 %v614, %v613
      %v713 = vpack.c.b16 %v616, %v615
      %v714 = vpack.c.b16 %v618, %v617
      %v715 = vpack.c.b16 %v620, %v619
      %v716 = vpack.c.b16 %v622, %v621
      %v717 = vpack.c.b16 %v624, %v623
      %v718 = vpack.c.b16 %v626, %v625
      %v719 = vpack.c.b16 %v628, %v627
      %v720 = vpack.c.b16 %v630, %v629
      %v721 = vpack.c.b16 %v632, %v631
      %v722 = vpack.c.b16 %v634, %v633
      %v723 = vpack.c.b16 %v636, %v635
      %v724 = vpack.c.b16 %v638, %v637
      %v725 = vpack.c.b16 %v640, %v639
      %v726 = vpack.c.b16 %v642, %v641
      %v727 = vpack.c.b16 %v644, %v643
      %v728 = vpack.c.b16 %v646, %v645
      %v729 = vpack.c.b16 %v648, %v647
      %v730 = vpack.c.b16 %v650, %v649
      %v731 = vpack.c.b16 %v652, %v651
      %v732 = vpack.c.b16 %v654, %v653
      %v733 = vpack.c.b16 %v656, %v655
      %v734 = vpack.c.b16 %v658, %v657
      %v735 = vpack.c.b16 %v660, %v659
      %v736 = vpack.c.b16 %v662, %v661
      %v737 = vpack.c.b16 %v664, %v663
      %v738 = vpack.c.b16 %v666, %v665
      %v739 = vpack.c.b16 %v668, %v667
      %v740 = vpack.c.b16 %v670, %v669
      %v741 = vpack.c.b16 %v672, %v671
      %v742 = vpack.c.b16 %v674, %v673
      %v743 = vpack.c.b16 %v676, %v675
      %v744 = vpack.c.b16 %v678, %v677
      %v745 = vpack.c.b16 %v680, %v679
      %v746 = vpack.c.b16 %v682, %v681
      %v747 = vpack.c.b16 %v684, %v683
      %v748 = vpack.c.b16 %v686, %v685
      %v749 = vpack.c.b16 %v688, %v687
      %v750 = vpack.c.b16 %v690, %v689
      %v751 = vpack.c.b16 %v692, %v691
      %v752 = vpack.c.b16 %v694, %v693
      %v753 = vpack.c.b16 %v696, %v695
      %v754 = vpack.c.b16 %v698, %v697
      %811 = vmatprep.subr.bf16.mxu0 0
      %812 = vmatpush1.bf16.msra.mxu0 %v699
      %813 = vmatprep.subr.bf16.mxu0 0
      %814 = vmatpush1.bf16.msra.mxu0 %v700
      %815 = vmatprep.subr.bf16.mxu0 0
      %816 = vmatpush1.bf16.msra.mxu0 %v701
      %817 = vmatprep.subr.bf16.mxu0 0
      %818 = vmatpush1.bf16.msra.mxu0 %v702
      %819 = vmatprep.subr.bf16.mxu0 0
      %820 = vmatpush1.bf16.msra.mxu0 %v703
      %821 = vmatprep.subr.bf16.mxu0 0
      %822 = vmatpush1.bf16.msra.mxu0 %v704
      %823 = vmatprep.subr.bf16.mxu0 0
      %824 = vmatpush1.bf16.msra.mxu0 %v705
      %825 = vmatprep.subr.bf16.mxu0 0
      %826 = vmatpush1.bf16.msra.mxu0 %v706
      %827 = vmatprep.subr.bf16.mxu0 0
      %828 = vmatpush1.bf16.msra.mxu0 %v707
      %829 = vmatprep.subr.bf16.mxu0 0
      %830 = vmatpush1.bf16.msra.mxu0 %v708
      %831 = vmatprep.subr.bf16.mxu0 0
      %832 = vmatpush1.bf16.msra.mxu0 %v709
      %833 = vmatprep.subr.bf16.mxu0 0
      %834 = vmatpush1.bf16.msra.mxu0 %v710
      %835 = vmatprep.subr.bf16.mxu0 0
      %836 = vmatpush1.bf16.msra.mxu0 %v711
      %837 = vmatprep.subr.bf16.mxu0 0
      %838 = vmatpush1.bf16.msra.mxu0 %v712
      %839 = vmatprep.subr.bf16.mxu0 0
      %840 = vmatpush1.bf16.msra.mxu0 %v713
      %841 = vmatprep.subr.bf16.mxu0 0
      %842 = vmatpush1.bf16.msra.mxu0 %v714
      %843 = vmatprep.mubr.bf16.mxu0 %v462
      %844 = vmatmul.mubr.bf16.gmra.mrb[0].mxu0 %v461
      %v845 = vpop.f32.mrb[0].mxu0
      %v846 = vadd.f32 0.0, %v845
      %v847 = vpop.f32.mrb[0].mxu0
      %v848 = vpop.f32.mrb[0].mxu0
      %v849 = vpop.f32.mrb[0].mxu0
      %850 = vdwg.mxu0
      %851 = vmatprep.subr.bf16.mxu0 0
      %852 = vmatpush1.bf16.msra.mxu0 %v715
      %853 = vmatprep.subr.bf16.mxu0 0
      %854 = vmatpush1.bf16.msra.mxu0 %v716
      %855 = vmatprep.subr.bf16.mxu0 0
      %856 = vmatpush1.bf16.msra.mxu0 %v717
      %857 = vmatprep.subr.bf16.mxu0 0
      %858 = vmatpush1.bf16.msra.mxu0 %v718
      %859 = vmatprep.subr.bf16.mxu0 0
      %860 = vmatpush1.bf16.msra.mxu0 %v719
      %861 = vmatprep.subr.bf16.mxu0 0
      %862 = vmatpush1.bf16.msra.mxu0 %v720
      %863 = vmatprep.subr.bf16.mxu0 0
      %864 = vmatpush1.bf16.msra.mxu0 %v721
      %865 = vmatprep.subr.bf16.mxu0 0
      %866 = vmatpush1.bf16.msra.mxu0 %v722
      %867 = vmatprep.subr.bf16.mxu0 0
      %868 = vmatpush1.bf16.msra.mxu0 %v723
      %869 = vmatprep.subr.bf16.mxu0 0
      %870 = vmatpush1.bf16.msra.mxu0 %v724
      %871 = vmatprep.subr.bf16.mxu0 0
      %872 = vmatpush1.bf16.msra.mxu0 %v725
      %873 = vmatprep.subr.bf16.mxu0 0
      %874 = vmatpush1.bf16.msra.mxu0 %v726
      %875 = vmatprep.subr.bf16.mxu0 0
      %876 = vmatpush1.bf16.msra.mxu0 %v727
      %877 = vmatprep.subr.bf16.mxu0 0
      %878 = vmatpush1.bf16.msra.mxu0 %v728
      %879 = vmatprep.subr.bf16.mxu0 0
      %880 = vmatpush1.bf16.msra.mxu0 %v729
      %881 = vmatprep.subr.bf16.mxu0 0
      %882 = vmatpush1.bf16.msra.mxu0 %v730
      %883 = vmatprep.mubr.bf16.mxu0 %v464
      %884 = vmatmul.mubr.bf16.gmra.mrb[0].mxu0 %v463
      %v885 = vpop.f32.mrb[0].mxu0
      %v886 = vadd.f32 %v846, %v885
      %v887 = vpop.f32.mrb[0].mxu0
      %v888 = vpop.f32.mrb[0].mxu0
      %v889 = vpop.f32.mrb[0].mxu0
      %890 = vdwg.mxu0
      %891 = vmatprep.subr.bf16.mxu0 0
      %892 = vmatpush1.bf16.msra.mxu0 %v731
      %893 = vmatprep.subr.bf16.mxu0 0
      %894 = vmatpush1.bf16.msra.mxu0 %v732
      %895 = vmatprep.subr.bf16.mxu0 0
      %896 = vmatpush1.bf16.msra.mxu0 %v733
      %897 = vmatprep.subr.bf16.mxu0 0
      %898 = vmatpush1.bf16.msra.mxu0 %v734
      %899 = vmatprep.subr.bf16.mxu0 0
      %900 = vmatpush1.bf16.msra.mxu0 %v735
      %901 = vmatprep.subr.bf16.mxu0 0
      %902 = vmatpush1.bf16.msra.mxu0 %v736
      %903 = vmatprep.subr.bf16.mxu0 0
      %904 = vmatpush1.bf16.msra.mxu0 %v737
      %905 = vmatprep.subr.bf16.mxu0 0
      %906 = vmatpush1.bf16.msra.mxu0 %v738
      %907 = vmatprep.subr.bf16.mxu0 0
      %908 = vmatpush1.bf16.msra.mxu0 %v739
      %909 = vmatprep.subr.bf16.mxu0 0
      %910 = vmatpush1.bf16.msra.mxu0 %v740
      %911 = vmatprep.subr.bf16.mxu0 0
      %912 = vmatpush1.bf16.msra.mxu0 %v741
      %913 = vmatprep.subr.bf16.mxu0 0
      %914 = vmatpush1.bf16.msra.mxu0 %v742
      %915 = vmatprep.subr.bf16.mxu0 0
      %916 = vmatpush1.bf16.msra.mxu0 %v743
      %917 = vmatprep.subr.bf16.mxu0 0
      %918 = vmatpush1.bf16.msra.mxu0 %v744
      %919 = vmatprep.subr.bf16.mxu0 0
      %920 = vmatpush1.bf16.msra.mxu0 %v745
      %921 = vmatprep.subr.bf16.mxu0 0
      %922 = vmatpush1.bf16.msra.mxu0 %v746
      %923 = vmatprep.mubr.bf16.mxu0 %v466
      %924 = vmatmul.mubr.bf16.gmra.mrb[0].mxu0 %v465
      %v925 = vpop.f32.mrb[0].mxu0
      %v926 = vadd.f32 %v886, %v925
      %v927 = vpop.f32.mrb[0].mxu0
      %v928 = vpop.f32.mrb[0].mxu0
      %v929 = vpop.f32.mrb[0].mxu0
      %930 = vdwg.mxu0
      %931 = vmatprep.subr.bf16.mxu0 0
      %932 = vmatpush1.bf16.msra.mxu0 %v747
      %933 = vmatprep.subr.bf16.mxu0 0
      %934 = vmatpush1.bf16.msra.mxu0 %v748
      %935 = vmatprep.subr.bf16.mxu0 0
      %936 = vmatpush1.bf16.msra.mxu0 %v749
      %937 = vmatprep.subr.bf16.mxu0 0
      %938 = vmatpush1.bf16.msra.mxu0 %v750
      %939 = vmatprep.subr.bf16.mxu0 0
      %940 = vmatpush1.bf16.msra.mxu0 %v751
      %941 = vmatprep.subr.bf16.mxu0 0
      %942 = vmatpush1.bf16.msra.mxu0 %v752
      %943 = vmatprep.subr.bf16.mxu0 0
      %944 = vmatpush1.bf16.msra.mxu0 %v753
      %945 = vmatprep.subr.bf16.mxu0 0
      %946 = vmatpush1.bf16.msra.mxu0 %v754
      %947 = vmatprep.subr.bf16.mxu0 0
      %948 = vmatpush1.bf16.msra.mxu0 0
      %949 = vmatprep.subr.bf16.mxu0 0
      %950 = vmatpush1.bf16.msra.mxu0 0
      %951 = vmatprep.subr.bf16.mxu0 0
      %952 = vmatpush1.bf16.msra.mxu0 0
      %953 = vmatprep.subr.bf16.mxu0 0
      %954 = vmatpush1.bf16.msra.mxu0 0
      %955 = vmatprep.subr.bf16.mxu0 0
      %956 = vmatpush1.bf16.msra.mxu0 0
      %957 = vmatprep.subr.bf16.mxu0 0
      %958 = vmatpush1.bf16.msra.mxu0 0
      %959 = vmatprep.subr.bf16.mxu0 0
      %960 = vmatpush1.bf16.msra.mxu0 0
      %961 = vmatprep.subr.bf16.mxu0 0
      %962 = vmatpush1.bf16.msra.mxu0 0
      %963 = vmatprep.mubr.bf16.mxu0 0
      %964 = vmatmul.mubr.bf16.gmra.mrb[0].mxu0 %v467
      %v965 = vpop.f32.mrb[0].mxu0
      %v966 = vadd.f32 %v926, %v965
      %v967 = vpop.f32.mrb[0].mxu0
      %v968 = vpop.f32.mrb[0].mxu0
      %v969 = vpop.f32.mrb[0].mxu0
      %970 = vdwg.mxu0
      %v971 = vadd.f32 %v333, %v966
      %972 = vst [vmem:[#allocation2] sm:$0xff] %v971
      %p973 = scmp.eq.s32.totalorder %s23, 6
      // Predicated region
      $region53: #{faster_rcnn_forward.3} parent=47 // pred_check
        %p974 = pneg %p973
      $region54: #{faster_rcnn_forward.3} parent=47 // pred_check_branch
        %976 = sbr.rel (%p974) target = $region56
      $region55: #{faster_rcnn_forward.3} parent=47 // pred_region
        %v977 = vld [vmem:[#allocation2] sm:$0xff]
        %v978 = vld [vmem:[%s2] sm:$0x1]
        %v980 = vlaneseq
        %v981 = vshrl.u32 %v980, 7
        %v982 = vsub.s32 0, %v981
        %v983 = vrot.slane %v978, %v982
        %v985 = vadd.f32 %v977, %v983
        %v986 = vmax.f32 %v985, 0.0
        %v987 = vpack.c.bf16 %v986, %v986
        %v988 = vld [vmem:[%s3] sm:$0xf]
        %v989 = vld [vmem:[%s3 + $0x4] sm:$0xf]
        %v990 = vld [vmem:[%s3 + $0x8] sm:$0xf]
        %v991 = vld [vmem:[%s3 + $0xc] sm:$0xf]
        %v992 = vld [vmem:[%s3 + $0x10] sm:$0xf]
        %v993 = vld [vmem:[%s3 + $0x14] sm:$0xf]
        %v994 = vld [vmem:[%s3 + $0x18] sm:$0xf]
        %v995 = vld [vmem:[%s3 + $0x1c] sm:$0xf]
        %v996 = vld [vmem:[%s3 + $0x20] sm:$0xf]
        %v997 = vld [vmem:[%s3 + $0x24] sm:$0xf]
        %v998 = vld [vmem:[%s3 + $0x28] sm:$0xf]
        %v999 = vld [vmem:[%s3 + $0x2c] sm:$0xf]
        %v1000 = vld [vmem:[%s3 + $0x30] sm:$0xf]
        %v1001 = vld [vmem:[%s3 + $0x34] sm:$0xf]
        %v1002 = vld [vmem:[%s3 + $0x38] sm:$0xf]
        %v1003 = vld [vmem:[%s3 + $0x3c] sm:$0xf]
        %v1004 = vld [vmem:[%s4] sm:$0x1]
        %v1006 = vlaneseq
        %v1007 = vshrl.u32 %v1006, 7
        %v1008 = vsub.s32 0, %v1007
        %v1009 = vrot.slane %v1004, %v1008
        %v1027 = vunpack.c.l.b16 %v988
        %v1028 = vunpack.c.l.b16 %v989
        %v1029 = vunpack.c.l.b16 %v990
        %v1030 = vunpack.c.l.b16 %v991
        %v1031 = vunpack.c.l.b16 %v992
        %v1032 = vunpack.c.l.b16 %v993
        %v1033 = vunpack.c.l.b16 %v994
        %v1034 = vunpack.c.l.b16 %v995
        %v1035 = vunpack.c.l.b16 %v996
        %v1036 = vunpack.c.l.b16 %v997
        %v1037 = vunpack.c.l.b16 %v998
        %v1038 = vunpack.c.l.b16 %v999
        %v1039 = vunpack.c.l.b16 %v1000
        %v1040 = vunpack.c.l.b16 %v1001
        %v1041 = vunpack.c.l.b16 %v1002
        %v1042 = vunpack.c.l.b16 %v1003
        %v1043 = vpack.c.b16 %v1028, %v1027
        %v1044 = vpack.c.b16 %v1030, %v1029
        %v1045 = vpack.c.b16 %v1032, %v1031
        %v1046 = vpack.c.b16 %v1034, %v1033
        %v1047 = vpack.c.b16 %v1036, %v1035
        %v1048 = vpack.c.b16 %v1038, %v1037
        %v1049 = vpack.c.b16 %v1040, %v1039
        %v1050 = vpack.c.b16 %v1042, %v1041
        %1059 = vmatprep.subr.bf16.mxu0 0
        %1060 = vmatpush1.bf16.msra.mxu0 %v1043
        %1061 = vmatprep.subr.bf16.mxu0 0
        %1062 = vmatpush1.bf16.msra.mxu0 %v1044
        %1063 = vmatprep.subr.bf16.mxu0 0
        %1064 = vmatpush1.bf16.msra.mxu0 %v1045
        %1065 = vmatprep.subr.bf16.mxu0 0
        %1066 = vmatpush1.bf16.msra.mxu0 %v1046
        %1067 = vmatprep.subr.bf16.mxu0 0
        %1068 = vmatpush1.bf16.msra.mxu0 %v1047
        %1069 = vmatprep.subr.bf16.mxu0 0
        %1070 = vmatpush1.bf16.msra.mxu0 %v1048
        %1071 = vmatprep.subr.bf16.mxu0 0
        %1072 = vmatpush1.bf16.msra.mxu0 %v1049
        %1073 = vmatprep.subr.bf16.mxu0 0
        %1074 = vmatpush1.bf16.msra.mxu0 %v1050
        %1075 = vmatprep.subr.bf16.mxu0 0
        %1076 = vmatpush1.bf16.msra.mxu0 0
        %1077 = vmatprep.subr.bf16.mxu0 0
        %1078 = vmatpush1.bf16.msra.mxu0 0
        %1079 = vmatprep.subr.bf16.mxu0 0
        %1080 = vmatpush1.bf16.msra.mxu0 0
        %1081 = vmatprep.subr.bf16.mxu0 0
        %1082 = vmatpush1.bf16.msra.mxu0 0
        %1083 = vmatprep.subr.bf16.mxu0 0
        %1084 = vmatpush1.bf16.msra.mxu0 0
        %1085 = vmatprep.subr.bf16.mxu0 0
        %1086 = vmatpush1.bf16.msra.mxu0 0
        %1087 = vmatprep.subr.bf16.mxu0 0
        %1088 = vmatpush1.bf16.msra.mxu0 0
        %1089 = vmatprep.subr.bf16.mxu0 0
        %1090 = vmatpush1.bf16.msra.mxu0 0
        %1091 = vmatprep.mubr.bf16.mxu0 0
        %1092 = vmatmul.mubr.bf16.gmra.mrb[0].mxu0 %v987
        %v1093 = vpop.f32.mrb[0].mxu0
        %v1094 = vadd.f32 %v1009, %v1093
        %v1095 = vpop.f32.mrb[0].mxu0
        %v1096 = vpop.f32.mrb[0].mxu0
        %v1097 = vpop.f32.mrb[0].mxu0
        %1098 = vdwg.mxu0
        %v1099 = vmax.f32 %v1094, 0.0
        %v1100 = vpack.c.bf16 %v1099, %v1099
        %v1101 = vld [vmem:[%s5] sm:$0xf]
        %v1102 = vld [vmem:[%s5 + $0x4] sm:$0xf]
        %v1103 = vld [vmem:[%s5 + $0x8] sm:$0xf]
        %v1104 = vld [vmem:[%s5 + $0xc] sm:$0xf]
        %v1105 = vld [vmem:[%s5 + $0x10] sm:$0xf]
        %v1106 = vld [vmem:[%s5 + $0x14] sm:$0xf]
        %v1107 = vld [vmem:[%s5 + $0x18] sm:$0xf]
        %v1108 = vld [vmem:[%s5 + $0x1c] sm:$0xf]
        %v1109 = vld [vmem:[%s5 + $0x20] sm:$0xf]
        %v1110 = vld [vmem:[%s5 + $0x24] sm:$0xf]
        %v1111 = vld [vmem:[%s5 + $0x28] sm:$0xf]
        %v1112 = vld [vmem:[%s5 + $0x2c] sm:$0xf]
        %v1113 = vld [vmem:[%s5 + $0x30] sm:$0xf]
        %v1114 = vld [vmem:[%s5 + $0x34] sm:$0xf]
        %v1115 = vld [vmem:[%s5 + $0x38] sm:$0xf]
        %v1116 = vld [vmem:[%s5 + $0x3c] sm:$0xf]
        %v1117 = vld [vmem:[%s6] sm:$0x1]
        %v1119 = vlaneseq
        %v1120 = vshrl.u32 %v1119, 7
        %v1121 = vsub.s32 0, %v1120
        %v1122 = vrot.slane %v1117, %v1121
        %v1140 = vunpack.c.l.b16 %v1101
        %v1141 = vunpack.c.l.b16 %v1102
        %v1142 = vunpack.c.l.b16 %v1103
        %v1143 = vunpack.c.l.b16 %v1104
        %v1144 = vunpack.c.l.b16 %v1105
        %v1145 = vunpack.c.l.b16 %v1106
        %v1146 = vunpack.c.l.b16 %v1107
        %v1147 = vunpack.c.l.b16 %v1108
        %v1148 = vunpack.c.l.b16 %v1109
        %v1149 = vunpack.c.l.b16 %v1110
        %v1150 = vunpack.c.l.b16 %v1111
        %v1151 = vunpack.c.l.b16 %v1112
        %v1152 = vunpack.c.l.b16 %v1113
        %v1153 = vunpack.c.l.b16 %v1114
        %v1154 = vunpack.c.l.b16 %v1115
        %v1155 = vunpack.c.l.b16 %v1116
        %v1156 = vpack.c.b16 %v1141, %v1140
        %v1157 = vpack.c.b16 %v1143, %v1142
        %v1158 = vpack.c.b16 %v1145, %v1144
        %v1159 = vpack.c.b16 %v1147, %v1146
        %v1160 = vpack.c.b16 %v1149, %v1148
        %v1161 = vpack.c.b16 %v1151, %v1150
        %v1162 = vpack.c.b16 %v1153, %v1152
        %v1163 = vpack.c.b16 %v1155, %v1154
        %1172 = vmatprep.subr.bf16.mxu0 0
        %1173 = vmatpush1.bf16.msra.mxu0 %v1156
        %1174 = vmatprep.subr.bf16.mxu0 0
        %1175 = vmatpush1.bf16.msra.mxu0 %v1157
        %1176 = vmatprep.subr.bf16.mxu0 0
        %1177 = vmatpush1.bf16.msra.mxu0 %v1158
        %1178 = vmatprep.subr.bf16.mxu0 0
        %1179 = vmatpush1.bf16.msra.mxu0 %v1159
        %1180 = vmatprep.subr.bf16.mxu0 0
        %1181 = vmatpush1.bf16.msra.mxu0 %v1160
        %1182 = vmatprep.subr.bf16.mxu0 0
        %1183 = vmatpush1.bf16.msra.mxu0 %v1161
        %1184 = vmatprep.subr.bf16.mxu0 0
        %1185 = vmatpush1.bf16.msra.mxu0 %v1162
        %1186 = vmatprep.subr.bf16.mxu0 0
        %1187 = vmatpush1.bf16.msra.mxu0 %v1163
        %1188 = vmatprep.subr.bf16.mxu0 0
        %1189 = vmatpush1.bf16.msra.mxu0 0
        %1190 = vmatprep.subr.bf16.mxu0 0
        %1191 = vmatpush1.bf16.msra.mxu0 0
        %1192 = vmatprep.subr.bf16.mxu0 0
        %1193 = vmatpush1.bf16.msra.mxu0 0
        %1194 = vmatprep.subr.bf16.mxu0 0
        %1195 = vmatpush1.bf16.msra.mxu0 0
        %1196 = vmatprep.subr.bf16.mxu0 0
        %1197 = vmatpush1.bf16.msra.mxu0 0
        %1198 = vmatprep.subr.bf16.mxu0 0
        %1199 = vmatpush1.bf16.msra.mxu0 0
        %1200 = vmatprep.subr.bf16.mxu0 0
        %1201 = vmatpush1.bf16.msra.mxu0 0
        %1202 = vmatprep.subr.bf16.mxu0 0
        %1203 = vmatpush1.bf16.msra.mxu0 0
        %1204 = vmatprep.mubr.bf16.mxu0 0
        %1205 = vmatmul.mubr.bf16.gmra.mrb[0].mxu0 %v1100
        %v1206 = vpop.f32.mrb[0].mxu0
        %v1207 = vadd.f32 %v1122, %v1206
        %v1208 = vpop.f32.mrb[0].mxu0
        %v1209 = vpop.f32.mrb[0].mxu0
        %v1210 = vpop.f32.mrb[0].mxu0
        %1211 = vdwg.mxu0
        %1212 = vst [vmem:[%s326] sm:$0xff] %v1207
      $region56: #{faster_rcnn_forward.3} parent=47 // pred_fallthru
        _
      %p1213 = scmp.lt.s32.totalorder %s22, 0
      %s1214 = scalar_select %p1213, %s22, 0
      %s1215 = smul.addr %s1214, 8
      %s1216 = scalar_lea.vmem %s7, %s1215
      // Predicated region
      $region57: #{faster_rcnn_forward.3} parent=47 // pred_check
        %p1217 = pneg %p207
      $region58: #{faster_rcnn_forward.3} parent=47 // pred_check_branch
        %1219 = sbr.rel (%p1217) target = $region60
      $region59: #{faster_rcnn_forward.3} parent=47 // pred_region
        _
      $region60: #{faster_rcnn_forward.3} parent=47 // pred_fallthru
        _
      // Predicated region
      $region61: #{faster_rcnn_forward.3} parent=47 // pred_check
        %p1220 = pneg %p207
      $region62: #{faster_rcnn_forward.3} parent=47 // pred_check_branch
        %1222 = sbr.rel (%p1220) target = $region64
      $region63: #{faster_rcnn_forward.3} parent=47 // pred_region
        %p1223 = scmp.lt.s32.totalorder %s22, 0
        %s1224 = scalar_select %p1223, %s22, 0
        %s1225 = smul.addr %s1224, 8
        %s1226 = scalar_lea.vmem %s7, %s1225
      $region64: #{faster_rcnn_forward.3} parent=47 // pred_fallthru
        _
    $region48: #{faster_rcnn_forward.3} parent=5 // pred_fallthru
      _
    %p1227 = scmp.le.s32.totalorder 2, %s13
    // Predicated region
    $region65: #{faster_rcnn_forward.3} parent=5 // pred_check
      %p1228 = pneg %p1227
    $region66: #{faster_rcnn_forward.3} parent=5 // pred_check_branch
      %1230 = sbr.rel (%p1228) target = $region68
    $region67: #{faster_rcnn_forward.3} parent=5 // pred_region
      %s1231 = ssub.s32 %s13, 2
    $region68: #{faster_rcnn_forward.3} parent=5 // pred_fallthru
      _
  $region6: #{faster_rcnn_forward.3} parent=0 // loop_footer
    %s17 = sadd.s32 1, %s13
  $region7: #{faster_rcnn_forward.3} parent=0 // loop_footer_branch
    %12 = sbr.rel target = $region3
  $region8: #{faster_rcnn_forward.3} parent=0 // loop_exit
    _

</llo_original>
